<compile_context>
chip_gen: v5e
topology: v5e:2x2
jax: 0.10.0
libtpu: 0.0.40
codegen_flags: <defaults>
</compile_context>

<pallas_src>
import math
from functools import partial

import jax
import jax.numpy as jnp
from jax.experimental import pallas as pl
from jax.experimental.pallas import tpu as pltpu

EMB_DIM = 256          # module-level constant, used only for the sqrt scaling
LN_EPS = 1e-5
NEG_INF = -1e30
MM_DTYPE = jnp.bfloat16  # MXU input dtype; accumulation is always f32


# ----------------------------------------------------------------------------
# small in-kernel helpers
# ----------------------------------------------------------------------------
def _mm(a, b):
    """MXU matmul: bf16 inputs, f32 accumulation."""
    return jnp.dot(a.astype(MM_DTYPE), b.astype(MM_DTYPE),
                   preferred_element_type=jnp.float32)


def _mm_nt(a, b):
    """a @ b.T without an explicit transpose (contract last dims of both)."""
    return jax.lax.dot_general(a.astype(MM_DTYPE), b.astype(MM_DTYPE),
                               (((1,), (1,)), ((), ())),
                               preferred_element_type=jnp.float32)


def _res_layernorm(x, y, g, b):
    """LayerNorm(x + y) with single-pass mean / variance."""
    z = x + y
    mean = jnp.mean(z, axis=-1, keepdims=True)
    var = jnp.mean(z * z, axis=-1, keepdims=True) - mean * mean
    return (z - mean) * jax.lax.rsqrt(var + LN_EPS) * g + b


# ----------------------------------------------------------------------------
# Pallas kernels
# ----------------------------------------------------------------------------
def _mha_res_ln_kernel(xq_ref, xkv_ref, wq_ref, bq_ref, wk_ref, bk_ref,
                       wv_ref, bv_ref, wo_ref, bo_ref, g_ref, b_ref, o_ref,
                       *, causal):
    """Fused multi-head attention + residual + LayerNorm for one batch element.

    xq_ref : (1, Lq, E)   query-side activations (also the residual)
    xkv_ref: (1, Lk, E)   key/value-side activations
    wq/wk/wv_ref : (H, E, d) per-head projection weights
    bq/bk/bv_ref : (H, 1, d) per-head projection biases
    wo_ref : (H, d, E)    per-head output-projection weights
    bo_ref : (1, E)       output-projection bias
    g_ref, b_ref : (1, E) LayerNorm gamma / beta
    """
    xq = xq_ref[0]            # (Lq, E) f32
    xkv = xkv_ref[0]          # (Lk, E) f32
    Lq, E = xq.shape
    Lk = xkv.shape[0]
    n_heads = wq_ref.shape[0]
    d = wq_ref.shape[2]
    scale = 1.0 / math.sqrt(d)

    if causal:
        row = jax.lax.broadcasted_iota(jnp.int32, (Lq, Lk), 0)
        col = jax.lax.broadcasted_iota(jnp.int32, (Lq, Lk), 1)
        causal_bias = jnp.where(col <= row, 0.0, NEG_INF).astype(jnp.float32)

    out = jnp.zeros((Lq, E), jnp.float32)
    for h in range(n_heads):           # static unroll: all heads, one kernel launch
        qh = _mm(xq, wq_ref[h]) + bq_ref[h]      # (Lq, d)
        kh = _mm(xkv, wk_ref[h]) + bk_ref[h]     # (Lk, d)
        vh = _mm(xkv, wv_ref[h]) + bv_ref[h]     # (Lk, d)

        s = _mm_nt(qh * scale, kh)               # (Lq, Lk), scale folded into q
        if causal:
            s = s + causal_bias
        s = s - jnp.max(s, axis=-1, keepdims=True)
        p = jnp.exp(s)
        p = p * pl.reciprocal(jnp.sum(p, axis=-1, keepdims=True), approx=True)

        oh = _mm(p, vh)                          # (Lq, d)
        out = out + _mm(oh, wo_ref[h])           # accumulate output projection
    out = out + bo_ref[...]

    o_ref[0] = _res_layernorm(xq, out, g_ref[...], b_ref[...])


def _ffn_res_ln_kernel(x_ref, w1_ref, b1_ref, w2_ref, b2_ref, g_ref, b_ref, o_ref):
    """Fused feed-forward (ReLU) + residual + LayerNorm on a row tile."""
    x = x_ref[...]                                            # (tm, E)
    h = jnp.maximum(_mm(x, w1_ref[...]) + b1_ref[...], 0.0)   # (tm, FF)
    y = _mm(h, w2_ref[...]) + b2_ref[...]                     # (tm, E)
    o_ref[...] = _res_layernorm(x, y, g_ref[...], b_ref[...])


def _linear_kernel(x_ref, w_ref, b_ref, o_ref):
    o_ref[...] = _mm(x_ref[...], w_ref[...]) + b_ref[...]


# ----------------------------------------------------------------------------
# Pallas wrappers
# ----------------------------------------------------------------------------
def _row_tile(M, max_tile=256):
    """Largest row tile: full array if it fits, else a multiple-of-8 divisor."""
    if M <= max_tile:
        return M
    for t in range(max_tile, 7, -8):
        if M % t == 0:
            return t
    return M


def mha_block(xq, xkv, ap, ln_g, ln_b, causal):
    """xq: (N, Lq, E), xkv: (N, Lk, E) -> LayerNorm(xq + MHA(xq, xkv, xkv))."""
    N, Lq, E = xq.shape
    Lk = xkv.shape[1]
    H, _, d = ap["wq_h"].shape

    def full(*shape):
        return pl.BlockSpec(shape, lambda b: (0,) * len(shape))

    return pl.pallas_call(
        partial(_mha_res_ln_kernel, causal=causal),
        out_shape=jax.ShapeDtypeStruct((N, Lq, E), jnp.float32),
        grid=(N,),
        in_specs=[
            pl.BlockSpec((1, Lq, E), lambda b: (b, 0, 0)),   # xq
            pl.BlockSpec((1, Lk, E), lambda b: (b, 0, 0)),   # xkv
            full(H, E, d), full(H, 1, d),                    # wq, bq
            full(H, E, d), full(H, 1, d),                    # wk, bk
            full(H, E, d), full(H, 1, d),                    # wv, bv
            full(H, d, E), full(1, E),                       # wo, bo
            full(1, E), full(1, E),                          # ln gamma, beta
        ],
        out_specs=pl.BlockSpec((1, Lq, E), lambda b: (b, 0, 0)),
        compiler_params=pltpu.CompilerParams(dimension_semantics=("parallel",)),
    )(xq, xkv,
      ap["wq_h"], ap["bq_h"], ap["wk_h"], ap["bk_h"], ap["wv_h"], ap["bv_h"],
      ap["wo_h"], ap["bo"].reshape(1, E),
      ln_g.reshape(1, E), ln_b.reshape(1, E))


def ffn_ln(x, w1, b1, w2, b2, g, b):
    """x: (M, E) -> LayerNorm(x + Linear2(ReLU(Linear1(x))))."""
    M, E = x.shape
    FF = w1.shape[1]
    tm = _row_tile(M)
    return pl.pallas_call(
        _ffn_res_ln_kernel,
        out_shape=jax.ShapeDtypeStruct((M, E), jnp.float32),
        grid=(M // tm,),
        in_specs=[
            pl.BlockSpec((tm, E), lambda i: (i, 0)),
            pl.BlockSpec((E, FF), lambda i: (0, 0)),
            pl.BlockSpec((1, FF), lambda i: (0, 0)),
            pl.BlockSpec((FF, E), lambda i: (0, 0)),
            pl.BlockSpec((1, E), lambda i: (0, 0)),
            pl.BlockSpec((1, E), lambda i: (0, 0)),
            pl.BlockSpec((1, E), lambda i: (0, 0)),
        ],
        out_specs=pl.BlockSpec((tm, E), lambda i: (i, 0)),
        compiler_params=pltpu.CompilerParams(dimension_semantics=("parallel",)),
    )(x, w1, b1.reshape(1, FF), w2, b2.reshape(1, E), g.reshape(1, E), b.reshape(1, E))


def linear(x, w, b):
    """x: (M, K) @ w: (K, N) + b, row-tiled grid."""
    M, K = x.shape
    N = w.shape[1]
    tm = _row_tile(M)
    return pl.pallas_call(
        _linear_kernel,
        out_shape=jax.ShapeDtypeStruct((M, N), jnp.float32),
        grid=(M // tm,),
        in_specs=[
            pl.BlockSpec((tm, K), lambda i: (i, 0)),
            pl.BlockSpec((K, N), lambda i: (0, 0)),
            pl.BlockSpec((1, N), lambda i: (0, 0)),
        ],
        out_specs=pl.BlockSpec((tm, N), lambda i: (i, 0)),
        compiler_params=pltpu.CompilerParams(dimension_semantics=("parallel",)),
    )(x, w, b.reshape(1, N))


# ----------------------------------------------------------------------------
# Transformer layers (glue around the fused kernels)
# ----------------------------------------------------------------------------
def encoder_layer(x, p):
    # x: (N, L, E); post-norm TransformerEncoderLayer, ReLU FFN, dropout = identity.
    N, L, E = x.shape
    x = mha_block(x, x, p["self_attn"], p["norm1_g"], p["norm1_b"], causal=False)
    y = ffn_ln(x.reshape(N * L, E), p["w1"], p["b1"], p["w2"], p["b2"],
               p["norm2_g"], p["norm2_b"])
    return y.reshape(N, L, E)


def decoder_layer(x, memory, p):
    # x: (N, Lt, E), memory: (N, Ls, E); post-norm TransformerDecoderLayer.
    N, L, E = x.shape
    x = mha_block(x, x, p["self_attn"], p["norm1_g"], p["norm1_b"], causal=True)
    x = mha_block(x, memory, p["cross_attn"], p["norm2_g"], p["norm2_b"], causal=False)
    y = ffn_ln(x.reshape(N * L, E), p["w1"], p["b1"], p["w2"], p["b2"],
               p["norm3_g"], p["norm3_b"])
    return y.reshape(N, L, E)


def seq2seq_forward(params, src, trg):
    # src, trg: (seq_len, batch) int32
    # Token embedding lookups stay in plain JAX (gather glue).
    src_emb = jnp.take(params["src_emb"], src, axis=0) * (EMB_DIM ** 0.5)  # (Ls,N,E)
    trg_emb = jnp.take(params["trg_emb"], trg, axis=0) * (EMB_DIM ** 0.5)  # (Lt,N,E)

    # internal layout: (batch, seq, emb)
    memory = jnp.transpose(src_emb, (1, 0, 2))
    for p in params["enc_layers"]:
        memory = encoder_layer(memory, p)

    x = jnp.transpose(trg_emb, (1, 0, 2))
    for p in params["dec_layers"]:
        x = decoder_layer(x, memory, p)

    N, Lt, E = x.shape
    out = linear(x.reshape(N * Lt, E), params["fc_w"], params["fc_b"])
    out = out.reshape(N, Lt, -1)
    return jnp.transpose(out, (1, 0, 2))          # (Lt, N, trg_vocab)


# ----------------------------------------------------------------------------
# Deterministic parameter init (xavier_uniform for dim>1, zeros for biases,
# ones/zeros for LayerNorm — mirroring the module's _reset_parameters semantics).
# MHA weights are stored per-head, (H, E, d) / (H, d, E), so the fused kernel
# never needs in-kernel reshapes / lane slicing.
# ----------------------------------------------------------------------------
def _xavier(key, fan_in, fan_out, shape):
    limit = math.sqrt(6.0 / (fan_in + fan_out))
    return jax.random.uniform(key, shape, jnp.float32, -limit, limit)


def _mha_params(key, E, H):
    d = E // H
    ks = jax.random.split(key, 4)
    wq = _xavier(ks[0], E, E, (E, E))
    wk = _xavier(ks[1], E, E, (E, E))
    wv = _xavier(ks[2], E, E, (E, E))
    wo = _xavier(ks[3], E, E, (E, E))
    return {
        "wq_h": wq.reshape(E, H, d).transpose(1, 0, 2),   # (H, E, d)
        "wk_h": wk.reshape(E, H, d).transpose(1, 0, 2),
        "wv_h": wv.reshape(E, H, d).transpose(1, 0, 2),
        "wo_h": wo.reshape(H, d, E),                      # (H, d, E)
        "bq_h": jnp.zeros((H, 1, d), jnp.float32),
        "bk_h": jnp.zeros((H, 1, d), jnp.float32),
        "bv_h": jnp.zeros((H, 1, d), jnp.float32),
        "bo": jnp.zeros((E,), jnp.float32),
    }


def _enc_layer_params(key, E, FF, H):
    ks = jax.random.split(key, 3)
    return {
        "self_attn": _mha_params(ks[0], E, H),
        "w1": _xavier(ks[1], E, FF, (E, FF)),
        "b1": jnp.zeros((FF,), jnp.float32),
        "w2": _xavier(ks[2], FF, E, (FF, E)),
        "b2": jnp.zeros((E,), jnp.float32),
        "norm1_g": jnp.ones((E,), jnp.float32),
        "norm1_b": jnp.zeros((E,), jnp.float32),
        "norm2_g": jnp.ones((E,), jnp.float32),
        "norm2_b": jnp.zeros((E,), jnp.float32),
    }


def _dec_layer_params(key, E, FF, H):
    ks = jax.random.split(key, 4)
    return {
        "self_attn": _mha_params(ks[0], E, H),
        "cross_attn": _mha_params(ks[1], E, H),
        "w1": _xavier(ks[2], E, FF, (E, FF)),
        "b1": jnp.zeros((FF,), jnp.float32),
        "w2": _xavier(ks[3], FF, E, (FF, E)),
        "b2": jnp.zeros((E,), jnp.float32),
        "norm1_g": jnp.ones((E,), jnp.float32),
        "norm1_b": jnp.zeros((E,), jnp.float32),
        "norm2_g": jnp.ones((E,), jnp.float32),
        "norm2_b": jnp.zeros((E,), jnp.float32),
        "norm3_g": jnp.ones((E,), jnp.float32),
        "norm3_b": jnp.zeros((E,), jnp.float32),
    }


def init_params(key, src_vocab, trg_vocab, E, n_enc, n_dec, enc_ff, dec_ff, n_heads):
    keys = jax.random.split(key, 4 + n_enc + n_dec)
    return {
        "src_emb": _xavier(keys[0], E, src_vocab, (src_vocab, E)),
        "trg_emb": _xavier(keys[1], E, trg_vocab, (trg_vocab, E)),
        "fc_w": _xavier(keys[2], E, trg_vocab, (E, trg_vocab)),
        "fc_b": jnp.zeros((trg_vocab,), jnp.float32),
        "enc_layers": [
            _enc_layer_params(keys[4 + i], E, enc_ff, n_heads) for i in range(n_enc)
        ],
        "dec_layers": [
            _dec_layer_params(keys[4 + n_enc + i], E, dec_ff, n_heads)
            for i in range(n_dec)
        ],
    }


# ----------------------------------------------------------------------------
# Main
# ----------------------------------------------------------------------------
if __name__ == "__main__":
    # Small config consistent with the module's constructor signature.
    src_vocab_size = 50
    trg_vocab_size = 60
    emb_dim = 32
    n_encoder_layers = 2
    n_decoder_layers = 2
    n_heads = 4
    encoder_dim_ff = 64
    decoder_dim_ff = 64
    # encoder_dropout / decoder_dropout -> identity (deterministic forward)
    # TODO(synk): trg_vocab (60) is not padded to a 128-lane multiple; pad fc_w/out
    # for lane-dense stores if this projection ever becomes large.

    src_seq_len, trg_seq_len, batch = 8, 8, 2

    key = jax.random.PRNGKey(0)
    kp, ks, kt = jax.random.split(key, 3)
    params = init_params(
        kp, src_vocab_size, trg_vocab_size, emb_dim,
        n_encoder_layers, n_decoder_layers, encoder_dim_ff, decoder_dim_ff, n_heads,
    )
    src = jax.random.randint(ks, (src_seq_len, batch), 0, src_vocab_size, jnp.int32)
    trg = jax.random.randint(kt, (trg_seq_len, batch), 0, trg_vocab_size, jnp.int32)

    fwd = jax.jit(seq2seq_forward)
    out = fwd(params, src, trg)
    out = jax.block_until_ready(out)

    assert out.shape == (trg_seq_len, batch, trg_vocab_size), out.shape
    assert bool(jnp.all(jnp.isfinite(out)))
    print("KERNEL_OK")
</pallas_src>

<mosaic_0001>
module attributes {stable_mosaic.version = 11 : i64} {
  func.func @_mha_res_ln_kernel(%arg0: i32, %arg1: memref<1x8x32xf32, #tpu.memory_space<vmem>>, %arg2: memref<1x8x32xf32, #tpu.memory_space<vmem>>, %arg3: memref<4x32x8xf32, #tpu.memory_space<vmem>>, %arg4: memref<4x1x8xf32, #tpu.memory_space<vmem>>, %arg5: memref<4x32x8xf32, #tpu.memory_space<vmem>>, %arg6: memref<4x1x8xf32, #tpu.memory_space<vmem>>, %arg7: memref<4x32x8xf32, #tpu.memory_space<vmem>>, %arg8: memref<4x1x8xf32, #tpu.memory_space<vmem>>, %arg9: memref<4x8x32xf32, #tpu.memory_space<vmem>>, %arg10: memref<1x32xf32, #tpu.memory_space<vmem>>, %arg11: memref<1x32xf32, #tpu.memory_space<vmem>>, %arg12: memref<1x32xf32, #tpu.memory_space<vmem>>, %arg13: memref<1x8x32xf32, #tpu.memory_space<vmem>>) attributes {dimension_semantics = [#tpu.dimension_semantics<parallel>], iteration_bounds = array<i64: 2>, scalar_prefetch = 0 : i64, scratch_operands = 0 : i64, tpu.core_type = #tpu.core_type<tc>, window_params = [{transform_indices = @transform_0, window_bounds = array<i64: 1, 8, 32>}, {transform_indices = @transform_1, window_bounds = array<i64: 1, 8, 32>}, {pipeline_mode = #tpu.pipeline_mode<synchronous>, transform_indices = @transform_2, window_bounds = array<i64: 4, 32, 8>}, {pipeline_mode = #tpu.pipeline_mode<synchronous>, transform_indices = @transform_3, window_bounds = array<i64: 4, 1, 8>}, {pipeline_mode = #tpu.pipeline_mode<synchronous>, transform_indices = @transform_4, window_bounds = array<i64: 4, 32, 8>}, {pipeline_mode = #tpu.pipeline_mode<synchronous>, transform_indices = @transform_5, window_bounds = array<i64: 4, 1, 8>}, {pipeline_mode = #tpu.pipeline_mode<synchronous>, transform_indices = @transform_6, window_bounds = array<i64: 4, 32, 8>}, {pipeline_mode = #tpu.pipeline_mode<synchronous>, transform_indices = @transform_7, window_bounds = array<i64: 4, 1, 8>}, {pipeline_mode = #tpu.pipeline_mode<synchronous>, transform_indices = @transform_8, window_bounds = array<i64: 4, 8, 32>}, {pipeline_mode = #tpu.pipeline_mode<synchronous>, transform_indices = @transform_9, window_bounds = array<i64: 1, 32>}, {pipeline_mode = #tpu.pipeline_mode<synchronous>, transform_indices = @transform_10, window_bounds = array<i64: 1, 32>}, {pipeline_mode = #tpu.pipeline_mode<synchronous>, transform_indices = @transform_11, window_bounds = array<i64: 1, 32>}, {transform_indices = @transform_12, window_bounds = array<i64: 1, 8, 32>}]} {
    %c0 = arith.constant 0 : index
    %c0_0 = arith.constant 0 : index
    %c0_1 = arith.constant 0 : index
    %0 = vector.load %arg1[%c0, %c0_0, %c0_1] : memref<1x8x32xf32, #tpu.memory_space<vmem>>, vector<1x8x32xf32>
    %1 = vector.shape_cast %0 : vector<1x8x32xf32> to vector<8x32xf32>
    %c0_2 = arith.constant 0 : index
    %c0_3 = arith.constant 0 : index
    %c0_4 = arith.constant 0 : index
    %2 = vector.load %arg2[%c0_2, %c0_3, %c0_4] : memref<1x8x32xf32, #tpu.memory_space<vmem>>, vector<1x8x32xf32>
    %3 = vector.shape_cast %2 : vector<1x8x32xf32> to vector<8x32xf32>
    %4 = tpu.iota {dimensions = array<i32: 0>} : vector<8x8xi32>
    %5 = tpu.iota {dimensions = array<i32: 1>} : vector<8x8xi32>
    %6 = arith.cmpi sle, %5, %4 : vector<8x8xi32>
    %cst = arith.constant 0.000000e+00 : f32
    %cst_5 = arith.constant -1.000000e+30 : f32
    %7 = vector.broadcast %cst : f32 to vector<8x8xf32>
    %8 = vector.broadcast %cst_5 : f32 to vector<8x8xf32>
    %9 = arith.select %6, %7, %8 : vector<8x8xi1>, vector<8x8xf32>
    %cst_6 = arith.constant 0.000000e+00 : f32
    %10 = vector.broadcast %cst_6 : f32 to vector<8x32xf32>
    %c0_7 = arith.constant 0 : index
    %c0_8 = arith.constant 0 : index
    %c0_9 = arith.constant 0 : index
    %11 = vector.load %arg3[%c0_7, %c0_8, %c0_9] : memref<4x32x8xf32, #tpu.memory_space<vmem>>, vector<1x32x8xf32>
    %12 = vector.shape_cast %11 : vector<1x32x8xf32> to vector<32x8xf32>
    %13 = arith.truncf %1 : vector<8x32xf32> to vector<8x32xbf16>
    %14 = arith.truncf %12 : vector<32x8xf32> to vector<32x8xbf16>
    %cst_10 = arith.constant dense<0.000000e+00> : vector<8x8xf32>
    %15 = tpu.matmul %13, %14, %cst_10 {dimension_numbers = #tpu.dot_dimension_numbers<[1], [0], [0], [1], [0, 0, 1, 1], [], []>} : vector<8x32xbf16>, vector<32x8xbf16>, vector<8x8xf32> -> vector<8x8xf32>
    %c0_11 = arith.constant 0 : index
    %c0_12 = arith.constant 0 : index
    %c0_13 = arith.constant 0 : index
    %16 = vector.load %arg4[%c0_11, %c0_12, %c0_13] : memref<4x1x8xf32, #tpu.memory_space<vmem>>, vector<1x1x8xf32>
    %17 = vector.shape_cast %16 : vector<1x1x8xf32> to vector<1x8xf32>
    %18 = vector.broadcast %17 : vector<1x8xf32> to vector<8x8xf32>
    %19 = arith.addf %15, %18 : vector<8x8xf32>
    %c0_14 = arith.constant 0 : index
    %c0_15 = arith.constant 0 : index
    %c0_16 = arith.constant 0 : index
    %20 = vector.load %arg5[%c0_14, %c0_15, %c0_16] : memref<4x32x8xf32, #tpu.memory_space<vmem>>, vector<1x32x8xf32>
    %21 = vector.shape_cast %20 : vector<1x32x8xf32> to vector<32x8xf32>
    %22 = arith.truncf %3 : vector<8x32xf32> to vector<8x32xbf16>
    %23 = arith.truncf %21 : vector<32x8xf32> to vector<32x8xbf16>
    %cst_17 = arith.constant dense<0.000000e+00> : vector<8x8xf32>
    %24 = tpu.matmul %22, %23, %cst_17 {dimension_numbers = #tpu.dot_dimension_numbers<[1], [0], [0], [1], [0, 0, 1, 1], [], []>} : vector<8x32xbf16>, vector<32x8xbf16>, vector<8x8xf32> -> vector<8x8xf32>
    %c0_18 = arith.constant 0 : index
    %c0_19 = arith.constant 0 : index
    %c0_20 = arith.constant 0 : index
    %25 = vector.load %arg6[%c0_18, %c0_19, %c0_20] : memref<4x1x8xf32, #tpu.memory_space<vmem>>, vector<1x1x8xf32>
    %26 = vector.shape_cast %25 : vector<1x1x8xf32> to vector<1x8xf32>
    %27 = vector.broadcast %26 : vector<1x8xf32> to vector<8x8xf32>
    %28 = arith.addf %24, %27 : vector<8x8xf32>
    %c0_21 = arith.constant 0 : index
    %c0_22 = arith.constant 0 : index
    %c0_23 = arith.constant 0 : index
    %29 = vector.load %arg7[%c0_21, %c0_22, %c0_23] : memref<4x32x8xf32, #tpu.memory_space<vmem>>, vector<1x32x8xf32>
    %30 = vector.shape_cast %29 : vector<1x32x8xf32> to vector<32x8xf32>
    %31 = arith.truncf %3 : vector<8x32xf32> to vector<8x32xbf16>
    %32 = arith.truncf %30 : vector<32x8xf32> to vector<32x8xbf16>
    %cst_24 = arith.constant dense<0.000000e+00> : vector<8x8xf32>
    %33 = tpu.matmul %31, %32, %cst_24 {dimension_numbers = #tpu.dot_dimension_numbers<[1], [0], [0], [1], [0, 0, 1, 1], [], []>} : vector<8x32xbf16>, vector<32x8xbf16>, vector<8x8xf32> -> vector<8x8xf32>
    %c0_25 = arith.constant 0 : index
    %c0_26 = arith.constant 0 : index
    %c0_27 = arith.constant 0 : index
    %34 = vector.load %arg8[%c0_25, %c0_26, %c0_27] : memref<4x1x8xf32, #tpu.memory_space<vmem>>, vector<1x1x8xf32>
    %35 = vector.shape_cast %34 : vector<1x1x8xf32> to vector<1x8xf32>
    %36 = vector.broadcast %35 : vector<1x8xf32> to vector<8x8xf32>
    %37 = arith.addf %33, %36 : vector<8x8xf32>
    %cst_28 = arith.constant 0.353553385 : f32
    %38 = vector.broadcast %cst_28 : f32 to vector<8x8xf32>
    %39 = arith.mulf %19, %38 : vector<8x8xf32>
    %40 = arith.truncf %39 : vector<8x8xf32> to vector<8x8xbf16>
    %41 = arith.truncf %28 : vector<8x8xf32> to vector<8x8xbf16>
    %cst_29 = arith.constant dense<0.000000e+00> : vector<8x8xf32>
    %42 = tpu.matmul %40, %41, %cst_29 {dimension_numbers = #tpu.dot_dimension_numbers<[1], [1], [0], [0], [0, 0, 1, 0], [], []>} : vector<8x8xbf16>, vector<8x8xbf16>, vector<8x8xf32> -> vector<8x8xf32>
    %43 = arith.addf %42, %9 : vector<8x8xf32>
    %cst_30 = arith.constant dense<0xFF800000> : vector<8xf32>
    %44 = vector.multi_reduction <maximumf>, %43, %cst_30 [1] : vector<8x8xf32> to vector<8xf32>
    %45 = vector.shape_cast %44 : vector<8xf32> to vector<8x1xf32>
    %46 = vector.broadcast %45 : vector<8x1xf32> to vector<8x8xf32>
    %47 = arith.subf %43, %46 : vector<8x8xf32>
    %48 = math.exp %47 : vector<8x8xf32>
    %cst_31 = arith.constant dense<0.000000e+00> : vector<8xf32>
    %49 = vector.multi_reduction <add>, %48, %cst_31 [1] : vector<8x8xf32> to vector<8xf32>
    %50 = vector.shape_cast %49 : vector<8xf32> to vector<8x1xf32>
    %51 = tpu.reciprocal %50 {approx = true} : vector<8x1xf32> -> vector<8x1xf32>
    %52 = vector.broadcast %51 : vector<8x1xf32> to vector<8x8xf32>
    %53 = arith.mulf %48, %52 : vector<8x8xf32>
    %54 = arith.truncf %53 : vector<8x8xf32> to vector<8x8xbf16>
    %55 = arith.truncf %37 : vector<8x8xf32> to vector<8x8xbf16>
    %cst_32 = arith.constant dense<0.000000e+00> : vector<8x8xf32>
    %56 = tpu.matmul %54, %55, %cst_32 {dimension_numbers = #tpu.dot_dimension_numbers<[1], [0], [0], [1], [0, 0, 1, 1], [], []>} : vector<8x8xbf16>, vector<8x8xbf16>, vector<8x8xf32> -> vector<8x8xf32>
    %c0_33 = arith.constant 0 : index
    %c0_34 = arith.constant 0 : index
    %c0_35 = arith.constant 0 : index
    %57 = vector.load %arg9[%c0_33, %c0_34, %c0_35] : memref<4x8x32xf32, #tpu.memory_space<vmem>>, vector<1x8x32xf32>
    %58 = vector.shape_cast %57 : vector<1x8x32xf32> to vector<8x32xf32>
    %59 = arith.truncf %56 : vector<8x8xf32> to vector<8x8xbf16>
    %60 = arith.truncf %58 : vector<8x32xf32> to vector<8x32xbf16>
    %cst_36 = arith.constant dense<0.000000e+00> : vector<8x32xf32>
    %61 = tpu.matmul %59, %60, %cst_36 {dimension_numbers = #tpu.dot_dimension_numbers<[1], [0], [0], [1], [0, 0, 1, 1], [], []>} : vector<8x8xbf16>, vector<8x32xbf16>, vector<8x32xf32> -> vector<8x32xf32>
    %62 = arith.addf %10, %61 : vector<8x32xf32>
    %c1 = arith.constant 1 : index
    %c0_37 = arith.constant 0 : index
    %c0_38 = arith.constant 0 : index
    %63 = vector.load %arg3[%c1, %c0_37, %c0_38] : memref<4x32x8xf32, #tpu.memory_space<vmem>>, vector<1x32x8xf32>
    %64 = vector.shape_cast %63 : vector<1x32x8xf32> to vector<32x8xf32>
    %65 = arith.truncf %1 : vector<8x32xf32> to vector<8x32xbf16>
    %66 = arith.truncf %64 : vector<32x8xf32> to vector<32x8xbf16>
    %cst_39 = arith.constant dense<0.000000e+00> : vector<8x8xf32>
    %67 = tpu.matmul %65, %66, %cst_39 {dimension_numbers = #tpu.dot_dimension_numbers<[1], [0], [0], [1], [0, 0, 1, 1], [], []>} : vector<8x32xbf16>, vector<32x8xbf16>, vector<8x8xf32> -> vector<8x8xf32>
    %c1_40 = arith.constant 1 : index
    %c0_41 = arith.constant 0 : index
    %c0_42 = arith.constant 0 : index
    %68 = vector.load %arg4[%c1_40, %c0_41, %c0_42] : memref<4x1x8xf32, #tpu.memory_space<vmem>>, vector<1x1x8xf32>
    %69 = vector.shape_cast %68 : vector<1x1x8xf32> to vector<1x8xf32>
    %70 = vector.broadcast %69 : vector<1x8xf32> to vector<8x8xf32>
    %71 = arith.addf %67, %70 : vector<8x8xf32>
    %c1_43 = arith.constant 1 : index
    %c0_44 = arith.constant 0 : index
    %c0_45 = arith.constant 0 : index
    %72 = vector.load %arg5[%c1_43, %c0_44, %c0_45] : memref<4x32x8xf32, #tpu.memory_space<vmem>>, vector<1x32x8xf32>
    %73 = vector.shape_cast %72 : vector<1x32x8xf32> to vector<32x8xf32>
    %74 = arith.truncf %3 : vector<8x32xf32> to vector<8x32xbf16>
    %75 = arith.truncf %73 : vector<32x8xf32> to vector<32x8xbf16>
    %cst_46 = arith.constant dense<0.000000e+00> : vector<8x8xf32>
    %76 = tpu.matmul %74, %75, %cst_46 {dimension_numbers = #tpu.dot_dimension_numbers<[1], [0], [0], [1], [0, 0, 1, 1], [], []>} : vector<8x32xbf16>, vector<32x8xbf16>, vector<8x8xf32> -> vector<8x8xf32>
    %c1_47 = arith.constant 1 : index
    %c0_48 = arith.constant 0 : index
    %c0_49 = arith.constant 0 : index
    %77 = vector.load %arg6[%c1_47, %c0_48, %c0_49] : memref<4x1x8xf32, #tpu.memory_space<vmem>>, vector<1x1x8xf32>
    %78 = vector.shape_cast %77 : vector<1x1x8xf32> to vector<1x8xf32>
    %79 = vector.broadcast %78 : vector<1x8xf32> to vector<8x8xf32>
    %80 = arith.addf %76, %79 : vector<8x8xf32>
    %c1_50 = arith.constant 1 : index
    %c0_51 = arith.constant 0 : index
    %c0_52 = arith.constant 0 : index
    %81 = vector.load %arg7[%c1_50, %c0_51, %c0_52] : memref<4x32x8xf32, #tpu.memory_space<vmem>>, vector<1x32x8xf32>
    %82 = vector.shape_cast %81 : vector<1x32x8xf32> to vector<32x8xf32>
    %83 = arith.truncf %3 : vector<8x32xf32> to vector<8x32xbf16>
    %84 = arith.truncf %82 : vector<32x8xf32> to vector<32x8xbf16>
    %cst_53 = arith.constant dense<0.000000e+00> : vector<8x8xf32>
    %85 = tpu.matmul %83, %84, %cst_53 {dimension_numbers = #tpu.dot_dimension_numbers<[1], [0], [0], [1], [0, 0, 1, 1], [], []>} : vector<8x32xbf16>, vector<32x8xbf16>, vector<8x8xf32> -> vector<8x8xf32>
    %c1_54 = arith.constant 1 : index
    %c0_55 = arith.constant 0 : index
    %c0_56 = arith.constant 0 : index
    %86 = vector.load %arg8[%c1_54, %c0_55, %c0_56] : memref<4x1x8xf32, #tpu.memory_space<vmem>>, vector<1x1x8xf32>
    %87 = vector.shape_cast %86 : vector<1x1x8xf32> to vector<1x8xf32>
    %88 = vector.broadcast %87 : vector<1x8xf32> to vector<8x8xf32>
    %89 = arith.addf %85, %88 : vector<8x8xf32>
    %cst_57 = arith.constant 0.353553385 : f32
    %90 = vector.broadcast %cst_57 : f32 to vector<8x8xf32>
    %91 = arith.mulf %71, %90 : vector<8x8xf32>
    %92 = arith.truncf %91 : vector<8x8xf32> to vector<8x8xbf16>
    %93 = arith.truncf %80 : vector<8x8xf32> to vector<8x8xbf16>
    %cst_58 = arith.constant dense<0.000000e+00> : vector<8x8xf32>
    %94 = tpu.matmul %92, %93, %cst_58 {dimension_numbers = #tpu.dot_dimension_numbers<[1], [1], [0], [0], [0, 0, 1, 0], [], []>} : vector<8x8xbf16>, vector<8x8xbf16>, vector<8x8xf32> -> vector<8x8xf32>
    %95 = arith.addf %94, %9 : vector<8x8xf32>
    %cst_59 = arith.constant dense<0xFF800000> : vector<8xf32>
    %96 = vector.multi_reduction <maximumf>, %95, %cst_59 [1] : vector<8x8xf32> to vector<8xf32>
    %97 = vector.shape_cast %96 : vector<8xf32> to vector<8x1xf32>
    %98 = vector.broadcast %97 : vector<8x1xf32> to vector<8x8xf32>
    %99 = arith.subf %95, %98 : vector<8x8xf32>
    %100 = math.exp %99 : vector<8x8xf32>
    %cst_60 = arith.constant dense<0.000000e+00> : vector<8xf32>
    %101 = vector.multi_reduction <add>, %100, %cst_60 [1] : vector<8x8xf32> to vector<8xf32>
    %102 = vector.shape_cast %101 : vector<8xf32> to vector<8x1xf32>
    %103 = tpu.reciprocal %102 {approx = true} : vector<8x1xf32> -> vector<8x1xf32>
    %104 = vector.broadcast %103 : vector<8x1xf32> to vector<8x8xf32>
    %105 = arith.mulf %100, %104 : vector<8x8xf32>
    %106 = arith.truncf %105 : vector<8x8xf32> to vector<8x8xbf16>
    %107 = arith.truncf %89 : vector<8x8xf32> to vector<8x8xbf16>
    %cst_61 = arith.constant dense<0.000000e+00> : vector<8x8xf32>
    %108 = tpu.matmul %106, %107, %cst_61 {dimension_numbers = #tpu.dot_dimension_numbers<[1], [0], [0], [1], [0, 0, 1, 1], [], []>} : vector<8x8xbf16>, vector<8x8xbf16>, vector<8x8xf32> -> vector<8x8xf32>
    %c1_62 = arith.constant 1 : index
    %c0_63 = arith.constant 0 : index
    %c0_64 = arith.constant 0 : index
    %109 = vector.load %arg9[%c1_62, %c0_63, %c0_64] : memref<4x8x32xf32, #tpu.memory_space<vmem>>, vector<1x8x32xf32>
    %110 = vector.shape_cast %109 : vector<1x8x32xf32> to vector<8x32xf32>
    %111 = arith.truncf %108 : vector<8x8xf32> to vector<8x8xbf16>
    %112 = arith.truncf %110 : vector<8x32xf32> to vector<8x32xbf16>
    %cst_65 = arith.constant dense<0.000000e+00> : vector<8x32xf32>
    %113 = tpu.matmul %111, %112, %cst_65 {dimension_numbers = #tpu.dot_dimension_numbers<[1], [0], [0], [1], [0, 0, 1, 1], [], []>} : vector<8x8xbf16>, vector<8x32xbf16>, vector<8x32xf32> -> vector<8x32xf32>
    %114 = arith.addf %62, %113 : vector<8x32xf32>
    %c2 = arith.constant 2 : index
    %c0_66 = arith.constant 0 : index
    %c0_67 = arith.constant 0 : index
    %115 = vector.load %arg3[%c2, %c0_66, %c0_67] : memref<4x32x8xf32, #tpu.memory_space<vmem>>, vector<1x32x8xf32>
    %116 = vector.shape_cast %115 : vector<1x32x8xf32> to vector<32x8xf32>
    %117 = arith.truncf %1 : vector<8x32xf32> to vector<8x32xbf16>
    %118 = arith.truncf %116 : vector<32x8xf32> to vector<32x8xbf16>
    %cst_68 = arith.constant dense<0.000000e+00> : vector<8x8xf32>
    %119 = tpu.matmul %117, %118, %cst_68 {dimension_numbers = #tpu.dot_dimension_numbers<[1], [0], [0], [1], [0, 0, 1, 1], [], []>} : vector<8x32xbf16>, vector<32x8xbf16>, vector<8x8xf32> -> vector<8x8xf32>
    %c2_69 = arith.constant 2 : index
    %c0_70 = arith.constant 0 : index
    %c0_71 = arith.constant 0 : index
    %120 = vector.load %arg4[%c2_69, %c0_70, %c0_71] : memref<4x1x8xf32, #tpu.memory_space<vmem>>, vector<1x1x8xf32>
    %121 = vector.shape_cast %120 : vector<1x1x8xf32> to vector<1x8xf32>
    %122 = vector.broadcast %121 : vector<1x8xf32> to vector<8x8xf32>
    %123 = arith.addf %119, %122 : vector<8x8xf32>
    %c2_72 = arith.constant 2 : index
    %c0_73 = arith.constant 0 : index
    %c0_74 = arith.constant 0 : index
    %124 = vector.load %arg5[%c2_72, %c0_73, %c0_74] : memref<4x32x8xf32, #tpu.memory_space<vmem>>, vector<1x32x8xf32>
    %125 = vector.shape_cast %124 : vector<1x32x8xf32> to vector<32x8xf32>
    %126 = arith.truncf %3 : vector<8x32xf32> to vector<8x32xbf16>
    %127 = arith.truncf %125 : vector<32x8xf32> to vector<32x8xbf16>
    %cst_75 = arith.constant dense<0.000000e+00> : vector<8x8xf32>
    %128 = tpu.matmul %126, %127, %cst_75 {dimension_numbers = #tpu.dot_dimension_numbers<[1], [0], [0], [1], [0, 0, 1, 1], [], []>} : vector<8x32xbf16>, vector<32x8xbf16>, vector<8x8xf32> -> vector<8x8xf32>
    %c2_76 = arith.constant 2 : index
    %c0_77 = arith.constant 0 : index
    %c0_78 = arith.constant 0 : index
    %129 = vector.load %arg6[%c2_76, %c0_77, %c0_78] : memref<4x1x8xf32, #tpu.memory_space<vmem>>, vector<1x1x8xf32>
    %130 = vector.shape_cast %129 : vector<1x1x8xf32> to vector<1x8xf32>
    %131 = vector.broadcast %130 : vector<1x8xf32> to vector<8x8xf32>
    %132 = arith.addf %128, %131 : vector<8x8xf32>
    %c2_79 = arith.constant 2 : index
    %c0_80 = arith.constant 0 : index
    %c0_81 = arith.constant 0 : index
    %133 = vector.load %arg7[%c2_79, %c0_80, %c0_81] : memref<4x32x8xf32, #tpu.memory_space<vmem>>, vector<1x32x8xf32>
    %134 = vector.shape_cast %133 : vector<1x32x8xf32> to vector<32x8xf32>
    %135 = arith.truncf %3 : vector<8x32xf32> to vector<8x32xbf16>
    %136 = arith.truncf %134 : vector<32x8xf32> to vector<32x8xbf16>
    %cst_82 = arith.constant dense<0.000000e+00> : vector<8x8xf32>
    %137 = tpu.matmul %135, %136, %cst_82 {dimension_numbers = #tpu.dot_dimension_numbers<[1], [0], [0], [1], [0, 0, 1, 1], [], []>} : vector<8x32xbf16>, vector<32x8xbf16>, vector<8x8xf32> -> vector<8x8xf32>
    %c2_83 = arith.constant 2 : index
    %c0_84 = arith.constant 0 : index
    %c0_85 = arith.constant 0 : index
    %138 = vector.load %arg8[%c2_83, %c0_84, %c0_85] : memref<4x1x8xf32, #tpu.memory_space<vmem>>, vector<1x1x8xf32>
    %139 = vector.shape_cast %138 : vector<1x1x8xf32> to vector<1x8xf32>
    %140 = vector.broadcast %139 : vector<1x8xf32> to vector<8x8xf32>
    %141 = arith.addf %137, %140 : vector<8x8xf32>
    %cst_86 = arith.constant 0.353553385 : f32
    %142 = vector.broadcast %cst_86 : f32 to vector<8x8xf32>
    %143 = arith.mulf %123, %142 : vector<8x8xf32>
    %144 = arith.truncf %143 : vector<8x8xf32> to vector<8x8xbf16>
    %145 = arith.truncf %132 : vector<8x8xf32> to vector<8x8xbf16>
    %cst_87 = arith.constant dense<0.000000e+00> : vector<8x8xf32>
    %146 = tpu.matmul %144, %145, %cst_87 {dimension_numbers = #tpu.dot_dimension_numbers<[1], [1], [0], [0], [0, 0, 1, 0], [], []>} : vector<8x8xbf16>, vector<8x8xbf16>, vector<8x8xf32> -> vector<8x8xf32>
    %147 = arith.addf %146, %9 : vector<8x8xf32>
    %cst_88 = arith.constant dense<0xFF800000> : vector<8xf32>
    %148 = vector.multi_reduction <maximumf>, %147, %cst_88 [1] : vector<8x8xf32> to vector<8xf32>
    %149 = vector.shape_cast %148 : vector<8xf32> to vector<8x1xf32>
    %150 = vector.broadcast %149 : vector<8x1xf32> to vector<8x8xf32>
    %151 = arith.subf %147, %150 : vector<8x8xf32>
    %152 = math.exp %151 : vector<8x8xf32>
    %cst_89 = arith.constant dense<0.000000e+00> : vector<8xf32>
    %153 = vector.multi_reduction <add>, %152, %cst_89 [1] : vector<8x8xf32> to vector<8xf32>
    %154 = vector.shape_cast %153 : vector<8xf32> to vector<8x1xf32>
    %155 = tpu.reciprocal %154 {approx = true} : vector<8x1xf32> -> vector<8x1xf32>
    %156 = vector.broadcast %155 : vector<8x1xf32> to vector<8x8xf32>
    %157 = arith.mulf %152, %156 : vector<8x8xf32>
    %158 = arith.truncf %157 : vector<8x8xf32> to vector<8x8xbf16>
    %159 = arith.truncf %141 : vector<8x8xf32> to vector<8x8xbf16>
    %cst_90 = arith.constant dense<0.000000e+00> : vector<8x8xf32>
    %160 = tpu.matmul %158, %159, %cst_90 {dimension_numbers = #tpu.dot_dimension_numbers<[1], [0], [0], [1], [0, 0, 1, 1], [], []>} : vector<8x8xbf16>, vector<8x8xbf16>, vector<8x8xf32> -> vector<8x8xf32>
    %c2_91 = arith.constant 2 : index
    %c0_92 = arith.constant 0 : index
    %c0_93 = arith.constant 0 : index
    %161 = vector.load %arg9[%c2_91, %c0_92, %c0_93] : memref<4x8x32xf32, #tpu.memory_space<vmem>>, vector<1x8x32xf32>
    %162 = vector.shape_cast %161 : vector<1x8x32xf32> to vector<8x32xf32>
    %163 = arith.truncf %160 : vector<8x8xf32> to vector<8x8xbf16>
    %164 = arith.truncf %162 : vector<8x32xf32> to vector<8x32xbf16>
    %cst_94 = arith.constant dense<0.000000e+00> : vector<8x32xf32>
    %165 = tpu.matmul %163, %164, %cst_94 {dimension_numbers = #tpu.dot_dimension_numbers<[1], [0], [0], [1], [0, 0, 1, 1], [], []>} : vector<8x8xbf16>, vector<8x32xbf16>, vector<8x32xf32> -> vector<8x32xf32>
    %166 = arith.addf %114, %165 : vector<8x32xf32>
    %c3 = arith.constant 3 : index
    %c0_95 = arith.constant 0 : index
    %c0_96 = arith.constant 0 : index
    %167 = vector.load %arg3[%c3, %c0_95, %c0_96] : memref<4x32x8xf32, #tpu.memory_space<vmem>>, vector<1x32x8xf32>
    %168 = vector.shape_cast %167 : vector<1x32x8xf32> to vector<32x8xf32>
    %169 = arith.truncf %1 : vector<8x32xf32> to vector<8x32xbf16>
    %170 = arith.truncf %168 : vector<32x8xf32> to vector<32x8xbf16>
    %cst_97 = arith.constant dense<0.000000e+00> : vector<8x8xf32>
    %171 = tpu.matmul %169, %170, %cst_97 {dimension_numbers = #tpu.dot_dimension_numbers<[1], [0], [0], [1], [0, 0, 1, 1], [], []>} : vector<8x32xbf16>, vector<32x8xbf16>, vector<8x8xf32> -> vector<8x8xf32>
    %c3_98 = arith.constant 3 : index
    %c0_99 = arith.constant 0 : index
    %c0_100 = arith.constant 0 : index
    %172 = vector.load %arg4[%c3_98, %c0_99, %c0_100] : memref<4x1x8xf32, #tpu.memory_space<vmem>>, vector<1x1x8xf32>
    %173 = vector.shape_cast %172 : vector<1x1x8xf32> to vector<1x8xf32>
    %174 = vector.broadcast %173 : vector<1x8xf32> to vector<8x8xf32>
    %175 = arith.addf %171, %174 : vector<8x8xf32>
    %c3_101 = arith.constant 3 : index
    %c0_102 = arith.constant 0 : index
    %c0_103 = arith.constant 0 : index
    %176 = vector.load %arg5[%c3_101, %c0_102, %c0_103] : memref<4x32x8xf32, #tpu.memory_space<vmem>>, vector<1x32x8xf32>
    %177 = vector.shape_cast %176 : vector<1x32x8xf32> to vector<32x8xf32>
    %178 = arith.truncf %3 : vector<8x32xf32> to vector<8x32xbf16>
    %179 = arith.truncf %177 : vector<32x8xf32> to vector<32x8xbf16>
    %cst_104 = arith.constant dense<0.000000e+00> : vector<8x8xf32>
    %180 = tpu.matmul %178, %179, %cst_104 {dimension_numbers = #tpu.dot_dimension_numbers<[1], [0], [0], [1], [0, 0, 1, 1], [], []>} : vector<8x32xbf16>, vector<32x8xbf16>, vector<8x8xf32> -> vector<8x8xf32>
    %c3_105 = arith.constant 3 : index
    %c0_106 = arith.constant 0 : index
    %c0_107 = arith.constant 0 : index
    %181 = vector.load %arg6[%c3_105, %c0_106, %c0_107] : memref<4x1x8xf32, #tpu.memory_space<vmem>>, vector<1x1x8xf32>
    %182 = vector.shape_cast %181 : vector<1x1x8xf32> to vector<1x8xf32>
    %183 = vector.broadcast %182 : vector<1x8xf32> to vector<8x8xf32>
    %184 = arith.addf %180, %183 : vector<8x8xf32>
    %c3_108 = arith.constant 3 : index
    %c0_109 = arith.constant 0 : index
    %c0_110 = arith.constant 0 : index
    %185 = vector.load %arg7[%c3_108, %c0_109, %c0_110] : memref<4x32x8xf32, #tpu.memory_space<vmem>>, vector<1x32x8xf32>
    %186 = vector.shape_cast %185 : vector<1x32x8xf32> to vector<32x8xf32>
    %187 = arith.truncf %3 : vector<8x32xf32> to vector<8x32xbf16>
    %188 = arith.truncf %186 : vector<32x8xf32> to vector<32x8xbf16>
    %cst_111 = arith.constant dense<0.000000e+00> : vector<8x8xf32>
    %189 = tpu.matmul %187, %188, %cst_111 {dimension_numbers = #tpu.dot_dimension_numbers<[1], [0], [0], [1], [0, 0, 1, 1], [], []>} : vector<8x32xbf16>, vector<32x8xbf16>, vector<8x8xf32> -> vector<8x8xf32>
    %c3_112 = arith.constant 3 : index
    %c0_113 = arith.constant 0 : index
    %c0_114 = arith.constant 0 : index
    %190 = vector.load %arg8[%c3_112, %c0_113, %c0_114] : memref<4x1x8xf32, #tpu.memory_space<vmem>>, vector<1x1x8xf32>
    %191 = vector.shape_cast %190 : vector<1x1x8xf32> to vector<1x8xf32>
    %192 = vector.broadcast %191 : vector<1x8xf32> to vector<8x8xf32>
    %193 = arith.addf %189, %192 : vector<8x8xf32>
    %cst_115 = arith.constant 0.353553385 : f32
    %194 = vector.broadcast %cst_115 : f32 to vector<8x8xf32>
    %195 = arith.mulf %175, %194 : vector<8x8xf32>
    %196 = arith.truncf %195 : vector<8x8xf32> to vector<8x8xbf16>
    %197 = arith.truncf %184 : vector<8x8xf32> to vector<8x8xbf16>
    %cst_116 = arith.constant dense<0.000000e+00> : vector<8x8xf32>
    %198 = tpu.matmul %196, %197, %cst_116 {dimension_numbers = #tpu.dot_dimension_numbers<[1], [1], [0], [0], [0, 0, 1, 0], [], []>} : vector<8x8xbf16>, vector<8x8xbf16>, vector<8x8xf32> -> vector<8x8xf32>
    %199 = arith.addf %198, %9 : vector<8x8xf32>
    %cst_117 = arith.constant dense<0xFF800000> : vector<8xf32>
    %200 = vector.multi_reduction <maximumf>, %199, %cst_117 [1] : vector<8x8xf32> to vector<8xf32>
    %201 = vector.shape_cast %200 : vector<8xf32> to vector<8x1xf32>
    %202 = vector.broadcast %201 : vector<8x1xf32> to vector<8x8xf32>
    %203 = arith.subf %199, %202 : vector<8x8xf32>
    %204 = math.exp %203 : vector<8x8xf32>
    %cst_118 = arith.constant dense<0.000000e+00> : vector<8xf32>
    %205 = vector.multi_reduction <add>, %204, %cst_118 [1] : vector<8x8xf32> to vector<8xf32>
    %206 = vector.shape_cast %205 : vector<8xf32> to vector<8x1xf32>
    %207 = tpu.reciprocal %206 {approx = true} : vector<8x1xf32> -> vector<8x1xf32>
    %208 = vector.broadcast %207 : vector<8x1xf32> to vector<8x8xf32>
    %209 = arith.mulf %204, %208 : vector<8x8xf32>
    %210 = arith.truncf %209 : vector<8x8xf32> to vector<8x8xbf16>
    %211 = arith.truncf %193 : vector<8x8xf32> to vector<8x8xbf16>
    %cst_119 = arith.constant dense<0.000000e+00> : vector<8x8xf32>
    %212 = tpu.matmul %210, %211, %cst_119 {dimension_numbers = #tpu.dot_dimension_numbers<[1], [0], [0], [1], [0, 0, 1, 1], [], []>} : vector<8x8xbf16>, vector<8x8xbf16>, vector<8x8xf32> -> vector<8x8xf32>
    %c3_120 = arith.constant 3 : index
    %c0_121 = arith.constant 0 : index
    %c0_122 = arith.constant 0 : index
    %213 = vector.load %arg9[%c3_120, %c0_121, %c0_122] : memref<4x8x32xf32, #tpu.memory_space<vmem>>, vector<1x8x32xf32>
    %214 = vector.shape_cast %213 : vector<1x8x32xf32> to vector<8x32xf32>
    %215 = arith.truncf %212 : vector<8x8xf32> to vector<8x8xbf16>
    %216 = arith.truncf %214 : vector<8x32xf32> to vector<8x32xbf16>
    %cst_123 = arith.constant dense<0.000000e+00> : vector<8x32xf32>
    %217 = tpu.matmul %215, %216, %cst_123 {dimension_numbers = #tpu.dot_dimension_numbers<[1], [0], [0], [1], [0, 0, 1, 1], [], []>} : vector<8x8xbf16>, vector<8x32xbf16>, vector<8x32xf32> -> vector<8x32xf32>
    %218 = arith.addf %166, %217 : vector<8x32xf32>
    %c0_124 = arith.constant 0 : index
    %c0_125 = arith.constant 0 : index
    %219 = vector.load %arg10[%c0_124, %c0_125] : memref<1x32xf32, #tpu.memory_space<vmem>>, vector<1x32xf32>
    %220 = vector.broadcast %219 : vector<1x32xf32> to vector<8x32xf32>
    %221 = arith.addf %218, %220 : vector<8x32xf32>
    %c0_126 = arith.constant 0 : index
    %c0_127 = arith.constant 0 : index
    %222 = vector.load %arg11[%c0_126, %c0_127] : memref<1x32xf32, #tpu.memory_space<vmem>>, vector<1x32xf32>
    %c0_128 = arith.constant 0 : index
    %c0_129 = arith.constant 0 : index
    %223 = vector.load %arg12[%c0_128, %c0_129] : memref<1x32xf32, #tpu.memory_space<vmem>>, vector<1x32xf32>
    %224 = arith.addf %1, %221 : vector<8x32xf32>
    %cst_130 = arith.constant dense<0.000000e+00> : vector<8xf32>
    %225 = vector.multi_reduction <add>, %224, %cst_130 [1] : vector<8x32xf32> to vector<8xf32>
    %226 = vector.shape_cast %225 : vector<8xf32> to vector<8x1xf32>
    %cst_131 = arith.constant 3.200000e+01 : f32
    %227 = vector.broadcast %cst_131 : f32 to vector<8x1xf32>
    %228 = arith.divf %226, %227 : vector<8x1xf32>
    %229 = arith.mulf %224, %224 : vector<8x32xf32>
    %cst_132 = arith.constant dense<0.000000e+00> : vector<8xf32>
    %230 = vector.multi_reduction <add>, %229, %cst_132 [1] : vector<8x32xf32> to vector<8xf32>
    %231 = vector.shape_cast %230 : vector<8xf32> to vector<8x1xf32>
    %cst_133 = arith.constant 3.200000e+01 : f32
    %232 = vector.broadcast %cst_133 : f32 to vector<8x1xf32>
    %233 = arith.divf %231, %232 : vector<8x1xf32>
    %234 = arith.mulf %228, %228 : vector<8x1xf32>
    %235 = arith.subf %233, %234 : vector<8x1xf32>
    %236 = vector.broadcast %228 : vector<8x1xf32> to vector<8x32xf32>
    %237 = arith.subf %224, %236 : vector<8x32xf32>
    %cst_134 = arith.constant 9.99999974E-6 : f32
    %238 = vector.broadcast %cst_134 : f32 to vector<8x1xf32>
    %239 = arith.addf %235, %238 : vector<8x1xf32>
    %240 = math.rsqrt %239 : vector<8x1xf32>
    %241 = vector.broadcast %240 : vector<8x1xf32> to vector<8x32xf32>
    %242 = arith.mulf %237, %241 : vector<8x32xf32>
    %243 = vector.broadcast %222 : vector<1x32xf32> to vector<8x32xf32>
    %244 = arith.mulf %242, %243 : vector<8x32xf32>
    %245 = vector.broadcast %223 : vector<1x32xf32> to vector<8x32xf32>
    %246 = arith.addf %244, %245 : vector<8x32xf32>
    %c0_135 = arith.constant 0 : index
    %c0_136 = arith.constant 0 : index
    %c0_137 = arith.constant 0 : index
    %247 = vector.load %arg13[%c0_135, %c0_136, %c0_137] : memref<1x8x32xf32, #tpu.memory_space<vmem>>, vector<1x8x32xf32>
    %248 = vector.shape_cast %247 : vector<1x8x32xf32> to vector<8x32xf32>
    %249 = vector.shape_cast %246 : vector<8x32xf32> to vector<1x8x32xf32>
    tpu.vector_store %arg13[%c0_135, %c0_136, %c0_137], %249 {strides = array<i32>} : memref<1x8x32xf32, #tpu.memory_space<vmem>>, vector<1x8x32xf32>,
    return
  }
  func.func @transform_0(%arg0: i32) -> (i32, i32, i32) {
    %c0_i32 = arith.constant 0 : i32
    %c0_i32_0 = arith.constant 0 : i32
    %c0_i32_1 = arith.constant 0 : i32
    return %arg0, %c0_i32, %c0_i32_0 : i32, i32, i32
  }
  func.func @transform_1(%arg0: i32) -> (i32, i32, i32) {
    %c0_i32 = arith.constant 0 : i32
    %c0_i32_0 = arith.constant 0 : i32
    %c0_i32_1 = arith.constant 0 : i32
    return %arg0, %c0_i32, %c0_i32_0 : i32, i32, i32
  }
  func.func @transform_2(%arg0: i32) -> (i32, i32, i32) {
    %c0_i32 = arith.constant 0 : i32
    %c0_i32_0 = arith.constant 0 : i32
    %c0_i32_1 = arith.constant 0 : i32
    %c0_i32_2 = arith.constant 0 : i32
    return %c0_i32, %c0_i32_0, %c0_i32_1 : i32, i32, i32
  }
  func.func @transform_3(%arg0: i32) -> (i32, i32, i32) {
    %c0_i32 = arith.constant 0 : i32
    %c0_i32_0 = arith.constant 0 : i32
    %c0_i32_1 = arith.constant 0 : i32
    %c0_i32_2 = arith.constant 0 : i32
    return %c0_i32, %c0_i32_0, %c0_i32_1 : i32, i32, i32
  }
  func.func @transform_4(%arg0: i32) -> (i32, i32, i32) {
    %c0_i32 = arith.constant 0 : i32
    %c0_i32_0 = arith.constant 0 : i32
    %c0_i32_1 = arith.constant 0 : i32
    %c0_i32_2 = arith.constant 0 : i32
    return %c0_i32, %c0_i32_0, %c0_i32_1 : i32, i32, i32
  }
  func.func @transform_5(%arg0: i32) -> (i32, i32, i32) {
    %c0_i32 = arith.constant 0 : i32
    %c0_i32_0 = arith.constant 0 : i32
    %c0_i32_1 = arith.constant 0 : i32
    %c0_i32_2 = arith.constant 0 : i32
    return %c0_i32, %c0_i32_0, %c0_i32_1 : i32, i32, i32
  }
  func.func @transform_6(%arg0: i32) -> (i32, i32, i32) {
    %c0_i32 = arith.constant 0 : i32
    %c0_i32_0 = arith.constant 0 : i32
    %c0_i32_1 = arith.constant 0 : i32
    %c0_i32_2 = arith.constant 0 : i32
    return %c0_i32, %c0_i32_0, %c0_i32_1 : i32, i32, i32
  }
  func.func @transform_7(%arg0: i32) -> (i32, i32, i32) {
    %c0_i32 = arith.constant 0 : i32
    %c0_i32_0 = arith.constant 0 : i32
    %c0_i32_1 = arith.constant 0 : i32
    %c0_i32_2 = arith.constant 0 : i32
    return %c0_i32, %c0_i32_0, %c0_i32_1 : i32, i32, i32
  }
  func.func @transform_8(%arg0: i32) -> (i32, i32, i32) {
    %c0_i32 = arith.constant 0 : i32
    %c0_i32_0 = arith.constant 0 : i32
    %c0_i32_1 = arith.constant 0 : i32
    %c0_i32_2 = arith.constant 0 : i32
    return %c0_i32, %c0_i32_0, %c0_i32_1 : i32, i32, i32
  }
  func.func @transform_9(%arg0: i32) -> (i32, i32) {
    %c0_i32 = arith.constant 0 : i32
    %c0_i32_0 = arith.constant 0 : i32
    %c0_i32_1 = arith.constant 0 : i32
    return %c0_i32, %c0_i32_0 : i32, i32
  }
  func.func @transform_10(%arg0: i32) -> (i32, i32) {
    %c0_i32 = arith.constant 0 : i32
    %c0_i32_0 = arith.constant 0 : i32
    %c0_i32_1 = arith.constant 0 : i32
    return %c0_i32, %c0_i32_0 : i32, i32
  }
  func.func @transform_11(%arg0: i32) -> (i32, i32) {
    %c0_i32 = arith.constant 0 : i32
    %c0_i32_0 = arith.constant 0 : i32
    %c0_i32_1 = arith.constant 0 : i32
    return %c0_i32, %c0_i32_0 : i32, i32
  }
  func.func @transform_12(%arg0: i32) -> (i32, i32, i32) {
    %c0_i32 = arith.constant 0 : i32
    %c0_i32_0 = arith.constant 0 : i32
    %c0_i32_1 = arith.constant 0 : i32
    return %arg0, %c0_i32, %c0_i32_0 : i32, i32, i32
  }
}

module attributes {stable_mosaic.version = 11 : i64} {
  func.func @_linear_kernel(%arg0: i32, %arg1: memref<16x32xf32, #tpu.memory_space<vmem>>, %arg2: memref<32x60xf32, #tpu.memory_space<vmem>>, %arg3: memref<1x60xf32, #tpu.memory_space<vmem>>, %arg4: memref<16x60xf32, #tpu.memory_space<vmem>>) attributes {dimension_semantics = [#tpu.dimension_semantics<parallel>], iteration_bounds = array<i64: 1>, scalar_prefetch = 0 : i64, scratch_operands = 0 : i64, tpu.core_type = #tpu.core_type<tc>, window_params = [{transform_indices = @transform_0, window_bounds = array<i64: 16, 32>}, {pipeline_mode = #tpu.pipeline_mode<synchronous>, transform_indices = @transform_1, window_bounds = array<i64: 32, 60>}, {pipeline_mode = #tpu.pipeline_mode<synchronous>, transform_indices = @transform_2, window_bounds = array<i64: 1, 60>}, {transform_indices = @transform_3, window_bounds = array<i64: 16, 60>}]} {
    %c0 = arith.constant 0 : index
    %c0_0 = arith.constant 0 : index
    %0 = vector.load %arg1[%c0, %c0_0] : memref<16x32xf32, #tpu.memory_space<vmem>>, vector<16x32xf32>
    %c0_1 = arith.constant 0 : index
    %c0_2 = arith.constant 0 : index
    %1 = vector.load %arg2[%c0_1, %c0_2] : memref<32x60xf32, #tpu.memory_space<vmem>>, vector<32x60xf32>
    %2 = arith.truncf %0 : vector<16x32xf32> to vector<16x32xbf16>
    %3 = arith.truncf %1 : vector<32x60xf32> to vector<32x60xbf16>
    %cst = arith.constant dense<0.000000e+00> : vector<16x60xf32>
    %4 = tpu.matmul %2, %3, %cst {dimension_numbers = #tpu.dot_dimension_numbers<[1], [0], [0], [1], [0, 0, 1, 1], [], []>} : vector<16x32xbf16>, vector<32x60xbf16>, vector<16x60xf32> -> vector<16x60xf32>
    %c0_3 = arith.constant 0 : index
    %c0_4 = arith.constant 0 : index
    %5 = vector.load %arg3[%c0_3, %c0_4] : memref<1x60xf32, #tpu.memory_space<vmem>>, vector<1x60xf32>
    %6 = vector.broadcast %5 : vector<1x60xf32> to vector<16x60xf32>
    %7 = arith.addf %4, %6 : vector<16x60xf32>
    %c0_5 = arith.constant 0 : index
    %c0_6 = arith.constant 0 : index
    %8 = vector.load %arg4[%c0_5, %c0_6] : memref<16x60xf32, #tpu.memory_space<vmem>>, vector<16x60xf32>
    tpu.vector_store %arg4[%c0_5, %c0_6], %7 {strides = array<i32>} : memref<16x60xf32, #tpu.memory_space<vmem>>, vector<16x60xf32>,
    return
  }
  func.func @transform_0(%arg0: i32) -> (i32, i32) {
    %c0_i32 = arith.constant 0 : i32
    %c0_i32_0 = arith.constant 0 : i32
    return %arg0, %c0_i32 : i32, i32
  }
  func.func @transform_1(%arg0: i32) -> (i32, i32) {
    %c0_i32 = arith.constant 0 : i32
    %c0_i32_0 = arith.constant 0 : i32
    %c0_i32_1 = arith.constant 0 : i32
    return %c0_i32, %c0_i32_0 : i32, i32
  }
  func.func @transform_2(%arg0: i32) -> (i32, i32) {
    %c0_i32 = arith.constant 0 : i32
    %c0_i32_0 = arith.constant 0 : i32
    %c0_i32_1 = arith.constant 0 : i32
    return %c0_i32, %c0_i32_0 : i32, i32
  }
  func.func @transform_3(%arg0: i32) -> (i32, i32) {
    %c0_i32 = arith.constant 0 : i32
    %c0_i32_0 = arith.constant 0 : i32
    return %arg0, %c0_i32 : i32, i32
  }
}

module attributes {stable_mosaic.version = 11 : i64} {
  func.func @_ffn_res_ln_kernel(%arg0: i32, %arg1: memref<16x32xf32, #tpu.memory_space<vmem>>, %arg2: memref<32x64xf32, #tpu.memory_space<vmem>>, %arg3: memref<1x64xf32, #tpu.memory_space<vmem>>, %arg4: memref<64x32xf32, #tpu.memory_space<vmem>>, %arg5: memref<1x32xf32, #tpu.memory_space<vmem>>, %arg6: memref<1x32xf32, #tpu.memory_space<vmem>>, %arg7: memref<1x32xf32, #tpu.memory_space<vmem>>, %arg8: memref<16x32xf32, #tpu.memory_space<vmem>>) attributes {dimension_semantics = [#tpu.dimension_semantics<parallel>], iteration_bounds = array<i64: 1>, scalar_prefetch = 0 : i64, scratch_operands = 0 : i64, tpu.core_type = #tpu.core_type<tc>, window_params = [{transform_indices = @transform_0, window_bounds = array<i64: 16, 32>}, {pipeline_mode = #tpu.pipeline_mode<synchronous>, transform_indices = @transform_1, window_bounds = array<i64: 32, 64>}, {pipeline_mode = #tpu.pipeline_mode<synchronous>, transform_indices = @transform_2, window_bounds = array<i64: 1, 64>}, {pipeline_mode = #tpu.pipeline_mode<synchronous>, transform_indices = @transform_3, window_bounds = array<i64: 64, 32>}, {pipeline_mode = #tpu.pipeline_mode<synchronous>, transform_indices = @transform_4, window_bounds = array<i64: 1, 32>}, {pipeline_mode = #tpu.pipeline_mode<synchronous>, transform_indices = @transform_5, window_bounds = array<i64: 1, 32>}, {pipeline_mode = #tpu.pipeline_mode<synchronous>, transform_indices = @transform_6, window_bounds = array<i64: 1, 32>}, {transform_indices = @transform_7, window_bounds = array<i64: 16, 32>}]} {
    %c0 = arith.constant 0 : index
    %c0_0 = arith.constant 0 : index
    %0 = vector.load %arg1[%c0, %c0_0] : memref<16x32xf32, #tpu.memory_space<vmem>>, vector<16x32xf32>
    %c0_1 = arith.constant 0 : index
    %c0_2 = arith.constant 0 : index
    %1 = vector.load %arg2[%c0_1, %c0_2] : memref<32x64xf32, #tpu.memory_space<vmem>>, vector<32x64xf32>
    %2 = arith.truncf %0 : vector<16x32xf32> to vector<16x32xbf16>
    %3 = arith.truncf %1 : vector<32x64xf32> to vector<32x64xbf16>
    %cst = arith.constant dense<0.000000e+00> : vector<16x64xf32>
    %4 = tpu.matmul %2, %3, %cst {dimension_numbers = #tpu.dot_dimension_numbers<[1], [0], [0], [1], [0, 0, 1, 1], [], []>} : vector<16x32xbf16>, vector<32x64xbf16>, vector<16x64xf32> -> vector<16x64xf32>
    %c0_3 = arith.constant 0 : index
    %c0_4 = arith.constant 0 : index
    %5 = vector.load %arg3[%c0_3, %c0_4] : memref<1x64xf32, #tpu.memory_space<vmem>>, vector<1x64xf32>
    %6 = vector.broadcast %5 : vector<1x64xf32> to vector<16x64xf32>
    %7 = arith.addf %4, %6 : vector<16x64xf32>
    %cst_5 = arith.constant 0.000000e+00 : f32
    %8 = vector.broadcast %cst_5 : f32 to vector<16x64xf32>
    %9 = arith.maximumf %7, %8 : vector<16x64xf32>
    %c0_6 = arith.constant 0 : index
    %c0_7 = arith.constant 0 : index
    %10 = vector.load %arg4[%c0_6, %c0_7] : memref<64x32xf32, #tpu.memory_space<vmem>>, vector<64x32xf32>
    %11 = arith.truncf %9 : vector<16x64xf32> to vector<16x64xbf16>
    %12 = arith.truncf %10 : vector<64x32xf32> to vector<64x32xbf16>
    %cst_8 = arith.constant dense<0.000000e+00> : vector<16x32xf32>
    %13 = tpu.matmul %11, %12, %cst_8 {dimension_numbers = #tpu.dot_dimension_numbers<[1], [0], [0], [1], [0, 0, 1, 1], [], []>} : vector<16x64xbf16>, vector<64x32xbf16>, vector<16x32xf32> -> vector<16x32xf32>
    %c0_9 = arith.constant 0 : index
    %c0_10 = arith.constant 0 : index
    %14 = vector.load %arg5[%c0_9, %c0_10] : memref<1x32xf32, #tpu.memory_space<vmem>>, vector<1x32xf32>
    %15 = vector.broadcast %14 : vector<1x32xf32> to vector<16x32xf32>
    %16 = arith.addf %13, %15 : vector<16x32xf32>
    %c0_11 = arith.constant 0 : index
    %c0_12 = arith.constant 0 : index
    %17 = vector.load %arg6[%c0_11, %c0_12] : memref<1x32xf32, #tpu.memory_space<vmem>>, vector<1x32xf32>
    %c0_13 = arith.constant 0 : index
    %c0_14 = arith.constant 0 : index
    %18 = vector.load %arg7[%c0_13, %c0_14] : memref<1x32xf32, #tpu.memory_space<vmem>>, vector<1x32xf32>
    %19 = arith.addf %0, %16 : vector<16x32xf32>
    %cst_15 = arith.constant dense<0.000000e+00> : vector<16xf32>
    %20 = vector.multi_reduction <add>, %19, %cst_15 [1] : vector<16x32xf32> to vector<16xf32>
    %21 = vector.shape_cast %20 : vector<16xf32> to vector<16x1xf32>
    %cst_16 = arith.constant 3.200000e+01 : f32
    %22 = vector.broadcast %cst_16 : f32 to vector<16x1xf32>
    %23 = arith.divf %21, %22 : vector<16x1xf32>
    %24 = arith.mulf %19, %19 : vector<16x32xf32>
    %cst_17 = arith.constant dense<0.000000e+00> : vector<16xf32>
    %25 = vector.multi_reduction <add>, %24, %cst_17 [1] : vector<16x32xf32> to vector<16xf32>
    %26 = vector.shape_cast %25 : vector<16xf32> to vector<16x1xf32>
    %cst_18 = arith.constant 3.200000e+01 : f32
    %27 = vector.broadcast %cst_18 : f32 to vector<16x1xf32>
    %28 = arith.divf %26, %27 : vector<16x1xf32>
    %29 = arith.mulf %23, %23 : vector<16x1xf32>
    %30 = arith.subf %28, %29 : vector<16x1xf32>
    %31 = vector.broadcast %23 : vector<16x1xf32> to vector<16x32xf32>
    %32 = arith.subf %19, %31 : vector<16x32xf32>
    %cst_19 = arith.constant 9.99999974E-6 : f32
    %33 = vector.broadcast %cst_19 : f32 to vector<16x1xf32>
    %34 = arith.addf %30, %33 : vector<16x1xf32>
    %35 = math.rsqrt %34 : vector<16x1xf32>
    %36 = vector.broadcast %35 : vector<16x1xf32> to vector<16x32xf32>
    %37 = arith.mulf %32, %36 : vector<16x32xf32>
    %38 = vector.broadcast %17 : vector<1x32xf32> to vector<16x32xf32>
    %39 = arith.mulf %37, %38 : vector<16x32xf32>
    %40 = vector.broadcast %18 : vector<1x32xf32> to vector<16x32xf32>
    %41 = arith.addf %39, %40 : vector<16x32xf32>
    %c0_20 = arith.constant 0 : index
    %c0_21 = arith.constant 0 : index
    %42 = vector.load %arg8[%c0_20, %c0_21] : memref<16x32xf32, #tpu.memory_space<vmem>>, vector<16x32xf32>
    tpu.vector_store %arg8[%c0_20, %c0_21], %41 {strides = array<i32>} : memref<16x32xf32, #tpu.memory_space<vmem>>, vector<16x32xf32>,
    return
  }
  func.func @transform_0(%arg0: i32) -> (i32, i32) {
    %c0_i32 = arith.constant 0 : i32
    %c0_i32_0 = arith.constant 0 : i32
    return %arg0, %c0_i32 : i32, i32
  }
  func.func @transform_1(%arg0: i32) -> (i32, i32) {
    %c0_i32 = arith.constant 0 : i32
    %c0_i32_0 = arith.constant 0 : i32
    %c0_i32_1 = arith.constant 0 : i32
    return %c0_i32, %c0_i32_0 : i32, i32
  }
  func.func @transform_2(%arg0: i32) -> (i32, i32) {
    %c0_i32 = arith.constant 0 : i32
    %c0_i32_0 = arith.constant 0 : i32
    %c0_i32_1 = arith.constant 0 : i32
    return %c0_i32, %c0_i32_0 : i32, i32
  }
  func.func @transform_3(%arg0: i32) -> (i32, i32) {
    %c0_i32 = arith.constant 0 : i32
    %c0_i32_0 = arith.constant 0 : i32
    %c0_i32_1 = arith.constant 0 : i32
    return %c0_i32, %c0_i32_0 : i32, i32
  }
  func.func @transform_4(%arg0: i32) -> (i32, i32) {
    %c0_i32 = arith.constant 0 : i32
    %c0_i32_0 = arith.constant 0 : i32
    %c0_i32_1 = arith.constant 0 : i32
    return %c0_i32, %c0_i32_0 : i32, i32
  }
  func.func @transform_5(%arg0: i32) -> (i32, i32) {
    %c0_i32 = arith.constant 0 : i32
    %c0_i32_0 = arith.constant 0 : i32
    %c0_i32_1 = arith.constant 0 : i32
    return %c0_i32, %c0_i32_0 : i32, i32
  }
  func.func @transform_6(%arg0: i32) -> (i32, i32) {
    %c0_i32 = arith.constant 0 : i32
    %c0_i32_0 = arith.constant 0 : i32
    %c0_i32_1 = arith.constant 0 : i32
    return %c0_i32, %c0_i32_0 : i32, i32
  }
  func.func @transform_7(%arg0: i32) -> (i32, i32) {
    %c0_i32 = arith.constant 0 : i32
    %c0_i32_0 = arith.constant 0 : i32
    return %arg0, %c0_i32 : i32, i32
  }
}

module attributes {stable_mosaic.version = 11 : i64} {
  func.func @_mha_res_ln_kernel(%arg0: i32, %arg1: memref<1x8x32xf32, #tpu.memory_space<vmem>>, %arg2: memref<1x8x32xf32, #tpu.memory_space<vmem>>, %arg3: memref<4x32x8xf32, #tpu.memory_space<vmem>>, %arg4: memref<4x1x8xf32, #tpu.memory_space<vmem>>, %arg5: memref<4x32x8xf32, #tpu.memory_space<vmem>>, %arg6: memref<4x1x8xf32, #tpu.memory_space<vmem>>, %arg7: memref<4x32x8xf32, #tpu.memory_space<vmem>>, %arg8: memref<4x1x8xf32, #tpu.memory_space<vmem>>, %arg9: memref<4x8x32xf32, #tpu.memory_space<vmem>>, %arg10: memref<1x32xf32, #tpu.memory_space<vmem>>, %arg11: memref<1x32xf32, #tpu.memory_space<vmem>>, %arg12: memref<1x32xf32, #tpu.memory_space<vmem>>, %arg13: memref<1x8x32xf32, #tpu.memory_space<vmem>>) attributes {dimension_semantics = [#tpu.dimension_semantics<parallel>], iteration_bounds = array<i64: 2>, scalar_prefetch = 0 : i64, scratch_operands = 0 : i64, tpu.core_type = #tpu.core_type<tc>, window_params = [{transform_indices = @transform_0, window_bounds = array<i64: 1, 8, 32>}, {transform_indices = @transform_1, window_bounds = array<i64: 1, 8, 32>}, {pipeline_mode = #tpu.pipeline_mode<synchronous>, transform_indices = @transform_2, window_bounds = array<i64: 4, 32, 8>}, {pipeline_mode = #tpu.pipeline_mode<synchronous>, transform_indices = @transform_3, window_bounds = array<i64: 4, 1, 8>}, {pipeline_mode = #tpu.pipeline_mode<synchronous>, transform_indices = @transform_4, window_bounds = array<i64: 4, 32, 8>}, {pipeline_mode = #tpu.pipeline_mode<synchronous>, transform_indices = @transform_5, window_bounds = array<i64: 4, 1, 8>}, {pipeline_mode = #tpu.pipeline_mode<synchronous>, transform_indices = @transform_6, window_bounds = array<i64: 4, 32, 8>}, {pipeline_mode = #tpu.pipeline_mode<synchronous>, transform_indices = @transform_7, window_bounds = array<i64: 4, 1, 8>}, {pipeline_mode = #tpu.pipeline_mode<synchronous>, transform_indices = @transform_8, window_bounds = array<i64: 4, 8, 32>}, {pipeline_mode = #tpu.pipeline_mode<synchronous>, transform_indices = @transform_9, window_bounds = array<i64: 1, 32>}, {pipeline_mode = #tpu.pipeline_mode<synchronous>, transform_indices = @transform_10, window_bounds = array<i64: 1, 32>}, {pipeline_mode = #tpu.pipeline_mode<synchronous>, transform_indices = @transform_11, window_bounds = array<i64: 1, 32>}, {transform_indices = @transform_12, window_bounds = array<i64: 1, 8, 32>}]} {
    %c0 = arith.constant 0 : index
    %c0_0 = arith.constant 0 : index
    %c0_1 = arith.constant 0 : index
    %0 = vector.load %arg1[%c0, %c0_0, %c0_1] : memref<1x8x32xf32, #tpu.memory_space<vmem>>, vector<1x8x32xf32>
    %1 = vector.shape_cast %0 : vector<1x8x32xf32> to vector<8x32xf32>
    %c0_2 = arith.constant 0 : index
    %c0_3 = arith.constant 0 : index
    %c0_4 = arith.constant 0 : index
    %2 = vector.load %arg2[%c0_2, %c0_3, %c0_4] : memref<1x8x32xf32, #tpu.memory_space<vmem>>, vector<1x8x32xf32>
    %3 = vector.shape_cast %2 : vector<1x8x32xf32> to vector<8x32xf32>
    %cst = arith.constant 0.000000e+00 : f32
    %4 = vector.broadcast %cst : f32 to vector<8x32xf32>
    %c0_5 = arith.constant 0 : index
    %c0_6 = arith.constant 0 : index
    %c0_7 = arith.constant 0 : index
    %5 = vector.load %arg3[%c0_5, %c0_6, %c0_7] : memref<4x32x8xf32, #tpu.memory_space<vmem>>, vector<1x32x8xf32>
    %6 = vector.shape_cast %5 : vector<1x32x8xf32> to vector<32x8xf32>
    %7 = arith.truncf %1 : vector<8x32xf32> to vector<8x32xbf16>
    %8 = arith.truncf %6 : vector<32x8xf32> to vector<32x8xbf16>
    %cst_8 = arith.constant dense<0.000000e+00> : vector<8x8xf32>
    %9 = tpu.matmul %7, %8, %cst_8 {dimension_numbers = #tpu.dot_dimension_numbers<[1], [0], [0], [1], [0, 0, 1, 1], [], []>} : vector<8x32xbf16>, vector<32x8xbf16>, vector<8x8xf32> -> vector<8x8xf32>
    %c0_9 = arith.constant 0 : index
    %c0_10 = arith.constant 0 : index
    %c0_11 = arith.constant 0 : index
    %10 = vector.load %arg4[%c0_9, %c0_10, %c0_11] : memref<4x1x8xf32, #tpu.memory_space<vmem>>, vector<1x1x8xf32>
    %11 = vector.shape_cast %10 : vector<1x1x8xf32> to vector<1x8xf32>
    %12 = vector.broadcast %11 : vector<1x8xf32> to vector<8x8xf32>
    %13 = arith.addf %9, %12 : vector<8x8xf32>
    %c0_12 = arith.constant 0 : index
    %c0_13 = arith.constant 0 : index
    %c0_14 = arith.constant 0 : index
    %14 = vector.load %arg5[%c0_12, %c0_13, %c0_14] : memref<4x32x8xf32, #tpu.memory_space<vmem>>, vector<1x32x8xf32>
    %15 = vector.shape_cast %14 : vector<1x32x8xf32> to vector<32x8xf32>
    %16 = arith.truncf %3 : vector<8x32xf32> to vector<8x32xbf16>
    %17 = arith.truncf %15 : vector<32x8xf32> to vector<32x8xbf16>
    %cst_15 = arith.constant dense<0.000000e+00> : vector<8x8xf32>
    %18 = tpu.matmul %16, %17, %cst_15 {dimension_numbers = #tpu.dot_dimension_numbers<[1], [0], [0], [1], [0, 0, 1, 1], [], []>} : vector<8x32xbf16>, vector<32x8xbf16>, vector<8x8xf32> -> vector<8x8xf32>
    %c0_16 = arith.constant 0 : index
    %c0_17 = arith.constant 0 : index
    %c0_18 = arith.constant 0 : index
    %19 = vector.load %arg6[%c0_16, %c0_17, %c0_18] : memref<4x1x8xf32, #tpu.memory_space<vmem>>, vector<1x1x8xf32>
    %20 = vector.shape_cast %19 : vector<1x1x8xf32> to vector<1x8xf32>
    %21 = vector.broadcast %20 : vector<1x8xf32> to vector<8x8xf32>
    %22 = arith.addf %18, %21 : vector<8x8xf32>
    %c0_19 = arith.constant 0 : index
    %c0_20 = arith.constant 0 : index
    %c0_21 = arith.constant 0 : index
    %23 = vector.load %arg7[%c0_19, %c0_20, %c0_21] : memref<4x32x8xf32, #tpu.memory_space<vmem>>, vector<1x32x8xf32>
    %24 = vector.shape_cast %23 : vector<1x32x8xf32> to vector<32x8xf32>
    %25 = arith.truncf %3 : vector<8x32xf32> to vector<8x32xbf16>
    %26 = arith.truncf %24 : vector<32x8xf32> to vector<32x8xbf16>
    %cst_22 = arith.constant dense<0.000000e+00> : vector<8x8xf32>
    %27 = tpu.matmul %25, %26, %cst_22 {dimension_numbers = #tpu.dot_dimension_numbers<[1], [0], [0], [1], [0, 0, 1, 1], [], []>} : vector<8x32xbf16>, vector<32x8xbf16>, vector<8x8xf32> -> vector<8x8xf32>
    %c0_23 = arith.constant 0 : index
    %c0_24 = arith.constant 0 : index
    %c0_25 = arith.constant 0 : index
    %28 = vector.load %arg8[%c0_23, %c0_24, %c0_25] : memref<4x1x8xf32, #tpu.memory_space<vmem>>, vector<1x1x8xf32>
    %29 = vector.shape_cast %28 : vector<1x1x8xf32> to vector<1x8xf32>
    %30 = vector.broadcast %29 : vector<1x8xf32> to vector<8x8xf32>
    %31 = arith.addf %27, %30 : vector<8x8xf32>
    %cst_26 = arith.constant 0.353553385 : f32
    %32 = vector.broadcast %cst_26 : f32 to vector<8x8xf32>
    %33 = arith.mulf %13, %32 : vector<8x8xf32>
    %34 = arith.truncf %33 : vector<8x8xf32> to vector<8x8xbf16>
    %35 = arith.truncf %22 : vector<8x8xf32> to vector<8x8xbf16>
    %cst_27 = arith.constant dense<0.000000e+00> : vector<8x8xf32>
    %36 = tpu.matmul %34, %35, %cst_27 {dimension_numbers = #tpu.dot_dimension_numbers<[1], [1], [0], [0], [0, 0, 1, 0], [], []>} : vector<8x8xbf16>, vector<8x8xbf16>, vector<8x8xf32> -> vector<8x8xf32>
    %cst_28 = arith.constant dense<0xFF800000> : vector<8xf32>
    %37 = vector.multi_reduction <maximumf>, %36, %cst_28 [1] : vector<8x8xf32> to vector<8xf32>
    %38 = vector.shape_cast %37 : vector<8xf32> to vector<8x1xf32>
    %39 = vector.broadcast %38 : vector<8x1xf32> to vector<8x8xf32>
    %40 = arith.subf %36, %39 : vector<8x8xf32>
    %41 = math.exp %40 : vector<8x8xf32>
    %cst_29 = arith.constant dense<0.000000e+00> : vector<8xf32>
    %42 = vector.multi_reduction <add>, %41, %cst_29 [1] : vector<8x8xf32> to vector<8xf32>
    %43 = vector.shape_cast %42 : vector<8xf32> to vector<8x1xf32>
    %44 = tpu.reciprocal %43 {approx = true} : vector<8x1xf32> -> vector<8x1xf32>
    %45 = vector.broadcast %44 : vector<8x1xf32> to vector<8x8xf32>
    %46 = arith.mulf %41, %45 : vector<8x8xf32>
    %47 = arith.truncf %46 : vector<8x8xf32> to vector<8x8xbf16>
    %48 = arith.truncf %31 : vector<8x8xf32> to vector<8x8xbf16>
    %cst_30 = arith.constant dense<0.000000e+00> : vector<8x8xf32>
    %49 = tpu.matmul %47, %48, %cst_30 {dimension_numbers = #tpu.dot_dimension_numbers<[1], [0], [0], [1], [0, 0, 1, 1], [], []>} : vector<8x8xbf16>, vector<8x8xbf16>, vector<8x8xf32> -> vector<8x8xf32>
    %c0_31 = arith.constant 0 : index
    %c0_32 = arith.constant 0 : index
    %c0_33 = arith.constant 0 : index
    %50 = vector.load %arg9[%c0_31, %c0_32, %c0_33] : memref<4x8x32xf32, #tpu.memory_space<vmem>>, vector<1x8x32xf32>
    %51 = vector.shape_cast %50 : vector<1x8x32xf32> to vector<8x32xf32>
    %52 = arith.truncf %49 : vector<8x8xf32> to vector<8x8xbf16>
    %53 = arith.truncf %51 : vector<8x32xf32> to vector<8x32xbf16>
    %cst_34 = arith.constant dense<0.000000e+00> : vector<8x32xf32>
    %54 = tpu.matmul %52, %53, %cst_34 {dimension_numbers = #tpu.dot_dimension_numbers<[1], [0], [0], [1], [0, 0, 1, 1], [], []>} : vector<8x8xbf16>, vector<8x32xbf16>, vector<8x32xf32> -> vector<8x32xf32>
    %55 = arith.addf %4, %54 : vector<8x32xf32>
    %c1 = arith.constant 1 : index
    %c0_35 = arith.constant 0 : index
    %c0_36 = arith.constant 0 : index
    %56 = vector.load %arg3[%c1, %c0_35, %c0_36] : memref<4x32x8xf32, #tpu.memory_space<vmem>>, vector<1x32x8xf32>
    %57 = vector.shape_cast %56 : vector<1x32x8xf32> to vector<32x8xf32>
    %58 = arith.truncf %1 : vector<8x32xf32> to vector<8x32xbf16>
    %59 = arith.truncf %57 : vector<32x8xf32> to vector<32x8xbf16>
    %cst_37 = arith.constant dense<0.000000e+00> : vector<8x8xf32>
    %60 = tpu.matmul %58, %59, %cst_37 {dimension_numbers = #tpu.dot_dimension_numbers<[1], [0], [0], [1], [0, 0, 1, 1], [], []>} : vector<8x32xbf16>, vector<32x8xbf16>, vector<8x8xf32> -> vector<8x8xf32>
    %c1_38 = arith.constant 1 : index
    %c0_39 = arith.constant 0 : index
    %c0_40 = arith.constant 0 : index
    %61 = vector.load %arg4[%c1_38, %c0_39, %c0_40] : memref<4x1x8xf32, #tpu.memory_space<vmem>>, vector<1x1x8xf32>
    %62 = vector.shape_cast %61 : vector<1x1x8xf32> to vector<1x8xf32>
    %63 = vector.broadcast %62 : vector<1x8xf32> to vector<8x8xf32>
    %64 = arith.addf %60, %63 : vector<8x8xf32>
    %c1_41 = arith.constant 1 : index
    %c0_42 = arith.constant 0 : index
    %c0_43 = arith.constant 0 : index
    %65 = vector.load %arg5[%c1_41, %c0_42, %c0_43] : memref<4x32x8xf32, #tpu.memory_space<vmem>>, vector<1x32x8xf32>
    %66 = vector.shape_cast %65 : vector<1x32x8xf32> to vector<32x8xf32>
    %67 = arith.truncf %3 : vector<8x32xf32> to vector<8x32xbf16>
    %68 = arith.truncf %66 : vector<32x8xf32> to vector<32x8xbf16>
    %cst_44 = arith.constant dense<0.000000e+00> : vector<8x8xf32>
    %69 = tpu.matmul %67, %68, %cst_44 {dimension_numbers = #tpu.dot_dimension_numbers<[1], [0], [0], [1], [0, 0, 1, 1], [], []>} : vector<8x32xbf16>, vector<32x8xbf16>, vector<8x8xf32> -> vector<8x8xf32>
    %c1_45 = arith.constant 1 : index
    %c0_46 = arith.constant 0 : index
    %c0_47 = arith.constant 0 : index
    %70 = vector.load %arg6[%c1_45, %c0_46, %c0_47] : memref<4x1x8xf32, #tpu.memory_space<vmem>>, vector<1x1x8xf32>
    %71 = vector.shape_cast %70 : vector<1x1x8xf32> to vector<1x8xf32>
    %72 = vector.broadcast %71 : vector<1x8xf32> to vector<8x8xf32>
    %73 = arith.addf %69, %72 : vector<8x8xf32>
    %c1_48 = arith.constant 1 : index
    %c0_49 = arith.constant 0 : index
    %c0_50 = arith.constant 0 : index
    %74 = vector.load %arg7[%c1_48, %c0_49, %c0_50] : memref<4x32x8xf32, #tpu.memory_space<vmem>>, vector<1x32x8xf32>
    %75 = vector.shape_cast %74 : vector<1x32x8xf32> to vector<32x8xf32>
    %76 = arith.truncf %3 : vector<8x32xf32> to vector<8x32xbf16>
    %77 = arith.truncf %75 : vector<32x8xf32> to vector<32x8xbf16>
    %cst_51 = arith.constant dense<0.000000e+00> : vector<8x8xf32>
    %78 = tpu.matmul %76, %77, %cst_51 {dimension_numbers = #tpu.dot_dimension_numbers<[1], [0], [0], [1], [0, 0, 1, 1], [], []>} : vector<8x32xbf16>, vector<32x8xbf16>, vector<8x8xf32> -> vector<8x8xf32>
    %c1_52 = arith.constant 1 : index
    %c0_53 = arith.constant 0 : index
    %c0_54 = arith.constant 0 : index
    %79 = vector.load %arg8[%c1_52, %c0_53, %c0_54] : memref<4x1x8xf32, #tpu.memory_space<vmem>>, vector<1x1x8xf32>
    %80 = vector.shape_cast %79 : vector<1x1x8xf32> to vector<1x8xf32>
    %81 = vector.broadcast %80 : vector<1x8xf32> to vector<8x8xf32>
    %82 = arith.addf %78, %81 : vector<8x8xf32>
    %cst_55 = arith.constant 0.353553385 : f32
    %83 = vector.broadcast %cst_55 : f32 to vector<8x8xf32>
    %84 = arith.mulf %64, %83 : vector<8x8xf32>
    %85 = arith.truncf %84 : vector<8x8xf32> to vector<8x8xbf16>
    %86 = arith.truncf %73 : vector<8x8xf32> to vector<8x8xbf16>
    %cst_56 = arith.constant dense<0.000000e+00> : vector<8x8xf32>
    %87 = tpu.matmul %85, %86, %cst_56 {dimension_numbers = #tpu.dot_dimension_numbers<[1], [1], [0], [0], [0, 0, 1, 0], [], []>} : vector<8x8xbf16>, vector<8x8xbf16>, vector<8x8xf32> -> vector<8x8xf32>
    %cst_57 = arith.constant dense<0xFF800000> : vector<8xf32>
    %88 = vector.multi_reduction <maximumf>, %87, %cst_57 [1] : vector<8x8xf32> to vector<8xf32>
    %89 = vector.shape_cast %88 : vector<8xf32> to vector<8x1xf32>
    %90 = vector.broadcast %89 : vector<8x1xf32> to vector<8x8xf32>
    %91 = arith.subf %87, %90 : vector<8x8xf32>
    %92 = math.exp %91 : vector<8x8xf32>
    %cst_58 = arith.constant dense<0.000000e+00> : vector<8xf32>
    %93 = vector.multi_reduction <add>, %92, %cst_58 [1] : vector<8x8xf32> to vector<8xf32>
    %94 = vector.shape_cast %93 : vector<8xf32> to vector<8x1xf32>
    %95 = tpu.reciprocal %94 {approx = true} : vector<8x1xf32> -> vector<8x1xf32>
    %96 = vector.broadcast %95 : vector<8x1xf32> to vector<8x8xf32>
    %97 = arith.mulf %92, %96 : vector<8x8xf32>
    %98 = arith.truncf %97 : vector<8x8xf32> to vector<8x8xbf16>
    %99 = arith.truncf %82 : vector<8x8xf32> to vector<8x8xbf16>
    %cst_59 = arith.constant dense<0.000000e+00> : vector<8x8xf32>
    %100 = tpu.matmul %98, %99, %cst_59 {dimension_numbers = #tpu.dot_dimension_numbers<[1], [0], [0], [1], [0, 0, 1, 1], [], []>} : vector<8x8xbf16>, vector<8x8xbf16>, vector<8x8xf32> -> vector<8x8xf32>
    %c1_60 = arith.constant 1 : index
    %c0_61 = arith.constant 0 : index
    %c0_62 = arith.constant 0 : index
    %101 = vector.load %arg9[%c1_60, %c0_61, %c0_62] : memref<4x8x32xf32, #tpu.memory_space<vmem>>, vector<1x8x32xf32>
    %102 = vector.shape_cast %101 : vector<1x8x32xf32> to vector<8x32xf32>
    %103 = arith.truncf %100 : vector<8x8xf32> to vector<8x8xbf16>
    %104 = arith.truncf %102 : vector<8x32xf32> to vector<8x32xbf16>
    %cst_63 = arith.constant dense<0.000000e+00> : vector<8x32xf32>
    %105 = tpu.matmul %103, %104, %cst_63 {dimension_numbers = #tpu.dot_dimension_numbers<[1], [0], [0], [1], [0, 0, 1, 1], [], []>} : vector<8x8xbf16>, vector<8x32xbf16>, vector<8x32xf32> -> vector<8x32xf32>
    %106 = arith.addf %55, %105 : vector<8x32xf32>
    %c2 = arith.constant 2 : index
    %c0_64 = arith.constant 0 : index
    %c0_65 = arith.constant 0 : index
    %107 = vector.load %arg3[%c2, %c0_64, %c0_65] : memref<4x32x8xf32, #tpu.memory_space<vmem>>, vector<1x32x8xf32>
    %108 = vector.shape_cast %107 : vector<1x32x8xf32> to vector<32x8xf32>
    %109 = arith.truncf %1 : vector<8x32xf32> to vector<8x32xbf16>
    %110 = arith.truncf %108 : vector<32x8xf32> to vector<32x8xbf16>
    %cst_66 = arith.constant dense<0.000000e+00> : vector<8x8xf32>
    %111 = tpu.matmul %109, %110, %cst_66 {dimension_numbers = #tpu.dot_dimension_numbers<[1], [0], [0], [1], [0, 0, 1, 1], [], []>} : vector<8x32xbf16>, vector<32x8xbf16>, vector<8x8xf32> -> vector<8x8xf32>
    %c2_67 = arith.constant 2 : index
    %c0_68 = arith.constant 0 : index
    %c0_69 = arith.constant 0 : index
    %112 = vector.load %arg4[%c2_67, %c0_68, %c0_69] : memref<4x1x8xf32, #tpu.memory_space<vmem>>, vector<1x1x8xf32>
    %113 = vector.shape_cast %112 : vector<1x1x8xf32> to vector<1x8xf32>
    %114 = vector.broadcast %113 : vector<1x8xf32> to vector<8x8xf32>
    %115 = arith.addf %111, %114 : vector<8x8xf32>
    %c2_70 = arith.constant 2 : index
    %c0_71 = arith.constant 0 : index
    %c0_72 = arith.constant 0 : index
    %116 = vector.load %arg5[%c2_70, %c0_71, %c0_72] : memref<4x32x8xf32, #tpu.memory_space<vmem>>, vector<1x32x8xf32>
    %117 = vector.shape_cast %116 : vector<1x32x8xf32> to vector<32x8xf32>
    %118 = arith.truncf %3 : vector<8x32xf32> to vector<8x32xbf16>
    %119 = arith.truncf %117 : vector<32x8xf32> to vector<32x8xbf16>
    %cst_73 = arith.constant dense<0.000000e+00> : vector<8x8xf32>
    %120 = tpu.matmul %118, %119, %cst_73 {dimension_numbers = #tpu.dot_dimension_numbers<[1], [0], [0], [1], [0, 0, 1, 1], [], []>} : vector<8x32xbf16>, vector<32x8xbf16>, vector<8x8xf32> -> vector<8x8xf32>
    %c2_74 = arith.constant 2 : index
    %c0_75 = arith.constant 0 : index
    %c0_76 = arith.constant 0 : index
    %121 = vector.load %arg6[%c2_74, %c0_75, %c0_76] : memref<4x1x8xf32, #tpu.memory_space<vmem>>, vector<1x1x8xf32>
    %122 = vector.shape_cast %121 : vector<1x1x8xf32> to vector<1x8xf32>
    %123 = vector.broadcast %122 : vector<1x8xf32> to vector<8x8xf32>
    %124 = arith.addf %120, %123 : vector<8x8xf32>
    %c2_77 = arith.constant 2 : index
    %c0_78 = arith.constant 0 : index
    %c0_79 = arith.constant 0 : index
    %125 = vector.load %arg7[%c2_77, %c0_78, %c0_79] : memref<4x32x8xf32, #tpu.memory_space<vmem>>, vector<1x32x8xf32>
    %126 = vector.shape_cast %125 : vector<1x32x8xf32> to vector<32x8xf32>
    %127 = arith.truncf %3 : vector<8x32xf32> to vector<8x32xbf16>
    %128 = arith.truncf %126 : vector<32x8xf32> to vector<32x8xbf16>
    %cst_80 = arith.constant dense<0.000000e+00> : vector<8x8xf32>
    %129 = tpu.matmul %127, %128, %cst_80 {dimension_numbers = #tpu.dot_dimension_numbers<[1], [0], [0], [1], [0, 0, 1, 1], [], []>} : vector<8x32xbf16>, vector<32x8xbf16>, vector<8x8xf32> -> vector<8x8xf32>
    %c2_81 = arith.constant 2 : index
    %c0_82 = arith.constant 0 : index
    %c0_83 = arith.constant 0 : index
    %130 = vector.load %arg8[%c2_81, %c0_82, %c0_83] : memref<4x1x8xf32, #tpu.memory_space<vmem>>, vector<1x1x8xf32>
    %131 = vector.shape_cast %130 : vector<1x1x8xf32> to vector<1x8xf32>
    %132 = vector.broadcast %131 : vector<1x8xf32> to vector<8x8xf32>
    %133 = arith.addf %129, %132 : vector<8x8xf32>
    %cst_84 = arith.constant 0.353553385 : f32
    %134 = vector.broadcast %cst_84 : f32 to vector<8x8xf32>
    %135 = arith.mulf %115, %134 : vector<8x8xf32>
    %136 = arith.truncf %135 : vector<8x8xf32> to vector<8x8xbf16>
    %137 = arith.truncf %124 : vector<8x8xf32> to vector<8x8xbf16>
    %cst_85 = arith.constant dense<0.000000e+00> : vector<8x8xf32>
    %138 = tpu.matmul %136, %137, %cst_85 {dimension_numbers = #tpu.dot_dimension_numbers<[1], [1], [0], [0], [0, 0, 1, 0], [], []>} : vector<8x8xbf16>, vector<8x8xbf16>, vector<8x8xf32> -> vector<8x8xf32>
    %cst_86 = arith.constant dense<0xFF800000> : vector<8xf32>
    %139 = vector.multi_reduction <maximumf>, %138, %cst_86 [1] : vector<8x8xf32> to vector<8xf32>
    %140 = vector.shape_cast %139 : vector<8xf32> to vector<8x1xf32>
    %141 = vector.broadcast %140 : vector<8x1xf32> to vector<8x8xf32>
    %142 = arith.subf %138, %141 : vector<8x8xf32>
    %143 = math.exp %142 : vector<8x8xf32>
    %cst_87 = arith.constant dense<0.000000e+00> : vector<8xf32>
    %144 = vector.multi_reduction <add>, %143, %cst_87 [1] : vector<8x8xf32> to vector<8xf32>
    %145 = vector.shape_cast %144 : vector<8xf32> to vector<8x1xf32>
    %146 = tpu.reciprocal %145 {approx = true} : vector<8x1xf32> -> vector<8x1xf32>
    %147 = vector.broadcast %146 : vector<8x1xf32> to vector<8x8xf32>
    %148 = arith.mulf %143, %147 : vector<8x8xf32>
    %149 = arith.truncf %148 : vector<8x8xf32> to vector<8x8xbf16>
    %150 = arith.truncf %133 : vector<8x8xf32> to vector<8x8xbf16>
    %cst_88 = arith.constant dense<0.000000e+00> : vector<8x8xf32>
    %151 = tpu.matmul %149, %150, %cst_88 {dimension_numbers = #tpu.dot_dimension_numbers<[1], [0], [0], [1], [0, 0, 1, 1], [], []>} : vector<8x8xbf16>, vector<8x8xbf16>, vector<8x8xf32> -> vector<8x8xf32>
    %c2_89 = arith.constant 2 : index
    %c0_90 = arith.constant 0 : index
    %c0_91 = arith.constant 0 : index
    %152 = vector.load %arg9[%c2_89, %c0_90, %c0_91] : memref<4x8x32xf32, #tpu.memory_space<vmem>>, vector<1x8x32xf32>
    %153 = vector.shape_cast %152 : vector<1x8x32xf32> to vector<8x32xf32>
    %154 = arith.truncf %151 : vector<8x8xf32> to vector<8x8xbf16>
    %155 = arith.truncf %153 : vector<8x32xf32> to vector<8x32xbf16>
    %cst_92 = arith.constant dense<0.000000e+00> : vector<8x32xf32>
    %156 = tpu.matmul %154, %155, %cst_92 {dimension_numbers = #tpu.dot_dimension_numbers<[1], [0], [0], [1], [0, 0, 1, 1], [], []>} : vector<8x8xbf16>, vector<8x32xbf16>, vector<8x32xf32> -> vector<8x32xf32>
    %157 = arith.addf %106, %156 : vector<8x32xf32>
    %c3 = arith.constant 3 : index
    %c0_93 = arith.constant 0 : index
    %c0_94 = arith.constant 0 : index
    %158 = vector.load %arg3[%c3, %c0_93, %c0_94] : memref<4x32x8xf32, #tpu.memory_space<vmem>>, vector<1x32x8xf32>
    %159 = vector.shape_cast %158 : vector<1x32x8xf32> to vector<32x8xf32>
    %160 = arith.truncf %1 : vector<8x32xf32> to vector<8x32xbf16>
    %161 = arith.truncf %159 : vector<32x8xf32> to vector<32x8xbf16>
    %cst_95 = arith.constant dense<0.000000e+00> : vector<8x8xf32>
    %162 = tpu.matmul %160, %161, %cst_95 {dimension_numbers = #tpu.dot_dimension_numbers<[1], [0], [0], [1], [0, 0, 1, 1], [], []>} : vector<8x32xbf16>, vector<32x8xbf16>, vector<8x8xf32> -> vector<8x8xf32>
    %c3_96 = arith.constant 3 : index
    %c0_97 = arith.constant 0 : index
    %c0_98 = arith.constant 0 : index
    %163 = vector.load %arg4[%c3_96, %c0_97, %c0_98] : memref<4x1x8xf32, #tpu.memory_space<vmem>>, vector<1x1x8xf32>
    %164 = vector.shape_cast %163 : vector<1x1x8xf32> to vector<1x8xf32>
    %165 = vector.broadcast %164 : vector<1x8xf32> to vector<8x8xf32>
    %166 = arith.addf %162, %165 : vector<8x8xf32>
    %c3_99 = arith.constant 3 : index
    %c0_100 = arith.constant 0 : index
    %c0_101 = arith.constant 0 : index
    %167 = vector.load %arg5[%c3_99, %c0_100, %c0_101] : memref<4x32x8xf32, #tpu.memory_space<vmem>>, vector<1x32x8xf32>
    %168 = vector.shape_cast %167 : vector<1x32x8xf32> to vector<32x8xf32>
    %169 = arith.truncf %3 : vector<8x32xf32> to vector<8x32xbf16>
    %170 = arith.truncf %168 : vector<32x8xf32> to vector<32x8xbf16>
    %cst_102 = arith.constant dense<0.000000e+00> : vector<8x8xf32>
    %171 = tpu.matmul %169, %170, %cst_102 {dimension_numbers = #tpu.dot_dimension_numbers<[1], [0], [0], [1], [0, 0, 1, 1], [], []>} : vector<8x32xbf16>, vector<32x8xbf16>, vector<8x8xf32> -> vector<8x8xf32>
    %c3_103 = arith.constant 3 : index
    %c0_104 = arith.constant 0 : index
    %c0_105 = arith.constant 0 : index
    %172 = vector.load %arg6[%c3_103, %c0_104, %c0_105] : memref<4x1x8xf32, #tpu.memory_space<vmem>>, vector<1x1x8xf32>
    %173 = vector.shape_cast %172 : vector<1x1x8xf32> to vector<1x8xf32>
    %174 = vector.broadcast %173 : vector<1x8xf32> to vector<8x8xf32>
    %175 = arith.addf %171, %174 : vector<8x8xf32>
    %c3_106 = arith.constant 3 : index
    %c0_107 = arith.constant 0 : index
    %c0_108 = arith.constant 0 : index
    %176 = vector.load %arg7[%c3_106, %c0_107, %c0_108] : memref<4x32x8xf32, #tpu.memory_space<vmem>>, vector<1x32x8xf32>
    %177 = vector.shape_cast %176 : vector<1x32x8xf32> to vector<32x8xf32>
    %178 = arith.truncf %3 : vector<8x32xf32> to vector<8x32xbf16>
    %179 = arith.truncf %177 : vector<32x8xf32> to vector<32x8xbf16>
    %cst_109 = arith.constant dense<0.000000e+00> : vector<8x8xf32>
    %180 = tpu.matmul %178, %179, %cst_109 {dimension_numbers = #tpu.dot_dimension_numbers<[1], [0], [0], [1], [0, 0, 1, 1], [], []>} : vector<8x32xbf16>, vector<32x8xbf16>, vector<8x8xf32> -> vector<8x8xf32>
    %c3_110 = arith.constant 3 : index
    %c0_111 = arith.constant 0 : index
    %c0_112 = arith.constant 0 : index
    %181 = vector.load %arg8[%c3_110, %c0_111, %c0_112] : memref<4x1x8xf32, #tpu.memory_space<vmem>>, vector<1x1x8xf32>
    %182 = vector.shape_cast %181 : vector<1x1x8xf32> to vector<1x8xf32>
    %183 = vector.broadcast %182 : vector<1x8xf32> to vector<8x8xf32>
    %184 = arith.addf %180, %183 : vector<8x8xf32>
    %cst_113 = arith.constant 0.353553385 : f32
    %185 = vector.broadcast %cst_113 : f32 to vector<8x8xf32>
    %186 = arith.mulf %166, %185 : vector<8x8xf32>
    %187 = arith.truncf %186 : vector<8x8xf32> to vector<8x8xbf16>
    %188 = arith.truncf %175 : vector<8x8xf32> to vector<8x8xbf16>
    %cst_114 = arith.constant dense<0.000000e+00> : vector<8x8xf32>
    %189 = tpu.matmul %187, %188, %cst_114 {dimension_numbers = #tpu.dot_dimension_numbers<[1], [1], [0], [0], [0, 0, 1, 0], [], []>} : vector<8x8xbf16>, vector<8x8xbf16>, vector<8x8xf32> -> vector<8x8xf32>
    %cst_115 = arith.constant dense<0xFF800000> : vector<8xf32>
    %190 = vector.multi_reduction <maximumf>, %189, %cst_115 [1] : vector<8x8xf32> to vector<8xf32>
    %191 = vector.shape_cast %190 : vector<8xf32> to vector<8x1xf32>
    %192 = vector.broadcast %191 : vector<8x1xf32> to vector<8x8xf32>
    %193 = arith.subf %189, %192 : vector<8x8xf32>
    %194 = math.exp %193 : vector<8x8xf32>
    %cst_116 = arith.constant dense<0.000000e+00> : vector<8xf32>
    %195 = vector.multi_reduction <add>, %194, %cst_116 [1] : vector<8x8xf32> to vector<8xf32>
    %196 = vector.shape_cast %195 : vector<8xf32> to vector<8x1xf32>
    %197 = tpu.reciprocal %196 {approx = true} : vector<8x1xf32> -> vector<8x1xf32>
    %198 = vector.broadcast %197 : vector<8x1xf32> to vector<8x8xf32>
    %199 = arith.mulf %194, %198 : vector<8x8xf32>
    %200 = arith.truncf %199 : vector<8x8xf32> to vector<8x8xbf16>
    %201 = arith.truncf %184 : vector<8x8xf32> to vector<8x8xbf16>
    %cst_117 = arith.constant dense<0.000000e+00> : vector<8x8xf32>
    %202 = tpu.matmul %200, %201, %cst_117 {dimension_numbers = #tpu.dot_dimension_numbers<[1], [0], [0], [1], [0, 0, 1, 1], [], []>} : vector<8x8xbf16>, vector<8x8xbf16>, vector<8x8xf32> -> vector<8x8xf32>
    %c3_118 = arith.constant 3 : index
    %c0_119 = arith.constant 0 : index
    %c0_120 = arith.constant 0 : index
    %203 = vector.load %arg9[%c3_118, %c0_119, %c0_120] : memref<4x8x32xf32, #tpu.memory_space<vmem>>, vector<1x8x32xf32>
    %204 = vector.shape_cast %203 : vector<1x8x32xf32> to vector<8x32xf32>
    %205 = arith.truncf %202 : vector<8x8xf32> to vector<8x8xbf16>
    %206 = arith.truncf %204 : vector<8x32xf32> to vector<8x32xbf16>
    %cst_121 = arith.constant dense<0.000000e+00> : vector<8x32xf32>
    %207 = tpu.matmul %205, %206, %cst_121 {dimension_numbers = #tpu.dot_dimension_numbers<[1], [0], [0], [1], [0, 0, 1, 1], [], []>} : vector<8x8xbf16>, vector<8x32xbf16>, vector<8x32xf32> -> vector<8x32xf32>
    %208 = arith.addf %157, %207 : vector<8x32xf32>
    %c0_122 = arith.constant 0 : index
    %c0_123 = arith.constant 0 : index
    %209 = vector.load %arg10[%c0_122, %c0_123] : memref<1x32xf32, #tpu.memory_space<vmem>>, vector<1x32xf32>
    %210 = vector.broadcast %209 : vector<1x32xf32> to vector<8x32xf32>
    %211 = arith.addf %208, %210 : vector<8x32xf32>
    %c0_124 = arith.constant 0 : index
    %c0_125 = arith.constant 0 : index
    %212 = vector.load %arg11[%c0_124, %c0_125] : memref<1x32xf32, #tpu.memory_space<vmem>>, vector<1x32xf32>
    %c0_126 = arith.constant 0 : index
    %c0_127 = arith.constant 0 : index
    %213 = vector.load %arg12[%c0_126, %c0_127] : memref<1x32xf32, #tpu.memory_space<vmem>>, vector<1x32xf32>
    %214 = arith.addf %1, %211 : vector<8x32xf32>
    %cst_128 = arith.constant dense<0.000000e+00> : vector<8xf32>
    %215 = vector.multi_reduction <add>, %214, %cst_128 [1] : vector<8x32xf32> to vector<8xf32>
    %216 = vector.shape_cast %215 : vector<8xf32> to vector<8x1xf32>
    %cst_129 = arith.constant 3.200000e+01 : f32
    %217 = vector.broadcast %cst_129 : f32 to vector<8x1xf32>
    %218 = arith.divf %216, %217 : vector<8x1xf32>
    %219 = arith.mulf %214, %214 : vector<8x32xf32>
    %cst_130 = arith.constant dense<0.000000e+00> : vector<8xf32>
    %220 = vector.multi_reduction <add>, %219, %cst_130 [1] : vector<8x32xf32> to vector<8xf32>
    %221 = vector.shape_cast %220 : vector<8xf32> to vector<8x1xf32>
    %cst_131 = arith.constant 3.200000e+01 : f32
    %222 = vector.broadcast %cst_131 : f32 to vector<8x1xf32>
    %223 = arith.divf %221, %222 : vector<8x1xf32>
    %224 = arith.mulf %218, %218 : vector<8x1xf32>
    %225 = arith.subf %223, %224 : vector<8x1xf32>
    %226 = vector.broadcast %218 : vector<8x1xf32> to vector<8x32xf32>
    %227 = arith.subf %214, %226 : vector<8x32xf32>
    %cst_132 = arith.constant 9.99999974E-6 : f32
    %228 = vector.broadcast %cst_132 : f32 to vector<8x1xf32>
    %229 = arith.addf %225, %228 : vector<8x1xf32>
    %230 = math.rsqrt %229 : vector<8x1xf32>
    %231 = vector.broadcast %230 : vector<8x1xf32> to vector<8x32xf32>
    %232 = arith.mulf %227, %231 : vector<8x32xf32>
    %233 = vector.broadcast %212 : vector<1x32xf32> to vector<8x32xf32>
    %234 = arith.mulf %232, %233 : vector<8x32xf32>
    %235 = vector.broadcast %213 : vector<1x32xf32> to vector<8x32xf32>
    %236 = arith.addf %234, %235 : vector<8x32xf32>
    %c0_133 = arith.constant 0 : index
    %c0_134 = arith.constant 0 : index
    %c0_135 = arith.constant 0 : index
    %237 = vector.load %arg13[%c0_133, %c0_134, %c0_135] : memref<1x8x32xf32, #tpu.memory_space<vmem>>, vector<1x8x32xf32>
    %238 = vector.shape_cast %237 : vector<1x8x32xf32> to vector<8x32xf32>
    %239 = vector.shape_cast %236 : vector<8x32xf32> to vector<1x8x32xf32>
    tpu.vector_store %arg13[%c0_133, %c0_134, %c0_135], %239 {strides = array<i32>} : memref<1x8x32xf32, #tpu.memory_space<vmem>>, vector<1x8x32xf32>,
    return
  }
  func.func @transform_0(%arg0: i32) -> (i32, i32, i32) {
    %c0_i32 = arith.constant 0 : i32
    %c0_i32_0 = arith.constant 0 : i32
    %c0_i32_1 = arith.constant 0 : i32
    return %arg0, %c0_i32, %c0_i32_0 : i32, i32, i32
  }
  func.func @transform_1(%arg0: i32) -> (i32, i32, i32) {
    %c0_i32 = arith.constant 0 : i32
    %c0_i32_0 = arith.constant 0 : i32
    %c0_i32_1 = arith.constant 0 : i32
    return %arg0, %c0_i32, %c0_i32_0 : i32, i32, i32
  }
  func.func @transform_2(%arg0: i32) -> (i32, i32, i32) {
    %c0_i32 = arith.constant 0 : i32
    %c0_i32_0 = arith.constant 0 : i32
    %c0_i32_1 = arith.constant 0 : i32
    %c0_i32_2 = arith.constant 0 : i32
    return %c0_i32, %c0_i32_0, %c0_i32_1 : i32, i32, i32
  }
  func.func @transform_3(%arg0: i32) -> (i32, i32, i32) {
    %c0_i32 = arith.constant 0 : i32
    %c0_i32_0 = arith.constant 0 : i32
    %c0_i32_1 = arith.constant 0 : i32
    %c0_i32_2 = arith.constant 0 : i32
    return %c0_i32, %c0_i32_0, %c0_i32_1 : i32, i32, i32
  }
  func.func @transform_4(%arg0: i32) -> (i32, i32, i32) {
    %c0_i32 = arith.constant 0 : i32
    %c0_i32_0 = arith.constant 0 : i32
    %c0_i32_1 = arith.constant 0 : i32
    %c0_i32_2 = arith.constant 0 : i32
    return %c0_i32, %c0_i32_0, %c0_i32_1 : i32, i32, i32
  }
  func.func @transform_5(%arg0: i32) -> (i32, i32, i32) {
    %c0_i32 = arith.constant 0 : i32
    %c0_i32_0 = arith.constant 0 : i32
    %c0_i32_1 = arith.constant 0 : i32
    %c0_i32_2 = arith.constant 0 : i32
    return %c0_i32, %c0_i32_0, %c0_i32_1 : i32, i32, i32
  }
  func.func @transform_6(%arg0: i32) -> (i32, i32, i32) {
    %c0_i32 = arith.constant 0 : i32
    %c0_i32_0 = arith.constant 0 : i32
    %c0_i32_1 = arith.constant 0 : i32
    %c0_i32_2 = arith.constant 0 : i32
    return %c0_i32, %c0_i32_0, %c0_i32_1 : i32, i32, i32
  }
  func.func @transform_7(%arg0: i32) -> (i32, i32, i32) {
    %c0_i32 = arith.constant 0 : i32
    %c0_i32_0 = arith.constant 0 : i32
    %c0_i32_1 = arith.constant 0 : i32
    %c0_i32_2 = arith.constant 0 : i32
    return %c0_i32, %c0_i32_0, %c0_i32_1 : i32, i32, i32
  }
  func.func @transform_8(%arg0: i32) -> (i32, i32, i32) {
    %c0_i32 = arith.constant 0 : i32
    %c0_i32_0 = arith.constant 0 : i32
    %c0_i32_1 = arith.constant 0 : i32
    %c0_i32_2 = arith.constant 0 : i32
    return %c0_i32, %c0_i32_0, %c0_i32_1 : i32, i32, i32
  }
  func.func @transform_9(%arg0: i32) -> (i32, i32) {
    %c0_i32 = arith.constant 0 : i32
    %c0_i32_0 = arith.constant 0 : i32
    %c0_i32_1 = arith.constant 0 : i32
    return %c0_i32, %c0_i32_0 : i32, i32
  }
  func.func @transform_10(%arg0: i32) -> (i32, i32) {
    %c0_i32 = arith.constant 0 : i32
    %c0_i32_0 = arith.constant 0 : i32
    %c0_i32_1 = arith.constant 0 : i32
    return %c0_i32, %c0_i32_0 : i32, i32
  }
  func.func @transform_11(%arg0: i32) -> (i32, i32) {
    %c0_i32 = arith.constant 0 : i32
    %c0_i32_0 = arith.constant 0 : i32
    %c0_i32_1 = arith.constant 0 : i32
    return %c0_i32, %c0_i32_0 : i32, i32
  }
  func.func @transform_12(%arg0: i32) -> (i32, i32, i32) {
    %c0_i32 = arith.constant 0 : i32
    %c0_i32_0 = arith.constant 0 : i32
    %c0_i32_1 = arith.constant 0 : i32
    return %arg0, %c0_i32, %c0_i32_0 : i32, i32, i32
  }
}

</mosaic_0001>

<llo_original>
// kernel: seq2seq_forward.21
$region0: #{seq2seq_forward.21}
  #allocation0 [shape = 'u32[]', space=smem, size = 0x4, offset = 0x4, fixed_abs, tag = 'smem constant byte address 0x4 - core index']
  #allocation1 [shape = 'u32[72,128]{1,0:T(1,128)}', space=vmem, size = 0x9000, scoped, tag = 'internal scratch']
  %s0 = inlined_call_operand.vmem [shape: f32[16,32], index: 0, kind: input, shape index: {}]
  %s1 = inlined_call_operand.vmem [shape: f32[32,60], index: 1, kind: input, shape index: {}]
  %s2 = inlined_call_operand.vmem [shape: f32[1,60], index: 2, kind: input, shape index: {}]
  %s3 = inlined_call_operand.vmem [shape: f32[16,60], index: 3, kind: output, shape index: {}]
  %s4 = sld [smem:[#allocation0]]
  $region22: #{seq2seq_forward.21} parent=0
    _
  %s6 = ssub.s32 1, %s4
  %s7 = scalar_select 0, %s6, %s4
  // Predicated region
  $region2: #{seq2seq_forward.21} parent=0 // pred_check
    _
  $region3: #{seq2seq_forward.21} parent=0 // pred_check_branch
    %9 = sbr.rel (0) target = $region5
  $region4: #{seq2seq_forward.21} parent=0 // pred_region
    _
  $region5: #{seq2seq_forward.21} parent=0 // pred_fallthru
    _
  // Predicated region
  $region6: #{seq2seq_forward.21} parent=0 // pred_check
    _
  $region7: #{seq2seq_forward.21} parent=0 // pred_check_branch
    %11 = sbr.rel (0) target = $region9
  $region8: #{seq2seq_forward.21} parent=0 // pred_region
    _
  $region9: #{seq2seq_forward.21} parent=0 // pred_fallthru
    _
  // Predicated region
  $region10: #{seq2seq_forward.21} parent=0 // pred_check
    _
  $region11: #{seq2seq_forward.21} parent=0 // pred_check_branch
    %13 = sbr.rel (0) target = $region13
  $region12: #{seq2seq_forward.21} parent=0 // pred_region
    _
  $region13: #{seq2seq_forward.21} parent=0 // pred_fallthru
    _
  %v15 = vld [vmem:[%s0] sm:$0xff]
  %v16 = vld [vmem:[%s0 + $0x8] sm:$0xff]
  %v17 = vld [vmem:[%s1] sm:$0xff]
  %v18 = vld [vmem:[%s1 + $0x8] sm:$0xff]
  %v19 = vld [vmem:[%s1 + $0x10] sm:$0xff]
  %v20 = vld [vmem:[%s1 + $0x18] sm:$0xff]
  %v21 = vpack.c.bf16 %v16, %v15
  %v22 = vpack.c.bf16 %v18, %v17
  %v23 = vpack.c.bf16 %v20, %v19
  %v24 = vld [vmem:[%s2] sm:$0x1]
  %v26 = vperm.slane %v24, 0
  %vm28 = vcmask 261120
  %v30 = vsel %vm28, %v21, 0
  %32 = vmatpush.bf16.msra.mxu0 0
  %33 = vmatpush.bf16.msra.mxu0 0
  %34 = vmatpush.bf16.msra.mxu0 0
  %35 = vmatpush.bf16.msra.mxu0 0
  %36 = vmatpush.bf16.msra.mxu0 0
  %37 = vmatpush.bf16.msra.mxu0 0
  %38 = vmatpush.bf16.msra.mxu0 %v23
  %39 = vmatpush.bf16.msra.mxu0 %v22
  %40 = vmatmul.bf16.gmra.mxu0 %v30
  %v41 = vpop.f32.mrf.mxu0
  %v42 = vadd.f32 %v26, %v41
  %v43 = vpop.f32.mrf.mxu0
  %v44 = vadd.f32 %v26, %v43
  %45 = vdwg.mxu0
  %vm46 = vcmask 490496
  %47 = vst.msk [vmem:[%s3] sm:$0xff] %vm46, %v42
  %48 = vst.msk [vmem:[%s3 + $0x8] sm:$0xff] %vm46, %v44
  // Predicated region
  $region14: #{seq2seq_forward.21} parent=0 // pred_check
    _
  $region15: #{seq2seq_forward.21} parent=0 // pred_check_branch
    %50 = sbr.rel (0) target = $region17
  $region16: #{seq2seq_forward.21} parent=0 // pred_region
    _
  $region17: #{seq2seq_forward.21} parent=0 // pred_fallthru
    _
  // Predicated region
  $region18: #{seq2seq_forward.21} parent=0 // pred_check
    _
  $region19: #{seq2seq_forward.21} parent=0 // pred_check_branch
    %52 = sbr.rel (0) target = $region21
  $region20: #{seq2seq_forward.21} parent=0 // pred_region
    _
  $region21: #{seq2seq_forward.21} parent=0 // pred_fallthru
    _

// kernel: seq2seq_forward.12
$region0: #{seq2seq_forward.12}
  #allocation0 [shape = 'u32[]', space=smem, size = 0x4, offset = 0x4, fixed_abs, tag = 'smem constant byte address 0x4 - core index']
  #allocation1 [shape = 'u32[72,128]{1,0:T(1,128)}', space=vmem, size = 0x9000, scoped, tag = 'internal scratch']
  %s0 = inlined_call_operand.vmem [shape: f32[16,32], index: 0, kind: input, shape index: {}]
  %s1 = inlined_call_operand.vmem [shape: f32[32,64], index: 1, kind: input, shape index: {}]
  %s2 = inlined_call_operand.vmem [shape: f32[1,64], index: 2, kind: input, shape index: {}]
  %s3 = inlined_call_operand.vmem [shape: f32[64,32], index: 3, kind: input, shape index: {}]
  %s4 = inlined_call_operand.vmem [shape: f32[1,32], index: 4, kind: input, shape index: {}]
  %s5 = inlined_call_operand.vmem [shape: f32[1,32], index: 5, kind: input, shape index: {}]
  %s6 = inlined_call_operand.vmem [shape: f32[1,32], index: 6, kind: input, shape index: {}]
  %s7 = inlined_call_operand.vmem [shape: f32[16,32], index: 7, kind: output, shape index: {}]
  %s8 = sld [smem:[#allocation0]]
  $region38: #{seq2seq_forward.12} parent=0
    _
  %s10 = ssub.s32 1, %s8
  %s11 = scalar_select 0, %s10, %s8
  // Predicated region
  $region2: #{seq2seq_forward.12} parent=0 // pred_check
    _
  $region3: #{seq2seq_forward.12} parent=0 // pred_check_branch
    %13 = sbr.rel (0) target = $region5
  $region4: #{seq2seq_forward.12} parent=0 // pred_region
    _
  $region5: #{seq2seq_forward.12} parent=0 // pred_fallthru
    _
  // Predicated region
  $region6: #{seq2seq_forward.12} parent=0 // pred_check
    _
  $region7: #{seq2seq_forward.12} parent=0 // pred_check_branch
    %15 = sbr.rel (0) target = $region9
  $region8: #{seq2seq_forward.12} parent=0 // pred_region
    _
  $region9: #{seq2seq_forward.12} parent=0 // pred_fallthru
    _
  // Predicated region
  $region10: #{seq2seq_forward.12} parent=0 // pred_check
    _
  $region11: #{seq2seq_forward.12} parent=0 // pred_check_branch
    %17 = sbr.rel (0) target = $region13
  $region12: #{seq2seq_forward.12} parent=0 // pred_region
    _
  $region13: #{seq2seq_forward.12} parent=0 // pred_fallthru
    _
  // Predicated region
  $region14: #{seq2seq_forward.12} parent=0 // pred_check
    _
  $region15: #{seq2seq_forward.12} parent=0 // pred_check_branch
    %19 = sbr.rel (0) target = $region17
  $region16: #{seq2seq_forward.12} parent=0 // pred_region
    _
  $region17: #{seq2seq_forward.12} parent=0 // pred_fallthru
    _
  // Predicated region
  $region18: #{seq2seq_forward.12} parent=0 // pred_check
    _
  $region19: #{seq2seq_forward.12} parent=0 // pred_check_branch
    %21 = sbr.rel (0) target = $region21
  $region20: #{seq2seq_forward.12} parent=0 // pred_region
    _
  $region21: #{seq2seq_forward.12} parent=0 // pred_fallthru
    _
  // Predicated region
  $region22: #{seq2seq_forward.12} parent=0 // pred_check
    _
  $region23: #{seq2seq_forward.12} parent=0 // pred_check_branch
    %23 = sbr.rel (0) target = $region25
  $region24: #{seq2seq_forward.12} parent=0 // pred_region
    _
  $region25: #{seq2seq_forward.12} parent=0 // pred_fallthru
    _
  // Predicated region
  $region26: #{seq2seq_forward.12} parent=0 // pred_check
    _
  $region27: #{seq2seq_forward.12} parent=0 // pred_check_branch
    %25 = sbr.rel (0) target = $region29
  $region28: #{seq2seq_forward.12} parent=0 // pred_region
    _
  $region29: #{seq2seq_forward.12} parent=0 // pred_fallthru
    _
  %v27 = vld [vmem:[%s0] sm:$0xff]
  %v28 = vld [vmem:[%s0 + $0x8] sm:$0xff]
  %v29 = vld [vmem:[%s1] sm:$0xff]
  %v30 = vld [vmem:[%s1 + $0x8] sm:$0xff]
  %v31 = vld [vmem:[%s1 + $0x10] sm:$0xff]
  %v32 = vld [vmem:[%s1 + $0x18] sm:$0xff]
  %v33 = vpack.c.bf16 %v28, %v27
  %v34 = vpack.c.bf16 %v30, %v29
  %v35 = vpack.c.bf16 %v32, %v31
  %v36 = vld [vmem:[%s2] sm:$0x1]
  %v38 = vperm.slane %v36, 0
  %vm40 = vcmask 261120
  %v42 = vsel %vm40, %v33, 0
  %44 = vmatpush.bf16.msra.mxu0 0
  %45 = vmatpush.bf16.msra.mxu0 0
  %46 = vmatpush.bf16.msra.mxu0 0
  %47 = vmatpush.bf16.msra.mxu0 0
  %48 = vmatpush.bf16.msra.mxu0 0
  %49 = vmatpush.bf16.msra.mxu0 0
  %50 = vmatpush.bf16.msra.mxu0 %v35
  %51 = vmatpush.bf16.msra.mxu0 %v34
  %52 = vmatmul.bf16.gmra.mxu0 %v42
  %v53 = vpop.f32.mrf.mxu0
  %v54 = vadd.f32 %v38, %v53
  %v55 = vpop.f32.mrf.mxu0
  %v56 = vadd.f32 %v38, %v55
  %57 = vdwg.mxu0
  %v58 = vmax.f32 %v54, 0.0
  %v59 = vmax.f32 %v56, 0.0
  %v60 = vld [vmem:[%s3] sm:$0xff]
  %v61 = vld [vmem:[%s3 + $0x8] sm:$0xff]
  %v62 = vld [vmem:[%s3 + $0x10] sm:$0xff]
  %v63 = vld [vmem:[%s3 + $0x18] sm:$0xff]
  %v64 = vld [vmem:[%s3 + $0x20] sm:$0xff]
  %v65 = vld [vmem:[%s3 + $0x28] sm:$0xff]
  %v66 = vld [vmem:[%s3 + $0x30] sm:$0xff]
  %v67 = vld [vmem:[%s3 + $0x38] sm:$0xff]
  %v68 = vpack.c.bf16 %v59, %v58
  %v69 = vpack.c.bf16 %v61, %v60
  %v70 = vpack.c.bf16 %v63, %v62
  %v71 = vpack.c.bf16 %v65, %v64
  %v72 = vpack.c.bf16 %v67, %v66
  %v73 = vld [vmem:[%s4] sm:$0x1]
  %v75 = vperm.slane %v73, 0
  %vm77 = vcmask 523264
  %v79 = vsel %vm77, %v68, 0
  %81 = vmatpush.bf16.msra.mxu0 0
  %82 = vmatpush.bf16.msra.mxu0 0
  %83 = vmatpush.bf16.msra.mxu0 0
  %84 = vmatpush.bf16.msra.mxu0 0
  %85 = vmatpush.bf16.msra.mxu0 %v72
  %86 = vmatpush.bf16.msra.mxu0 %v71
  %87 = vmatpush.bf16.msra.mxu0 %v70
  %88 = vmatpush.bf16.msra.mxu0 %v69
  %89 = vmatmul.bf16.gmra.mxu0 %v79
  %v90 = vpop.f32.mrf.mxu0
  %v91 = vadd.f32 %v75, %v90
  %v92 = vpop.f32.mrf.mxu0
  %v93 = vadd.f32 %v75, %v92
  %94 = vdwg.mxu0
  %v95 = vld [vmem:[%s5] sm:$0x1]
  %v96 = vld [vmem:[%s6] sm:$0x1]
  %v97 = vadd.f32 %v27, %v91
  %v98 = vadd.f32 %v28, %v93
  %v99 = vsel %vm40, %v97, 0.0
  %100 = vadd.xlane.f32.xlu0 %v99
  %v101 = vpop.xlane.xlu0 %100
  %v102 = vsel %vm40, %v98, 0.0
  %103 = vadd.xlane.f32.xlu0 %v102
  %v104 = vpop.xlane.xlu0 %103
  %v105 = vrcp.pop 32.0
  %v106 = vmul.f32 32.0, %v105
  %v107 = vsub.f32 1.0, %v106
  %v108 = vmul.f32 %v105, %v107
  %v109 = vadd.f32 %v105, %v108
  %vm110 = vweird.f32 %v105
  %v111 = vsel %vm110, %v105, %v109
  %v112 = vmul.f32 %v101, %v111
  %v113 = vmul.f32 %v104, %v111
  %v114 = vmul.f32 %v97, %v97
  %v115 = vmul.f32 %v98, %v98
  %v116 = vsel %vm40, %v114, 0.0
  %117 = vadd.xlane.f32.xlu0 %v116
  %v118 = vpop.xlane.xlu0 %117
  %v119 = vsel %vm40, %v115, 0.0
  %120 = vadd.xlane.f32.xlu0 %v119
  %v121 = vpop.xlane.xlu0 %120
  %v122 = vmul.f32 %v118, %v111
  %v123 = vmul.f32 %v121, %v111
  %v124 = vmul.f32 %v112, %v112
  %v125 = vmul.f32 %v113, %v113
  %v126 = vsub.f32 %v122, %v124
  %v127 = vsub.f32 %v123, %v125
  %v128 = vsub.f32 %v97, %v112
  %v129 = vsub.f32 %v98, %v113
  %v130 = vadd.f32 %v126, 1e-05
  %v131 = vadd.f32 %v127, 1e-05
  %v132 = vrsqrt.pop %v130
  %v133 = vmul.f32 %v132, %v130
  %v134 = vmul.f32 %v133, %v132
  %v135 = vmul.f32 0.5, %v134
  %v136 = vsub.f32 1.5, %v135
  %v137 = vmul.f32 %v132, %v136
  %vm138 = vweird.f32 %v130
  %vm139 = vweird.f32 %v132
  %vm140 = vmor %vm138, %vm139
  %v141 = vsel %vm140, %v132, %v137
  %v142 = vrsqrt.pop %v131
  %v143 = vmul.f32 %v142, %v131
  %v144 = vmul.f32 %v143, %v142
  %v145 = vmul.f32 0.5, %v144
  %v146 = vsub.f32 1.5, %v145
  %v147 = vmul.f32 %v142, %v146
  %vm148 = vweird.f32 %v131
  %vm149 = vweird.f32 %v142
  %vm150 = vmor %vm148, %vm149
  %v151 = vsel %vm150, %v142, %v147
  %v152 = vmul.f32 %v128, %v141
  %v153 = vmul.f32 %v129, %v151
  %v155 = vperm.slane %v95, 0
  %v157 = vmul.f32 %v152, %v155
  %v158 = vmul.f32 %v153, %v155
  %v160 = vperm.slane %v96, 0
  %v162 = vadd.f32 %v157, %v160
  %v163 = vadd.f32 %v158, %v160
  %164 = vst.msk [vmem:[%s7] sm:$0xff] %vm40, %v162
  %165 = vst.msk [vmem:[%s7 + $0x8] sm:$0xff] %vm40, %v163
  // Predicated region
  $region30: #{seq2seq_forward.12} parent=0 // pred_check
    _
  $region31: #{seq2seq_forward.12} parent=0 // pred_check_branch
    %167 = sbr.rel (0) target = $region33
  $region32: #{seq2seq_forward.12} parent=0 // pred_region
    _
  $region33: #{seq2seq_forward.12} parent=0 // pred_fallthru
    _
  // Predicated region
  $region34: #{seq2seq_forward.12} parent=0 // pred_check
    _
  $region35: #{seq2seq_forward.12} parent=0 // pred_check_branch
    %169 = sbr.rel (0) target = $region37
  $region36: #{seq2seq_forward.12} parent=0 // pred_region
    _
  $region37: #{seq2seq_forward.12} parent=0 // pred_fallthru
    _

// kernel: seq2seq_forward.11
$region0: #{seq2seq_forward.11}
  #allocation0 [shape = 'u32[]', space=smem, size = 0x4, offset = 0x4, fixed_abs, tag = 'smem constant byte address 0x4 - core index']
  #allocation1 [shape = 'u32[72,128]{1,0:T(1,128)}', space=vmem, size = 0x9000, scoped, tag = 'internal scratch']
  %s0 = inlined_call_operand.vmem [shape: f32[2,8,32], index: 0, kind: input, shape index: {}, may-alias: {0,1}]
  %s1 = inlined_call_operand.vmem [shape: f32[2,8,32], index: 1, kind: input, shape index: {}, may-alias: {0,1}]
  %s2 = inlined_call_operand.vmem [shape: f32[4,32,8], index: 2, kind: input, shape index: {}]
  %s3 = inlined_call_operand.vmem [shape: f32[4,1,8], index: 3, kind: input, shape index: {}]
  %s4 = inlined_call_operand.vmem [shape: f32[4,32,8], index: 4, kind: input, shape index: {}]
  %s5 = inlined_call_operand.vmem [shape: f32[4,1,8], index: 5, kind: input, shape index: {}]
  %s6 = inlined_call_operand.vmem [shape: f32[4,32,8], index: 6, kind: input, shape index: {}]
  %s7 = inlined_call_operand.vmem [shape: f32[4,1,8], index: 7, kind: input, shape index: {}]
  %s8 = inlined_call_operand.vmem [shape: f32[4,8,32], index: 8, kind: input, shape index: {}]
  %s9 = inlined_call_operand.vmem [shape: f32[1,32], index: 9, kind: input, shape index: {}]
  %s10 = inlined_call_operand.vmem [shape: f32[1,32], index: 10, kind: input, shape index: {}]
  %s11 = inlined_call_operand.vmem [shape: f32[1,32], index: 11, kind: input, shape index: {}]
  %s12 = inlined_call_operand.vmem [shape: f32[2,8,32], index: 12, kind: output, shape index: {}]
  %s13 = sld [smem:[#allocation0]]
  $region81: #{seq2seq_forward.11} parent=0
    _
  %s15 = ssub.s32 1, %s13
  %s16 = scalar_select 0, %s15, %s13
  loop: start=0, step=1, limit=4
  $region2: #{seq2seq_forward.11} parent=0 // loop_pre_header
    _
  $region3: #{seq2seq_forward.11} parent=0 // loop_header
    %s18 = sphi 0, %s22
    %p19 = scmp.ge.s32.totalorder %s18, 4
    %s28 = sphi 0, %s30
    %s31 = sphi 0, %s28
    %s32 = sphi 0, %s31
    %s48 = sphi 0, %s32
    %s54 = sphi 0, %s56
    %s57 = sphi 0, %s54
    %s58 = sphi 0, %s57
    %s74 = sphi 0, %s58
    %s78 = sphi 0, %s78
    %s80 = sphi 0, %s78
    %s81 = sphi 0, %s80
    %s95 = sphi 0, %s81
    %s99 = sphi 0, %s99
    %s101 = sphi 0, %s99
    %s102 = sphi 0, %s101
    %s116 = sphi 0, %s102
    %s120 = sphi 0, %s120
    %s122 = sphi 0, %s120
    %s123 = sphi 0, %s122
    %s137 = sphi 0, %s123
    %s141 = sphi 0, %s141
    %s143 = sphi 0, %s141
    %s144 = sphi 0, %s143
    %s158 = sphi 0, %s144
    %s162 = sphi 0, %s162
    %s164 = sphi 0, %s162
    %s165 = sphi 0, %s164
    %s179 = sphi 0, %s165
    %s183 = sphi 0, %s183
    %s185 = sphi 0, %s183
    %s186 = sphi 0, %s185
    %s200 = sphi 0, %s186
    %s204 = sphi 0, %s204
    %s206 = sphi 0, %s204
    %s207 = sphi 0, %s206
    %s221 = sphi 0, %s207
    %s225 = sphi 0, %s225
    %s227 = sphi 0, %s225
    %s228 = sphi 0, %s227
    %s242 = sphi 0, %s228
    %s246 = sphi 0, %s246
    %s248 = sphi 0, %s246
    %s249 = sphi 0, %s248
    %s263 = sphi 0, %s249
    %s267 = sphi 0, %s267
    %s269 = sphi 0, %s267
    %s270 = sphi 0, %s269
    %s284 = sphi 0, %s270
    %s290 = sphi 0, %s292
    %s293 = sphi 0, %s290
    %s294 = sphi 0, %s293
    %s310 = sphi 0, %s294
  $region4: #{seq2seq_forward.11} parent=0 // loop_header_branch
    %21 = sbr.rel (%p19) target = $region8
  $region5: #{seq2seq_forward.11} parent=0 // loop_body
    %s23 = ssub.s32 %s18, 1
    %s24 = ssub.s32 %s18, 2
    %s25 = sadd.s32 %s18, 1
    %s26 = ssub.s32 %s18, %s25
    %p27 = scmp.eq.s32.totalorder %s26, 0
    %s29 = sadd.s32 %s28, 1
    %s30 = scalar_select %p27, %s28, %s29
    %p33 = pneg %p27
    %p34 = scmp.eq.s32.totalorder %s18, 1
    %p35 = por %p33, %p34
    %p36 = scmp.ne.s32.totalorder %s28, %s31
    %p37 = scmp.eq.s32.totalorder %s18, 0
    %p38 = por %p36, %p37
    %p39 = scmp.ne.s32.totalorder %s28, %s31
    %p40 = scmp.eq.s32.totalorder %s23, 1
    %p41 = por %p39, %p40
    %p42 = scmp.ne.s32.totalorder %s31, %s32
    %p43 = scmp.eq.s32.totalorder %s23, 0
    %p44 = por %p42, %p43
    %p45 = scmp.ne.s32.totalorder %s31, %s32
    %p46 = scmp.eq.s32.totalorder %s24, 1
    %p47 = por %p45, %p46
    %p49 = scmp.ne.s32.totalorder %s32, %s48
    %p50 = scmp.eq.s32.totalorder %s24, 0
    %p51 = por %p49, %p50
    %s52 = ssub.s32 %s18, %s25
    %p53 = scmp.eq.s32.totalorder %s52, 0
    %s55 = sadd.s32 %s54, 1
    %s56 = scalar_select %p53, %s54, %s55
    %p59 = pneg %p53
    %p60 = scmp.eq.s32.totalorder %s18, 1
    %p61 = por %p59, %p60
    %p62 = scmp.ne.s32.totalorder %s54, %s57
    %p63 = scmp.eq.s32.totalorder %s18, 0
    %p64 = por %p62, %p63
    %p65 = scmp.ne.s32.totalorder %s54, %s57
    %p66 = scmp.eq.s32.totalorder %s23, 1
    %p67 = por %p65, %p66
    %p68 = scmp.ne.s32.totalorder %s57, %s58
    %p69 = scmp.eq.s32.totalorder %s23, 0
    %p70 = por %p68, %p69
    %p71 = scmp.ne.s32.totalorder %s57, %s58
    %p72 = scmp.eq.s32.totalorder %s24, 1
    %p73 = por %p71, %p72
    %p75 = scmp.ne.s32.totalorder %s58, %s74
    %p76 = scmp.eq.s32.totalorder %s24, 0
    %p77 = por %p75, %p76
    %s79 = sadd.s32 %s78, 1
    %p82 = scmp.eq.s32.totalorder %s18, 1
    %p83 = scmp.ne.s32.totalorder %s78, %s80
    %p84 = scmp.eq.s32.totalorder %s18, 0
    %p85 = por %p83, %p84
    %p86 = scmp.ne.s32.totalorder %s78, %s80
    %p87 = scmp.eq.s32.totalorder %s23, 1
    %p88 = por %p86, %p87
    %p89 = scmp.ne.s32.totalorder %s80, %s81
    %p90 = scmp.eq.s32.totalorder %s23, 0
    %p91 = por %p89, %p90
    %p92 = scmp.ne.s32.totalorder %s80, %s81
    %p93 = scmp.eq.s32.totalorder %s24, 1
    %p94 = por %p92, %p93
    %p96 = scmp.ne.s32.totalorder %s81, %s95
    %p97 = scmp.eq.s32.totalorder %s24, 0
    %p98 = por %p96, %p97
    %s100 = sadd.s32 %s99, 1
    %p103 = scmp.eq.s32.totalorder %s18, 1
    %p104 = scmp.ne.s32.totalorder %s99, %s101
    %p105 = scmp.eq.s32.totalorder %s18, 0
    %p106 = por %p104, %p105
    %p107 = scmp.ne.s32.totalorder %s99, %s101
    %p108 = scmp.eq.s32.totalorder %s23, 1
    %p109 = por %p107, %p108
    %p110 = scmp.ne.s32.totalorder %s101, %s102
    %p111 = scmp.eq.s32.totalorder %s23, 0
    %p112 = por %p110, %p111
    %p113 = scmp.ne.s32.totalorder %s101, %s102
    %p114 = scmp.eq.s32.totalorder %s24, 1
    %p115 = por %p113, %p114
    %p117 = scmp.ne.s32.totalorder %s102, %s116
    %p118 = scmp.eq.s32.totalorder %s24, 0
    %p119 = por %p117, %p118
    %s121 = sadd.s32 %s120, 1
    %p124 = scmp.eq.s32.totalorder %s18, 1
    %p125 = scmp.ne.s32.totalorder %s120, %s122
    %p126 = scmp.eq.s32.totalorder %s18, 0
    %p127 = por %p125, %p126
    %p128 = scmp.ne.s32.totalorder %s120, %s122
    %p129 = scmp.eq.s32.totalorder %s23, 1
    %p130 = por %p128, %p129
    %p131 = scmp.ne.s32.totalorder %s122, %s123
    %p132 = scmp.eq.s32.totalorder %s23, 0
    %p133 = por %p131, %p132
    %p134 = scmp.ne.s32.totalorder %s122, %s123
    %p135 = scmp.eq.s32.totalorder %s24, 1
    %p136 = por %p134, %p135
    %p138 = scmp.ne.s32.totalorder %s123, %s137
    %p139 = scmp.eq.s32.totalorder %s24, 0
    %p140 = por %p138, %p139
    %s142 = sadd.s32 %s141, 1
    %p145 = scmp.eq.s32.totalorder %s18, 1
    %p146 = scmp.ne.s32.totalorder %s141, %s143
    %p147 = scmp.eq.s32.totalorder %s18, 0
    %p148 = por %p146, %p147
    %p149 = scmp.ne.s32.totalorder %s141, %s143
    %p150 = scmp.eq.s32.totalorder %s23, 1
    %p151 = por %p149, %p150
    %p152 = scmp.ne.s32.totalorder %s143, %s144
    %p153 = scmp.eq.s32.totalorder %s23, 0
    %p154 = por %p152, %p153
    %p155 = scmp.ne.s32.totalorder %s143, %s144
    %p156 = scmp.eq.s32.totalorder %s24, 1
    %p157 = por %p155, %p156
    %p159 = scmp.ne.s32.totalorder %s144, %s158
    %p160 = scmp.eq.s32.totalorder %s24, 0
    %p161 = por %p159, %p160
    %s163 = sadd.s32 %s162, 1
    %p166 = scmp.eq.s32.totalorder %s18, 1
    %p167 = scmp.ne.s32.totalorder %s162, %s164
    %p168 = scmp.eq.s32.totalorder %s18, 0
    %p169 = por %p167, %p168
    %p170 = scmp.ne.s32.totalorder %s162, %s164
    %p171 = scmp.eq.s32.totalorder %s23, 1
    %p172 = por %p170, %p171
    %p173 = scmp.ne.s32.totalorder %s164, %s165
    %p174 = scmp.eq.s32.totalorder %s23, 0
    %p175 = por %p173, %p174
    %p176 = scmp.ne.s32.totalorder %s164, %s165
    %p177 = scmp.eq.s32.totalorder %s24, 1
    %p178 = por %p176, %p177
    %p180 = scmp.ne.s32.totalorder %s165, %s179
    %p181 = scmp.eq.s32.totalorder %s24, 0
    %p182 = por %p180, %p181
    %s184 = sadd.s32 %s183, 1
    %p187 = scmp.eq.s32.totalorder %s18, 1
    %p188 = scmp.ne.s32.totalorder %s183, %s185
    %p189 = scmp.eq.s32.totalorder %s18, 0
    %p190 = por %p188, %p189
    %p191 = scmp.ne.s32.totalorder %s183, %s185
    %p192 = scmp.eq.s32.totalorder %s23, 1
    %p193 = por %p191, %p192
    %p194 = scmp.ne.s32.totalorder %s185, %s186
    %p195 = scmp.eq.s32.totalorder %s23, 0
    %p196 = por %p194, %p195
    %p197 = scmp.ne.s32.totalorder %s185, %s186
    %p198 = scmp.eq.s32.totalorder %s24, 1
    %p199 = por %p197, %p198
    %p201 = scmp.ne.s32.totalorder %s186, %s200
    %p202 = scmp.eq.s32.totalorder %s24, 0
    %p203 = por %p201, %p202
    %s205 = sadd.s32 %s204, 1
    %p208 = scmp.eq.s32.totalorder %s18, 1
    %p209 = scmp.ne.s32.totalorder %s204, %s206
    %p210 = scmp.eq.s32.totalorder %s18, 0
    %p211 = por %p209, %p210
    %p212 = scmp.ne.s32.totalorder %s204, %s206
    %p213 = scmp.eq.s32.totalorder %s23, 1
    %p214 = por %p212, %p213
    %p215 = scmp.ne.s32.totalorder %s206, %s207
    %p216 = scmp.eq.s32.totalorder %s23, 0
    %p217 = por %p215, %p216
    %p218 = scmp.ne.s32.totalorder %s206, %s207
    %p219 = scmp.eq.s32.totalorder %s24, 1
    %p220 = por %p218, %p219
    %p222 = scmp.ne.s32.totalorder %s207, %s221
    %p223 = scmp.eq.s32.totalorder %s24, 0
    %p224 = por %p222, %p223
    %s226 = sadd.s32 %s225, 1
    %p229 = scmp.eq.s32.totalorder %s18, 1
    %p230 = scmp.ne.s32.totalorder %s225, %s227
    %p231 = scmp.eq.s32.totalorder %s18, 0
    %p232 = por %p230, %p231
    %p233 = scmp.ne.s32.totalorder %s225, %s227
    %p234 = scmp.eq.s32.totalorder %s23, 1
    %p235 = por %p233, %p234
    %p236 = scmp.ne.s32.totalorder %s227, %s228
    %p237 = scmp.eq.s32.totalorder %s23, 0
    %p238 = por %p236, %p237
    %p239 = scmp.ne.s32.totalorder %s227, %s228
    %p240 = scmp.eq.s32.totalorder %s24, 1
    %p241 = por %p239, %p240
    %p243 = scmp.ne.s32.totalorder %s228, %s242
    %p244 = scmp.eq.s32.totalorder %s24, 0
    %p245 = por %p243, %p244
    %s247 = sadd.s32 %s246, 1
    %p250 = scmp.eq.s32.totalorder %s18, 1
    %p251 = scmp.ne.s32.totalorder %s246, %s248
    %p252 = scmp.eq.s32.totalorder %s18, 0
    %p253 = por %p251, %p252
    %p254 = scmp.ne.s32.totalorder %s246, %s248
    %p255 = scmp.eq.s32.totalorder %s23, 1
    %p256 = por %p254, %p255
    %p257 = scmp.ne.s32.totalorder %s248, %s249
    %p258 = scmp.eq.s32.totalorder %s23, 0
    %p259 = por %p257, %p258
    %p260 = scmp.ne.s32.totalorder %s248, %s249
    %p261 = scmp.eq.s32.totalorder %s24, 1
    %p262 = por %p260, %p261
    %p264 = scmp.ne.s32.totalorder %s249, %s263
    %p265 = scmp.eq.s32.totalorder %s24, 0
    %p266 = por %p264, %p265
    %s268 = sadd.s32 %s267, 1
    %p271 = scmp.eq.s32.totalorder %s18, 1
    %p272 = scmp.ne.s32.totalorder %s267, %s269
    %p273 = scmp.eq.s32.totalorder %s18, 0
    %p274 = por %p272, %p273
    %p275 = scmp.ne.s32.totalorder %s267, %s269
    %p276 = scmp.eq.s32.totalorder %s23, 1
    %p277 = por %p275, %p276
    %p278 = scmp.ne.s32.totalorder %s269, %s270
    %p279 = scmp.eq.s32.totalorder %s23, 0
    %p280 = por %p278, %p279
    %p281 = scmp.ne.s32.totalorder %s269, %s270
    %p282 = scmp.eq.s32.totalorder %s24, 1
    %p283 = por %p281, %p282
    %p285 = scmp.ne.s32.totalorder %s270, %s284
    %p286 = scmp.eq.s32.totalorder %s24, 0
    %p287 = por %p285, %p286
    %s288 = ssub.s32 %s18, %s25
    %p289 = scmp.eq.s32.totalorder %s288, 0
    %s291 = sadd.s32 %s290, 1
    %s292 = scalar_select %p289, %s290, %s291
    %p295 = pneg %p289
    %p296 = scmp.eq.s32.totalorder %s18, 1
    %p297 = por %p295, %p296
    %p298 = scmp.ne.s32.totalorder %s290, %s293
    %p299 = scmp.eq.s32.totalorder %s18, 0
    %p300 = por %p298, %p299
    %p301 = scmp.ne.s32.totalorder %s290, %s293
    %p302 = scmp.eq.s32.totalorder %s23, 1
    %p303 = por %p301, %p302
    %p304 = scmp.ne.s32.totalorder %s293, %s294
    %p305 = scmp.eq.s32.totalorder %s23, 0
    %p306 = por %p304, %p305
    %p307 = scmp.ne.s32.totalorder %s293, %s294
    %p308 = scmp.eq.s32.totalorder %s24, 1
    %p309 = por %p307, %p308
    %p311 = scmp.ne.s32.totalorder %s294, %s310
    %p312 = scmp.eq.s32.totalorder %s24, 0
    %p313 = por %p311, %p312
    %p314 = scmp.le.s32.totalorder 1, %s18
    %p315 = scmp.lt.s32.totalorder %s18, 3
    %p316 = pnand %p314, %p315
    %p317 = pneg %p316
    // Predicated region
    $region9: #{seq2seq_forward.11} parent=5 // pred_check
      _
    $region10: #{seq2seq_forward.11} parent=5 // pred_check_branch
      %319 = sbr.rel (%p316) target = $region12
    $region11: #{seq2seq_forward.11} parent=5 // pred_region
      %s320 = ssub.s32 %s18, 1
      // Predicated region
      $region13: #{seq2seq_forward.11} parent=11 // pred_check
        %p321 = pneg %p91
      $region14: #{seq2seq_forward.11} parent=11 // pred_check_branch
        %323 = sbr.rel (%p321) target = $region16
      $region15: #{seq2seq_forward.11} parent=11 // pred_region
        _
      $region16: #{seq2seq_forward.11} parent=11 // pred_fallthru
        _
      // Predicated region
      $region17: #{seq2seq_forward.11} parent=11 // pred_check
        %p324 = pneg %p112
      $region18: #{seq2seq_forward.11} parent=11 // pred_check_branch
        %326 = sbr.rel (%p324) target = $region20
      $region19: #{seq2seq_forward.11} parent=11 // pred_region
        _
      $region20: #{seq2seq_forward.11} parent=11 // pred_fallthru
        _
      // Predicated region
      $region21: #{seq2seq_forward.11} parent=11 // pred_check
        %p327 = pneg %p133
      $region22: #{seq2seq_forward.11} parent=11 // pred_check_branch
        %329 = sbr.rel (%p327) target = $region24
      $region23: #{seq2seq_forward.11} parent=11 // pred_region
        _
      $region24: #{seq2seq_forward.11} parent=11 // pred_fallthru
        _
      // Predicated region
      $region25: #{seq2seq_forward.11} parent=11 // pred_check
        %p330 = pneg %p154
      $region26: #{seq2seq_forward.11} parent=11 // pred_check_branch
        %332 = sbr.rel (%p330) target = $region28
      $region27: #{seq2seq_forward.11} parent=11 // pred_region
        _
      $region28: #{seq2seq_forward.11} parent=11 // pred_fallthru
        _
      // Predicated region
      $region29: #{seq2seq_forward.11} parent=11 // pred_check
        %p333 = pneg %p175
      $region30: #{seq2seq_forward.11} parent=11 // pred_check_branch
        %335 = sbr.rel (%p333) target = $region32
      $region31: #{seq2seq_forward.11} parent=11 // pred_region
        _
      $region32: #{seq2seq_forward.11} parent=11 // pred_fallthru
        _
      // Predicated region
      $region33: #{seq2seq_forward.11} parent=11 // pred_check
        %p336 = pneg %p196
      $region34: #{seq2seq_forward.11} parent=11 // pred_check_branch
        %338 = sbr.rel (%p336) target = $region36
      $region35: #{seq2seq_forward.11} parent=11 // pred_region
        _
      $region36: #{seq2seq_forward.11} parent=11 // pred_fallthru
        _
      // Predicated region
      $region37: #{seq2seq_forward.11} parent=11 // pred_check
        %p339 = pneg %p217
      $region38: #{seq2seq_forward.11} parent=11 // pred_check_branch
        %341 = sbr.rel (%p339) target = $region40
      $region39: #{seq2seq_forward.11} parent=11 // pred_region
        _
      $region40: #{seq2seq_forward.11} parent=11 // pred_fallthru
        _
      // Predicated region
      $region41: #{seq2seq_forward.11} parent=11 // pred_check
        %p342 = pneg %p238
      $region42: #{seq2seq_forward.11} parent=11 // pred_check_branch
        %344 = sbr.rel (%p342) target = $region44
      $region43: #{seq2seq_forward.11} parent=11 // pred_region
        _
      $region44: #{seq2seq_forward.11} parent=11 // pred_fallthru
        _
      // Predicated region
      $region45: #{seq2seq_forward.11} parent=11 // pred_check
        %p345 = pneg %p259
      $region46: #{seq2seq_forward.11} parent=11 // pred_check_branch
        %347 = sbr.rel (%p345) target = $region48
      $region47: #{seq2seq_forward.11} parent=11 // pred_region
        _
      $region48: #{seq2seq_forward.11} parent=11 // pred_fallthru
        _
      // Predicated region
      $region49: #{seq2seq_forward.11} parent=11 // pred_check
        %p348 = pneg %p280
      $region50: #{seq2seq_forward.11} parent=11 // pred_check_branch
        %350 = sbr.rel (%p348) target = $region52
      $region51: #{seq2seq_forward.11} parent=11 // pred_region
        _
      $region52: #{seq2seq_forward.11} parent=11 // pred_fallthru
        _
    $region12: #{seq2seq_forward.11} parent=5 // pred_fallthru
      _
    %p351 = scmp.lt.s32.totalorder %s18, 2
    // Predicated region
    $region53: #{seq2seq_forward.11} parent=5 // pred_check
      %p352 = pneg %p351
    $region54: #{seq2seq_forward.11} parent=5 // pred_check_branch
      %354 = sbr.rel (%p352) target = $region56
    $region55: #{seq2seq_forward.11} parent=5 // pred_region
      // Predicated region
      $region57: #{seq2seq_forward.11} parent=55 // pred_check
        %p355 = pneg %p38
      $region58: #{seq2seq_forward.11} parent=55 // pred_check_branch
        %357 = sbr.rel (%p355) target = $region60
      $region59: #{seq2seq_forward.11} parent=55 // pred_region
        %p358 = scmp.lt.s32.totalorder %s18, 1
        %s359 = scalar_select %p358, %s18, 1
        %s360 = smul.addr %s359, 8
        %s361 = scalar_lea.vmem %s0, %s360
      $region60: #{seq2seq_forward.11} parent=55 // pred_fallthru
        _
      // Predicated region
      $region61: #{seq2seq_forward.11} parent=55 // pred_check
        %p362 = pneg %p64
      $region62: #{seq2seq_forward.11} parent=55 // pred_check_branch
        %364 = sbr.rel (%p362) target = $region64
      $region63: #{seq2seq_forward.11} parent=55 // pred_region
        %p365 = scmp.lt.s32.totalorder %s18, 1
        %s366 = scalar_select %p365, %s18, 1
        %s367 = smul.addr %s366, 8
        %s368 = scalar_lea.vmem %s1, %s367
      $region64: #{seq2seq_forward.11} parent=55 // pred_fallthru
        _
    $region56: #{seq2seq_forward.11} parent=5 // pred_fallthru
      _
    %p369 = scmp.le.s32.totalorder 1, %s18
    %p370 = scmp.lt.s32.totalorder %s18, 3
    %p371 = pnand %p369, %p370
    %p372 = pneg %p371
    // Predicated region
    $region65: #{seq2seq_forward.11} parent=5 // pred_check
      _
    $region66: #{seq2seq_forward.11} parent=5 // pred_check_branch
      %374 = sbr.rel (%p371) target = $region68
    $region67: #{seq2seq_forward.11} parent=5 // pred_region
      %s375 = ssub.s32 %s18, 1
      %p376 = scmp.lt.s32.totalorder %s23, 1
      %s377 = scalar_select %p376, %s23, 1
      %s378 = smul.addr %s377, 8
      %s379 = scalar_lea.vmem %s0, %s378
      %p380 = pneg %p44
      %p381 = pneg %p41
      %p382 = scmp.lt.s32.totalorder %s23, 1
      %s383 = scalar_select %p382, %s23, 1
      %s384 = smul.addr %s383, 8
      %s385 = scalar_lea.vmem %s1, %s384
      %p386 = pneg %p70
      %p387 = pneg %p67
      %p388 = pneg %p91
      %p389 = pneg %p88
      %p390 = pneg %p112
      %p391 = pneg %p109
      %p392 = pneg %p133
      %p393 = pneg %p130
      %p394 = pneg %p154
      %p395 = pneg %p151
      %p396 = pneg %p175
      %p397 = pneg %p172
      %p398 = pneg %p196
      %p399 = pneg %p193
      %p400 = pneg %p217
      %p401 = pneg %p214
      %p402 = pneg %p238
      %p403 = pneg %p235
      %p404 = pneg %p259
      %p405 = pneg %p256
      %p406 = pneg %p280
      %p407 = pneg %p277
      %p408 = pneg %p306
      %p409 = pneg %p303
      %p410 = scmp.lt.s32.totalorder %s23, 1
      %s411 = scalar_select %p410, %s23, 1
      %s412 = smul.addr %s411, 8
      %s413 = scalar_lea.vmem %s12, %s412
      %p414 = scmp.lt.s32.totalorder %s23, 1
      %s415 = scalar_select %p414, %s23, 1
      %s416 = smul.addr %s415, 8
      %s417 = scalar_lea.vmem %s0, %s416
      %p418 = scmp.lt.s32.totalorder %s23, 1
      %s419 = scalar_select %p418, %s23, 1
      %s420 = smul.addr %s419, 8
      %s421 = scalar_lea.vmem %s1, %s420
      %p422 = scmp.lt.s32.totalorder %s23, 1
      %s423 = scalar_select %p422, %s23, 1
      %s424 = smul.addr %s423, 8
      %s425 = scalar_lea.vmem %s12, %s424
      %v427 = vld [vmem:[%s417] sm:$0xff]
      %v428 = vld [vmem:[%s421] sm:$0xff]
      %v429 = vld [vmem:[%s2] sm:$0xff]
      %v430 = vld [vmem:[%s2 + $0x8] sm:$0xff]
      %v431 = vld [vmem:[%s2 + $0x10] sm:$0xff]
      %v432 = vld [vmem:[%s2 + $0x18] sm:$0xff]
      %v433 = vpack.c.bf16 %v427, %v427
      %v434 = vpack.c.bf16 %v430, %v429
      %v435 = vpack.c.bf16 %v432, %v431
      %v436 = vld [vmem:[%s3] sm:$0x1]
      %v438 = vperm.slane %v436, 0
      %vm440 = vcmask 261120
      %v442 = vsel %vm440, %v433, 0
      %444 = vmatpush.bf16.msra.mxu0 0
      %445 = vmatpush.bf16.msra.mxu0 0
      %446 = vmatpush.bf16.msra.mxu0 0
      %447 = vmatpush.bf16.msra.mxu0 0
      %448 = vmatpush.bf16.msra.mxu0 0
      %449 = vmatpush.bf16.msra.mxu0 0
      %450 = vmatpush.bf16.msra.mxu0 %v435
      %451 = vmatpush.bf16.msra.mxu0 %v434
      %452 = vmatmul.bf16.gmra.mxu0 %v442
      %v453 = vpop.f32.mrf.mxu0
      %v454 = vadd.f32 %v438, %v453
      %v455 = vpop.f32.mrf.mxu0
      %456 = vdwg.mxu0
      %v457 = vld [vmem:[%s4] sm:$0xff]
      %v458 = vld [vmem:[%s4 + $0x8] sm:$0xff]
      %v459 = vld [vmem:[%s4 + $0x10] sm:$0xff]
      %v460 = vld [vmem:[%s4 + $0x18] sm:$0xff]
      %v461 = vpack.c.bf16 %v428, %v428
      %v462 = vpack.c.bf16 %v458, %v457
      %v463 = vpack.c.bf16 %v460, %v459
      %v464 = vld [vmem:[%s5] sm:$0x1]
      %v466 = vperm.slane %v464, 0
      %v469 = vsel %vm440, %v461, 0
      %471 = vmatpush.bf16.msra.mxu0 0
      %472 = vmatpush.bf16.msra.mxu0 0
      %473 = vmatpush.bf16.msra.mxu0 0
      %474 = vmatpush.bf16.msra.mxu0 0
      %475 = vmatpush.bf16.msra.mxu0 0
      %476 = vmatpush.bf16.msra.mxu0 0
      %477 = vmatpush.bf16.msra.mxu0 %v463
      %478 = vmatpush.bf16.msra.mxu0 %v462
      %479 = vmatmul.bf16.gmra.mxu0 %v469
      %v480 = vpop.f32.mrf.mxu0
      %v481 = vadd.f32 %v466, %v480
      %v482 = vpop.f32.mrf.mxu0
      %483 = vdwg.mxu0
      %v484 = vld [vmem:[%s6] sm:$0xff]
      %v485 = vld [vmem:[%s6 + $0x8] sm:$0xff]
      %v486 = vld [vmem:[%s6 + $0x10] sm:$0xff]
      %v487 = vld [vmem:[%s6 + $0x18] sm:$0xff]
      %v488 = vpack.c.bf16 %v485, %v484
      %v489 = vpack.c.bf16 %v487, %v486
      %v490 = vld [vmem:[%s7] sm:$0x1]
      %v492 = vperm.slane %v490, 0
      %494 = vmatpush.bf16.msra.mxu0 0
      %495 = vmatpush.bf16.msra.mxu0 0
      %496 = vmatpush.bf16.msra.mxu0 0
      %497 = vmatpush.bf16.msra.mxu0 0
      %498 = vmatpush.bf16.msra.mxu0 0
      %499 = vmatpush.bf16.msra.mxu0 0
      %500 = vmatpush.bf16.msra.mxu0 %v489
      %501 = vmatpush.bf16.msra.mxu0 %v488
      %502 = vmatmul.bf16.gmra.mxu0 %v469
      %v503 = vpop.f32.mrf.mxu0
      %v504 = vadd.f32 %v492, %v503
      %v505 = vpop.f32.mrf.mxu0
      %506 = vdwg.mxu0
      %v507 = vmul.f32 %v454, 0.35355338
      %v508 = vpack.c.bf16 %v507, %v507
      %v509 = vpack.c.bf16 %v481, %v481
      %vm510 = vcmask 64512
      %v512 = vsel %vm510, %v508, 0
      %v515 = vsel %vm510, %v509, 0
      %517 = vmatpush.bf16.xpose.msra.mxu0 0
      %518 = vmatpush.bf16.xpose.msra.mxu0 0
      %519 = vmatpush.bf16.xpose.msra.mxu0 0
      %520 = vmatpush.bf16.xpose.msra.mxu0 0
      %521 = vmatpush.bf16.xpose.msra.mxu0 0
      %522 = vmatpush.bf16.xpose.msra.mxu0 0
      %523 = vmatpush.bf16.xpose.msra.mxu0 0
      %524 = vmatpush.bf16.xpose.msra.mxu0 %v515
      %525 = vmatmul.bf16.gmra.mxu0 %v512
      %v526 = vpop.f32.mrf.mxu0
      %v527 = vadd.f32 0.0, %v526
      %v528 = vpop.f32.mrf.mxu0
      %529 = vdwg.mxu0
      %v530 = vsel %vm510, %v527, -inf
      %531 = vmax.xlane.f32.xlu0 %v530
      %v532 = vpop.xlane.xlu0 %531
      %v533 = vsub.f32 %v527, %v532
      %v534 = vmul.f32 %v533, 1.442695
      %v535 = vpow.pop %v534
      %v536 = vsel %vm510, %v535, 0.0
      %537 = vadd.xlane.f32.xlu0 %v536
      %v538 = vpop.xlane.xlu0 %537
      %v539 = vrcp.pop %v538
      %v540 = vmul.f32 %v535, %v539
      %v541 = vpack.c.bf16 %v540, %v540
      %v542 = vpack.c.bf16 %v504, %v504
      %v544 = vsel %vm510, %v541, 0
      %vm546 = vcmask 1043456
      %v548 = vsel %vm546, %v542, 0
      %550 = vmatpush.bf16.msra.mxu0 0
      %551 = vmatpush.bf16.msra.mxu0 0
      %552 = vmatpush.bf16.msra.mxu0 0
      %553 = vmatpush.bf16.msra.mxu0 0
      %554 = vmatpush.bf16.msra.mxu0 0
      %555 = vmatpush.bf16.msra.mxu0 0
      %556 = vmatpush.bf16.msra.mxu0 0
      %557 = vmatpush.bf16.msra.mxu0 %v548
      %558 = vmatmul.bf16.gmra.mxu0 %v544
      %v559 = vpop.f32.mrf.mxu0
      %v560 = vadd.f32 0.0, %v559
      %v561 = vpop.f32.mrf.mxu0
      %562 = vdwg.mxu0
      %v563 = vld [vmem:[%s8] sm:$0xff]
      %v564 = vpack.c.bf16 %v560, %v560
      %v565 = vpack.c.bf16 %v563, %v563
      %s566 = scalar_lea.vmem %s2, 32
      %v567 = vld [vmem:[%s566] sm:$0xff]
      %v568 = vld [vmem:[%s566 + $0x8] sm:$0xff]
      %v569 = vld [vmem:[%s566 + $0x10] sm:$0xff]
      %v570 = vld [vmem:[%s566 + $0x18] sm:$0xff]
      %v571 = vpack.c.bf16 %v568, %v567
      %v572 = vpack.c.bf16 %v570, %v569
      %s573 = scalar_lea.vmem %s3, 1
      %v574 = vld [vmem:[%s573] sm:$0x1]
      %v576 = vperm.slane %v574, 0
      %578 = vmatpush.bf16.msra.mxu0 0
      %579 = vmatpush.bf16.msra.mxu0 0
      %580 = vmatpush.bf16.msra.mxu0 0
      %581 = vmatpush.bf16.msra.mxu0 0
      %582 = vmatpush.bf16.msra.mxu0 0
      %583 = vmatpush.bf16.msra.mxu0 0
      %584 = vmatpush.bf16.msra.mxu0 %v572
      %585 = vmatpush.bf16.msra.mxu0 %v571
      %586 = vmatmul.bf16.gmra.mxu0 %v442
      %v587 = vpop.f32.mrf.mxu0
      %v588 = vadd.f32 %v576, %v587
      %v589 = vpop.f32.mrf.mxu0
      %590 = vdwg.mxu0
      %s591 = scalar_lea.vmem %s4, 32
      %v592 = vld [vmem:[%s591] sm:$0xff]
      %v593 = vld [vmem:[%s591 + $0x8] sm:$0xff]
      %v594 = vld [vmem:[%s591 + $0x10] sm:$0xff]
      %v595 = vld [vmem:[%s591 + $0x18] sm:$0xff]
      %v596 = vpack.c.bf16 %v593, %v592
      %v597 = vpack.c.bf16 %v595, %v594
      %s598 = scalar_lea.vmem %s5, 1
      %v599 = vld [vmem:[%s598] sm:$0x1]
      %v601 = vperm.slane %v599, 0
      %603 = vmatpush.bf16.msra.mxu0 0
      %604 = vmatpush.bf16.msra.mxu0 0
      %605 = vmatpush.bf16.msra.mxu0 0
      %606 = vmatpush.bf16.msra.mxu0 0
      %607 = vmatpush.bf16.msra.mxu0 0
      %608 = vmatpush.bf16.msra.mxu0 0
      %609 = vmatpush.bf16.msra.mxu0 %v597
      %610 = vmatpush.bf16.msra.mxu0 %v596
      %611 = vmatmul.bf16.gmra.mxu0 %v469
      %v612 = vpop.f32.mrf.mxu0
      %v613 = vadd.f32 %v601, %v612
      %v614 = vpop.f32.mrf.mxu0
      %615 = vdwg.mxu0
      %s616 = scalar_lea.vmem %s6, 32
      %v617 = vld [vmem:[%s616] sm:$0xff]
      %v618 = vld [vmem:[%s616 + $0x8] sm:$0xff]
      %v619 = vld [vmem:[%s616 + $0x10] sm:$0xff]
      %v620 = vld [vmem:[%s616 + $0x18] sm:$0xff]
      %v621 = vpack.c.bf16 %v618, %v617
      %v622 = vpack.c.bf16 %v620, %v619
      %s623 = scalar_lea.vmem %s7, 1
      %v624 = vld [vmem:[%s623] sm:$0x1]
      %v626 = vperm.slane %v624, 0
      %628 = vmatpush.bf16.msra.mxu0 0
      %629 = vmatpush.bf16.msra.mxu0 0
      %630 = vmatpush.bf16.msra.mxu0 0
      %631 = vmatpush.bf16.msra.mxu0 0
      %632 = vmatpush.bf16.msra.mxu0 0
      %633 = vmatpush.bf16.msra.mxu0 0
      %634 = vmatpush.bf16.msra.mxu0 %v622
      %635 = vmatpush.bf16.msra.mxu0 %v621
      %636 = vmatmul.bf16.gmra.mxu0 %v469
      %v637 = vpop.f32.mrf.mxu0
      %v638 = vadd.f32 %v626, %v637
      %v639 = vpop.f32.mrf.mxu0
      %640 = vdwg.mxu0
      %v641 = vmul.f32 %v588, 0.35355338
      %v642 = vpack.c.bf16 %v641, %v641
      %v643 = vpack.c.bf16 %v613, %v613
      %v645 = vsel %vm510, %v642, 0
      %v648 = vsel %vm510, %v643, 0
      %650 = vmatpush.bf16.xpose.msra.mxu0 0
      %651 = vmatpush.bf16.xpose.msra.mxu0 0
      %652 = vmatpush.bf16.xpose.msra.mxu0 0
      %653 = vmatpush.bf16.xpose.msra.mxu0 0
      %654 = vmatpush.bf16.xpose.msra.mxu0 0
      %655 = vmatpush.bf16.xpose.msra.mxu0 0
      %656 = vmatpush.bf16.xpose.msra.mxu0 0
      %657 = vmatpush.bf16.xpose.msra.mxu0 %v648
      %658 = vmatmul.bf16.gmra.mxu0 %v645
      %v659 = vpop.f32.mrf.mxu0
      %v660 = vadd.f32 0.0, %v659
      %v661 = vpop.f32.mrf.mxu0
      %662 = vdwg.mxu0
      %v663 = vsel %vm510, %v660, -inf
      %664 = vmax.xlane.f32.xlu0 %v663
      %v665 = vpop.xlane.xlu0 %664
      %v666 = vsub.f32 %v660, %v665
      %v667 = vmul.f32 %v666, 1.442695
      %v668 = vpow.pop %v667
      %v669 = vsel %vm510, %v668, 0.0
      %670 = vadd.xlane.f32.xlu0 %v669
      %v671 = vpop.xlane.xlu0 %670
      %v672 = vrcp.pop %v671
      %v673 = vmul.f32 %v668, %v672
      %v674 = vpack.c.bf16 %v673, %v673
      %v675 = vpack.c.bf16 %v638, %v638
      %v677 = vsel %vm510, %v674, 0
      %v680 = vsel %vm546, %v675, 0
      %682 = vmatpush.bf16.msra.mxu0 0
      %683 = vmatpush.bf16.msra.mxu0 0
      %684 = vmatpush.bf16.msra.mxu0 0
      %685 = vmatpush.bf16.msra.mxu0 0
      %686 = vmatpush.bf16.msra.mxu0 0
      %687 = vmatpush.bf16.msra.mxu0 0
      %688 = vmatpush.bf16.msra.mxu0 0
      %689 = vmatpush.bf16.msra.mxu0 %v680
      %690 = vmatmul.bf16.gmra.mxu0 %v677
      %v691 = vpop.f32.mrf.mxu0
      %v692 = vadd.f32 0.0, %v691
      %v693 = vpop.f32.mrf.mxu0
      %694 = vdwg.mxu0
      %s695 = scalar_lea.vmem %s8, 8
      %v696 = vld [vmem:[%s695] sm:$0xff]
      %v697 = vpack.c.bf16 %v692, %v692
      %v698 = vpack.c.bf16 %v696, %v696
      %v700 = vsel %vm510, %v697, 0
      %v703 = vsel %vm546, %v698, 0
      %705 = vmatpush.bf16.msra.mxu0 0
      %706 = vmatpush.bf16.msra.mxu0 0
      %707 = vmatpush.bf16.msra.mxu0 0
      %708 = vmatpush.bf16.msra.mxu0 0
      %709 = vmatpush.bf16.msra.mxu0 0
      %710 = vmatpush.bf16.msra.mxu0 0
      %711 = vmatpush.bf16.msra.mxu0 0
      %712 = vmatpush.bf16.msra.mxu0 %v703
      %713 = vmatmul.bf16.gmra.mxu0 %v700
      %v714 = vpop.f32.mrf.mxu0
      %v715 = vadd.f32 0.0, %v714
      %v716 = vpop.f32.mrf.mxu0
      %717 = vdwg.mxu0
      %v719 = vsel %vm510, %v564, 0
      %v722 = vsel %vm546, %v565, 0
      %724 = vmatpush.bf16.msra.mxu0 0
      %725 = vmatpush.bf16.msra.mxu0 0
      %726 = vmatpush.bf16.msra.mxu0 0
      %727 = vmatpush.bf16.msra.mxu0 0
      %728 = vmatpush.bf16.msra.mxu0 0
      %729 = vmatpush.bf16.msra.mxu0 0
      %730 = vmatpush.bf16.msra.mxu0 0
      %731 = vmatpush.bf16.msra.mxu0 %v722
      %732 = vmatmul.bf16.gmra.mxu0 %v719
      %v733 = vpop.f32.mrf.mxu0
      %v734 = vadd.f32 %v715, %v733
      %v735 = vpop.f32.mrf.mxu0
      %736 = vdwg.mxu0
      %s737 = scalar_lea.vmem %s2, 64
      %v738 = vld [vmem:[%s737] sm:$0xff]
      %v739 = vld [vmem:[%s737 + $0x8] sm:$0xff]
      %v740 = vld [vmem:[%s737 + $0x10] sm:$0xff]
      %v741 = vld [vmem:[%s737 + $0x18] sm:$0xff]
      %v742 = vpack.c.bf16 %v739, %v738
      %v743 = vpack.c.bf16 %v741, %v740
      %s744 = scalar_lea.vmem %s3, 2
      %v745 = vld [vmem:[%s744] sm:$0x1]
      %v747 = vperm.slane %v745, 0
      %749 = vmatpush.bf16.msra.mxu0 0
      %750 = vmatpush.bf16.msra.mxu0 0
      %751 = vmatpush.bf16.msra.mxu0 0
      %752 = vmatpush.bf16.msra.mxu0 0
      %753 = vmatpush.bf16.msra.mxu0 0
      %754 = vmatpush.bf16.msra.mxu0 0
      %755 = vmatpush.bf16.msra.mxu0 %v743
      %756 = vmatpush.bf16.msra.mxu0 %v742
      %757 = vmatmul.bf16.gmra.mxu0 %v442
      %v758 = vpop.f32.mrf.mxu0
      %v759 = vadd.f32 %v747, %v758
      %v760 = vpop.f32.mrf.mxu0
      %761 = vdwg.mxu0
      %s762 = scalar_lea.vmem %s4, 64
      %v763 = vld [vmem:[%s762] sm:$0xff]
      %v764 = vld [vmem:[%s762 + $0x8] sm:$0xff]
      %v765 = vld [vmem:[%s762 + $0x10] sm:$0xff]
      %v766 = vld [vmem:[%s762 + $0x18] sm:$0xff]
      %v767 = vpack.c.bf16 %v764, %v763
      %v768 = vpack.c.bf16 %v766, %v765
      %s769 = scalar_lea.vmem %s5, 2
      %v770 = vld [vmem:[%s769] sm:$0x1]
      %v772 = vperm.slane %v770, 0
      %774 = vmatpush.bf16.msra.mxu0 0
      %775 = vmatpush.bf16.msra.mxu0 0
      %776 = vmatpush.bf16.msra.mxu0 0
      %777 = vmatpush.bf16.msra.mxu0 0
      %778 = vmatpush.bf16.msra.mxu0 0
      %779 = vmatpush.bf16.msra.mxu0 0
      %780 = vmatpush.bf16.msra.mxu0 %v768
      %781 = vmatpush.bf16.msra.mxu0 %v767
      %782 = vmatmul.bf16.gmra.mxu0 %v469
      %v783 = vpop.f32.mrf.mxu0
      %v784 = vadd.f32 %v772, %v783
      %v785 = vpop.f32.mrf.mxu0
      %786 = vdwg.mxu0
      %s787 = scalar_lea.vmem %s6, 64
      %v788 = vld [vmem:[%s787] sm:$0xff]
      %v789 = vld [vmem:[%s787 + $0x8] sm:$0xff]
      %v790 = vld [vmem:[%s787 + $0x10] sm:$0xff]
      %v791 = vld [vmem:[%s787 + $0x18] sm:$0xff]
      %v792 = vpack.c.bf16 %v789, %v788
      %v793 = vpack.c.bf16 %v791, %v790
      %s794 = scalar_lea.vmem %s7, 2
      %v795 = vld [vmem:[%s794] sm:$0x1]
      %v797 = vperm.slane %v795, 0
      %799 = vmatpush.bf16.msra.mxu0 0
      %800 = vmatpush.bf16.msra.mxu0 0
      %801 = vmatpush.bf16.msra.mxu0 0
      %802 = vmatpush.bf16.msra.mxu0 0
      %803 = vmatpush.bf16.msra.mxu0 0
      %804 = vmatpush.bf16.msra.mxu0 0
      %805 = vmatpush.bf16.msra.mxu0 %v793
      %806 = vmatpush.bf16.msra.mxu0 %v792
      %807 = vmatmul.bf16.gmra.mxu0 %v469
      %v808 = vpop.f32.mrf.mxu0
      %v809 = vadd.f32 %v797, %v808
      %v810 = vpop.f32.mrf.mxu0
      %811 = vdwg.mxu0
      %v812 = vmul.f32 %v759, 0.35355338
      %v813 = vpack.c.bf16 %v812, %v812
      %v814 = vpack.c.bf16 %v784, %v784
      %v816 = vsel %vm510, %v813, 0
      %v819 = vsel %vm510, %v814, 0
      %821 = vmatpush.bf16.xpose.msra.mxu0 0
      %822 = vmatpush.bf16.xpose.msra.mxu0 0
      %823 = vmatpush.bf16.xpose.msra.mxu0 0
      %824 = vmatpush.bf16.xpose.msra.mxu0 0
      %825 = vmatpush.bf16.xpose.msra.mxu0 0
      %826 = vmatpush.bf16.xpose.msra.mxu0 0
      %827 = vmatpush.bf16.xpose.msra.mxu0 0
      %828 = vmatpush.bf16.xpose.msra.mxu0 %v819
      %829 = vmatmul.bf16.gmra.mxu0 %v816
      %v830 = vpop.f32.mrf.mxu0
      %v831 = vadd.f32 0.0, %v830
      %v832 = vpop.f32.mrf.mxu0
      %833 = vdwg.mxu0
      %v834 = vsel %vm510, %v831, -inf
      %835 = vmax.xlane.f32.xlu0 %v834
      %v836 = vpop.xlane.xlu0 %835
      %v837 = vsub.f32 %v831, %v836
      %v838 = vmul.f32 %v837, 1.442695
      %v839 = vpow.pop %v838
      %v840 = vsel %vm510, %v839, 0.0
      %841 = vadd.xlane.f32.xlu0 %v840
      %v842 = vpop.xlane.xlu0 %841
      %v843 = vrcp.pop %v842
      %v844 = vmul.f32 %v839, %v843
      %v845 = vpack.c.bf16 %v844, %v844
      %v846 = vpack.c.bf16 %v809, %v809
      %v848 = vsel %vm510, %v845, 0
      %v851 = vsel %vm546, %v846, 0
      %853 = vmatpush.bf16.msra.mxu0 0
      %854 = vmatpush.bf16.msra.mxu0 0
      %855 = vmatpush.bf16.msra.mxu0 0
      %856 = vmatpush.bf16.msra.mxu0 0
      %857 = vmatpush.bf16.msra.mxu0 0
      %858 = vmatpush.bf16.msra.mxu0 0
      %859 = vmatpush.bf16.msra.mxu0 0
      %860 = vmatpush.bf16.msra.mxu0 %v851
      %861 = vmatmul.bf16.gmra.mxu0 %v848
      %v862 = vpop.f32.mrf.mxu0
      %v863 = vadd.f32 0.0, %v862
      %v864 = vpop.f32.mrf.mxu0
      %865 = vdwg.mxu0
      %s866 = scalar_lea.vmem %s8, 16
      %v867 = vld [vmem:[%s866] sm:$0xff]
      %v868 = vpack.c.bf16 %v863, %v863
      %v869 = vpack.c.bf16 %v867, %v867
      %v871 = vsel %vm510, %v868, 0
      %v874 = vsel %vm546, %v869, 0
      %876 = vmatpush.bf16.msra.mxu0 0
      %877 = vmatpush.bf16.msra.mxu0 0
      %878 = vmatpush.bf16.msra.mxu0 0
      %879 = vmatpush.bf16.msra.mxu0 0
      %880 = vmatpush.bf16.msra.mxu0 0
      %881 = vmatpush.bf16.msra.mxu0 0
      %882 = vmatpush.bf16.msra.mxu0 0
      %883 = vmatpush.bf16.msra.mxu0 %v874
      %884 = vmatmul.bf16.gmra.mxu0 %v871
      %v885 = vpop.f32.mrf.mxu0
      %v886 = vadd.f32 0.0, %v885
      %v887 = vpop.f32.mrf.mxu0
      %888 = vdwg.mxu0
      %v889 = vadd.f32 %v734, %v886
      %s890 = scalar_lea.vmem %s2, 96
      %v891 = vld [vmem:[%s890] sm:$0xff]
      %v892 = vld [vmem:[%s890 + $0x8] sm:$0xff]
      %v893 = vld [vmem:[%s890 + $0x10] sm:$0xff]
      %v894 = vld [vmem:[%s890 + $0x18] sm:$0xff]
      %v895 = vpack.c.bf16 %v892, %v891
      %v896 = vpack.c.bf16 %v894, %v893
      %s897 = scalar_lea.vmem %s3, 3
      %v898 = vld [vmem:[%s897] sm:$0x1]
      %v900 = vperm.slane %v898, 0
      %902 = vmatpush.bf16.msra.mxu0 0
      %903 = vmatpush.bf16.msra.mxu0 0
      %904 = vmatpush.bf16.msra.mxu0 0
      %905 = vmatpush.bf16.msra.mxu0 0
      %906 = vmatpush.bf16.msra.mxu0 0
      %907 = vmatpush.bf16.msra.mxu0 0
      %908 = vmatpush.bf16.msra.mxu0 %v896
      %909 = vmatpush.bf16.msra.mxu0 %v895
      %910 = vmatmul.bf16.gmra.mxu0 %v442
      %v911 = vpop.f32.mrf.mxu0
      %v912 = vadd.f32 %v900, %v911
      %v913 = vpop.f32.mrf.mxu0
      %914 = vdwg.mxu0
      %s915 = scalar_lea.vmem %s4, 96
      %v916 = vld [vmem:[%s915] sm:$0xff]
      %v917 = vld [vmem:[%s915 + $0x8] sm:$0xff]
      %v918 = vld [vmem:[%s915 + $0x10] sm:$0xff]
      %v919 = vld [vmem:[%s915 + $0x18] sm:$0xff]
      %v920 = vpack.c.bf16 %v917, %v916
      %v921 = vpack.c.bf16 %v919, %v918
      %s922 = scalar_lea.vmem %s5, 3
      %v923 = vld [vmem:[%s922] sm:$0x1]
      %v925 = vperm.slane %v923, 0
      %927 = vmatpush.bf16.msra.mxu0 0
      %928 = vmatpush.bf16.msra.mxu0 0
      %929 = vmatpush.bf16.msra.mxu0 0
      %930 = vmatpush.bf16.msra.mxu0 0
      %931 = vmatpush.bf16.msra.mxu0 0
      %932 = vmatpush.bf16.msra.mxu0 0
      %933 = vmatpush.bf16.msra.mxu0 %v921
      %934 = vmatpush.bf16.msra.mxu0 %v920
      %935 = vmatmul.bf16.gmra.mxu0 %v469
      %v936 = vpop.f32.mrf.mxu0
      %v937 = vadd.f32 %v925, %v936
      %v938 = vpop.f32.mrf.mxu0
      %939 = vdwg.mxu0
      %s940 = scalar_lea.vmem %s6, 96
      %v941 = vld [vmem:[%s940] sm:$0xff]
      %v942 = vld [vmem:[%s940 + $0x8] sm:$0xff]
      %v943 = vld [vmem:[%s940 + $0x10] sm:$0xff]
      %v944 = vld [vmem:[%s940 + $0x18] sm:$0xff]
      %v945 = vpack.c.bf16 %v942, %v941
      %v946 = vpack.c.bf16 %v944, %v943
      %s947 = scalar_lea.vmem %s7, 3
      %v948 = vld [vmem:[%s947] sm:$0x1]
      %v950 = vperm.slane %v948, 0
      %952 = vmatpush.bf16.msra.mxu0 0
      %953 = vmatpush.bf16.msra.mxu0 0
      %954 = vmatpush.bf16.msra.mxu0 0
      %955 = vmatpush.bf16.msra.mxu0 0
      %956 = vmatpush.bf16.msra.mxu0 0
      %957 = vmatpush.bf16.msra.mxu0 0
      %958 = vmatpush.bf16.msra.mxu0 %v946
      %959 = vmatpush.bf16.msra.mxu0 %v945
      %960 = vmatmul.bf16.gmra.mxu0 %v469
      %v961 = vpop.f32.mrf.mxu0
      %v962 = vadd.f32 %v950, %v961
      %v963 = vpop.f32.mrf.mxu0
      %964 = vdwg.mxu0
      %v965 = vmul.f32 %v912, 0.35355338
      %v966 = vpack.c.bf16 %v965, %v965
      %v967 = vpack.c.bf16 %v937, %v937
      %v969 = vsel %vm510, %v966, 0
      %v972 = vsel %vm510, %v967, 0
      %974 = vmatpush.bf16.xpose.msra.mxu0 0
      %975 = vmatpush.bf16.xpose.msra.mxu0 0
      %976 = vmatpush.bf16.xpose.msra.mxu0 0
      %977 = vmatpush.bf16.xpose.msra.mxu0 0
      %978 = vmatpush.bf16.xpose.msra.mxu0 0
      %979 = vmatpush.bf16.xpose.msra.mxu0 0
      %980 = vmatpush.bf16.xpose.msra.mxu0 0
      %981 = vmatpush.bf16.xpose.msra.mxu0 %v972
      %982 = vmatmul.bf16.gmra.mxu0 %v969
      %v983 = vpop.f32.mrf.mxu0
      %v984 = vadd.f32 0.0, %v983
      %v985 = vpop.f32.mrf.mxu0
      %986 = vdwg.mxu0
      %v987 = vsel %vm510, %v984, -inf
      %988 = vmax.xlane.f32.xlu0 %v987
      %v989 = vpop.xlane.xlu0 %988
      %v990 = vsub.f32 %v984, %v989
      %v991 = vmul.f32 %v990, 1.442695
      %v992 = vpow.pop %v991
      %v993 = vsel %vm510, %v992, 0.0
      %994 = vadd.xlane.f32.xlu0 %v993
      %v995 = vpop.xlane.xlu0 %994
      %v996 = vrcp.pop %v995
      %v997 = vmul.f32 %v992, %v996
      %v998 = vpack.c.bf16 %v997, %v997
      %v999 = vpack.c.bf16 %v962, %v962
      %v1001 = vsel %vm510, %v998, 0
      %v1004 = vsel %vm546, %v999, 0
      %1006 = vmatpush.bf16.msra.mxu0 0
      %1007 = vmatpush.bf16.msra.mxu0 0
      %1008 = vmatpush.bf16.msra.mxu0 0
      %1009 = vmatpush.bf16.msra.mxu0 0
      %1010 = vmatpush.bf16.msra.mxu0 0
      %1011 = vmatpush.bf16.msra.mxu0 0
      %1012 = vmatpush.bf16.msra.mxu0 0
      %1013 = vmatpush.bf16.msra.mxu0 %v1004
      %1014 = vmatmul.bf16.gmra.mxu0 %v1001
      %v1015 = vpop.f32.mrf.mxu0
      %v1016 = vadd.f32 0.0, %v1015
      %v1017 = vpop.f32.mrf.mxu0
      %1018 = vdwg.mxu0
      %s1019 = scalar_lea.vmem %s8, 24
      %v1020 = vld [vmem:[%s1019] sm:$0xff]
      %v1021 = vpack.c.bf16 %v1016, %v1016
      %v1022 = vpack.c.bf16 %v1020, %v1020
      %v1024 = vsel %vm510, %v1021, 0
      %v1027 = vsel %vm546, %v1022, 0
      %1029 = vmatpush.bf16.msra.mxu0 0
      %1030 = vmatpush.bf16.msra.mxu0 0
      %1031 = vmatpush.bf16.msra.mxu0 0
      %1032 = vmatpush.bf16.msra.mxu0 0
      %1033 = vmatpush.bf16.msra.mxu0 0
      %1034 = vmatpush.bf16.msra.mxu0 0
      %1035 = vmatpush.bf16.msra.mxu0 0
      %1036 = vmatpush.bf16.msra.mxu0 %v1027
      %1037 = vmatmul.bf16.gmra.mxu0 %v1024
      %v1038 = vpop.f32.mrf.mxu0
      %v1039 = vadd.f32 0.0, %v1038
      %v1040 = vpop.f32.mrf.mxu0
      %1041 = vdwg.mxu0
      %v1042 = vadd.f32 %v889, %v1039
      %v1043 = vld [vmem:[%s9] sm:$0x1]
      %v1045 = vperm.slane %v1043, 0
      %v1047 = vadd.f32 %v1042, %v1045
      %v1048 = vld [vmem:[%s10] sm:$0x1]
      %v1049 = vld [vmem:[%s11] sm:$0x1]
      %v1050 = vadd.f32 %v427, %v1047
      %v1051 = vsel %vm440, %v1050, 0.0
      %1052 = vadd.xlane.f32.xlu0 %v1051
      %v1053 = vpop.xlane.xlu0 %1052
      %v1054 = vrcp.pop 32.0
      %v1055 = vmul.f32 32.0, %v1054
      %v1056 = vsub.f32 1.0, %v1055
      %v1057 = vmul.f32 %v1054, %v1056
      %v1058 = vadd.f32 %v1054, %v1057
      %vm1059 = vweird.f32 %v1054
      %v1060 = vsel %vm1059, %v1054, %v1058
      %v1061 = vmul.f32 %v1053, %v1060
      %v1062 = vmul.f32 %v1050, %v1050
      %v1063 = vsel %vm440, %v1062, 0.0
      %1064 = vadd.xlane.f32.xlu0 %v1063
      %v1065 = vpop.xlane.xlu0 %1064
      %v1066 = vmul.f32 %v1065, %v1060
      %v1067 = vmul.f32 %v1061, %v1061
      %v1068 = vsub.f32 %v1066, %v1067
      %v1069 = vsub.f32 %v1050, %v1061
      %v1070 = vadd.f32 %v1068, 1e-05
      %v1071 = vrsqrt.pop %v1070
      %v1072 = vmul.f32 %v1071, %v1070
      %v1073 = vmul.f32 %v1072, %v1071
      %v1074 = vmul.f32 0.5, %v1073
      %v1075 = vsub.f32 1.5, %v1074
      %v1076 = vmul.f32 %v1071, %v1075
      %vm1077 = vweird.f32 %v1070
      %vm1078 = vweird.f32 %v1071
      %vm1079 = vmor %vm1077, %vm1078
      %v1080 = vsel %vm1079, %v1071, %v1076
      %v1081 = vmul.f32 %v1069, %v1080
      %v1083 = vperm.slane %v1048, 0
      %v1085 = vmul.f32 %v1081, %v1083
      %v1087 = vperm.slane %v1049, 0
      %v1089 = vadd.f32 %v1085, %v1087
      %1090 = vst.msk [vmem:[%s425] sm:$0xff] %vm440, %v1089
      %p1091 = scmp.lt.s32.totalorder %s23, 1
      %s1092 = scalar_select %p1091, %s23, 1
      %s1093 = smul.addr %s1092, 8
      %s1094 = scalar_lea.vmem %s12, %s1093
      // Predicated region
      $region69: #{seq2seq_forward.11} parent=67 // pred_check
        %p1095 = pneg %p303
      $region70: #{seq2seq_forward.11} parent=67 // pred_check_branch
        %1097 = sbr.rel (%p1095) target = $region72
      $region71: #{seq2seq_forward.11} parent=67 // pred_region
        _
      $region72: #{seq2seq_forward.11} parent=67 // pred_fallthru
        _
    $region68: #{seq2seq_forward.11} parent=5 // pred_fallthru
      _
    %p1098 = scmp.le.s32.totalorder 2, %s18
    // Predicated region
    $region73: #{seq2seq_forward.11} parent=5 // pred_check
      %p1099 = pneg %p1098
    $region74: #{seq2seq_forward.11} parent=5 // pred_check_branch
      %1101 = sbr.rel (%p1099) target = $region76
    $region75: #{seq2seq_forward.11} parent=5 // pred_region
      %s1102 = ssub.s32 %s18, 2
      // Predicated region
      $region77: #{seq2seq_forward.11} parent=75 // pred_check
        %p1103 = pneg %p309
      $region78: #{seq2seq_forward.11} parent=75 // pred_check_branch
        %1105 = sbr.rel (%p1103) target = $region80
      $region79: #{seq2seq_forward.11} parent=75 // pred_region
        %p1106 = scmp.lt.s32.totalorder %s24, 1
        %s1107 = scalar_select %p1106, %s24, 1
        %s1108 = smul.addr %s1107, 8
        %s1109 = scalar_lea.vmem %s12, %s1108
      $region80: #{seq2seq_forward.11} parent=75 // pred_fallthru
        _
    $region76: #{seq2seq_forward.11} parent=5 // pred_fallthru
      _
  $region6: #{seq2seq_forward.11} parent=0 // loop_footer
    %s22 = sadd.s32 1, %s18
  $region7: #{seq2seq_forward.11} parent=0 // loop_footer_branch
    %17 = sbr.rel target = $region3
  $region8: #{seq2seq_forward.11} parent=0 // loop_exit
    _

// kernel: seq2seq_forward.15
$region0: #{seq2seq_forward.15}
  #allocation0 [shape = 'u32[]', space=smem, size = 0x4, offset = 0x4, fixed_abs, tag = 'smem constant byte address 0x4 - core index']
  #allocation1 [shape = 'u32[72,128]{1,0:T(1,128)}', space=vmem, size = 0x9000, scoped, tag = 'internal scratch']
  %s0 = inlined_call_operand.vmem [shape: f32[2,8,32], index: 0, kind: input, shape index: {}, may-alias: {0,1}]
  %s1 = inlined_call_operand.vmem [shape: f32[2,8,32], index: 1, kind: input, shape index: {}, may-alias: {0,1}]
  %s2 = inlined_call_operand.vmem [shape: f32[4,32,8], index: 2, kind: input, shape index: {}]
  %s3 = inlined_call_operand.vmem [shape: f32[4,1,8], index: 3, kind: input, shape index: {}]
  %s4 = inlined_call_operand.vmem [shape: f32[4,32,8], index: 4, kind: input, shape index: {}]
  %s5 = inlined_call_operand.vmem [shape: f32[4,1,8], index: 5, kind: input, shape index: {}]
  %s6 = inlined_call_operand.vmem [shape: f32[4,32,8], index: 6, kind: input, shape index: {}]
  %s7 = inlined_call_operand.vmem [shape: f32[4,1,8], index: 7, kind: input, shape index: {}]
  %s8 = inlined_call_operand.vmem [shape: f32[4,8,32], index: 8, kind: input, shape index: {}]
  %s9 = inlined_call_operand.vmem [shape: f32[1,32], index: 9, kind: input, shape index: {}]
  %s10 = inlined_call_operand.vmem [shape: f32[1,32], index: 10, kind: input, shape index: {}]
  %s11 = inlined_call_operand.vmem [shape: f32[1,32], index: 11, kind: input, shape index: {}]
  %s12 = inlined_call_operand.vmem [shape: f32[2,8,32], index: 12, kind: output, shape index: {}]
  %s13 = sld [smem:[#allocation0]]
  $region81: #{seq2seq_forward.15} parent=0
    _
  %s15 = ssub.s32 1, %s13
  %s16 = scalar_select 0, %s15, %s13
  loop: start=0, step=1, limit=4
  $region2: #{seq2seq_forward.15} parent=0 // loop_pre_header
    _
  $region3: #{seq2seq_forward.15} parent=0 // loop_header
    %s18 = sphi 0, %s22
    %p19 = scmp.ge.s32.totalorder %s18, 4
    %s28 = sphi 0, %s30
    %s31 = sphi 0, %s28
    %s32 = sphi 0, %s31
    %s48 = sphi 0, %s32
    %s54 = sphi 0, %s56
    %s57 = sphi 0, %s54
    %s58 = sphi 0, %s57
    %s74 = sphi 0, %s58
    %s78 = sphi 0, %s78
    %s80 = sphi 0, %s78
    %s81 = sphi 0, %s80
    %s95 = sphi 0, %s81
    %s99 = sphi 0, %s99
    %s101 = sphi 0, %s99
    %s102 = sphi 0, %s101
    %s116 = sphi 0, %s102
    %s120 = sphi 0, %s120
    %s122 = sphi 0, %s120
    %s123 = sphi 0, %s122
    %s137 = sphi 0, %s123
    %s141 = sphi 0, %s141
    %s143 = sphi 0, %s141
    %s144 = sphi 0, %s143
    %s158 = sphi 0, %s144
    %s162 = sphi 0, %s162
    %s164 = sphi 0, %s162
    %s165 = sphi 0, %s164
    %s179 = sphi 0, %s165
    %s183 = sphi 0, %s183
    %s185 = sphi 0, %s183
    %s186 = sphi 0, %s185
    %s200 = sphi 0, %s186
    %s204 = sphi 0, %s204
    %s206 = sphi 0, %s204
    %s207 = sphi 0, %s206
    %s221 = sphi 0, %s207
    %s225 = sphi 0, %s225
    %s227 = sphi 0, %s225
    %s228 = sphi 0, %s227
    %s242 = sphi 0, %s228
    %s246 = sphi 0, %s246
    %s248 = sphi 0, %s246
    %s249 = sphi 0, %s248
    %s263 = sphi 0, %s249
    %s267 = sphi 0, %s267
    %s269 = sphi 0, %s267
    %s270 = sphi 0, %s269
    %s284 = sphi 0, %s270
    %s290 = sphi 0, %s292
    %s293 = sphi 0, %s290
    %s294 = sphi 0, %s293
    %s310 = sphi 0, %s294
  $region4: #{seq2seq_forward.15} parent=0 // loop_header_branch
    %21 = sbr.rel (%p19) target = $region8
  $region5: #{seq2seq_forward.15} parent=0 // loop_body
    %s23 = ssub.s32 %s18, 1
    %s24 = ssub.s32 %s18, 2
    %s25 = sadd.s32 %s18, 1
    %s26 = ssub.s32 %s18, %s25
    %p27 = scmp.eq.s32.totalorder %s26, 0
    %s29 = sadd.s32 %s28, 1
    %s30 = scalar_select %p27, %s28, %s29
    %p33 = pneg %p27
    %p34 = scmp.eq.s32.totalorder %s18, 1
    %p35 = por %p33, %p34
    %p36 = scmp.ne.s32.totalorder %s28, %s31
    %p37 = scmp.eq.s32.totalorder %s18, 0
    %p38 = por %p36, %p37
    %p39 = scmp.ne.s32.totalorder %s28, %s31
    %p40 = scmp.eq.s32.totalorder %s23, 1
    %p41 = por %p39, %p40
    %p42 = scmp.ne.s32.totalorder %s31, %s32
    %p43 = scmp.eq.s32.totalorder %s23, 0
    %p44 = por %p42, %p43
    %p45 = scmp.ne.s32.totalorder %s31, %s32
    %p46 = scmp.eq.s32.totalorder %s24, 1
    %p47 = por %p45, %p46
    %p49 = scmp.ne.s32.totalorder %s32, %s48
    %p50 = scmp.eq.s32.totalorder %s24, 0
    %p51 = por %p49, %p50
    %s52 = ssub.s32 %s18, %s25
    %p53 = scmp.eq.s32.totalorder %s52, 0
    %s55 = sadd.s32 %s54, 1
    %s56 = scalar_select %p53, %s54, %s55
    %p59 = pneg %p53
    %p60 = scmp.eq.s32.totalorder %s18, 1
    %p61 = por %p59, %p60
    %p62 = scmp.ne.s32.totalorder %s54, %s57
    %p63 = scmp.eq.s32.totalorder %s18, 0
    %p64 = por %p62, %p63
    %p65 = scmp.ne.s32.totalorder %s54, %s57
    %p66 = scmp.eq.s32.totalorder %s23, 1
    %p67 = por %p65, %p66
    %p68 = scmp.ne.s32.totalorder %s57, %s58
    %p69 = scmp.eq.s32.totalorder %s23, 0
    %p70 = por %p68, %p69
    %p71 = scmp.ne.s32.totalorder %s57, %s58
    %p72 = scmp.eq.s32.totalorder %s24, 1
    %p73 = por %p71, %p72
    %p75 = scmp.ne.s32.totalorder %s58, %s74
    %p76 = scmp.eq.s32.totalorder %s24, 0
    %p77 = por %p75, %p76
    %s79 = sadd.s32 %s78, 1
    %p82 = scmp.eq.s32.totalorder %s18, 1
    %p83 = scmp.ne.s32.totalorder %s78, %s80
    %p84 = scmp.eq.s32.totalorder %s18, 0
    %p85 = por %p83, %p84
    %p86 = scmp.ne.s32.totalorder %s78, %s80
    %p87 = scmp.eq.s32.totalorder %s23, 1
    %p88 = por %p86, %p87
    %p89 = scmp.ne.s32.totalorder %s80, %s81
    %p90 = scmp.eq.s32.totalorder %s23, 0
    %p91 = por %p89, %p90
    %p92 = scmp.ne.s32.totalorder %s80, %s81
    %p93 = scmp.eq.s32.totalorder %s24, 1
    %p94 = por %p92, %p93
    %p96 = scmp.ne.s32.totalorder %s81, %s95
    %p97 = scmp.eq.s32.totalorder %s24, 0
    %p98 = por %p96, %p97
    %s100 = sadd.s32 %s99, 1
    %p103 = scmp.eq.s32.totalorder %s18, 1
    %p104 = scmp.ne.s32.totalorder %s99, %s101
    %p105 = scmp.eq.s32.totalorder %s18, 0
    %p106 = por %p104, %p105
    %p107 = scmp.ne.s32.totalorder %s99, %s101
    %p108 = scmp.eq.s32.totalorder %s23, 1
    %p109 = por %p107, %p108
    %p110 = scmp.ne.s32.totalorder %s101, %s102
    %p111 = scmp.eq.s32.totalorder %s23, 0
    %p112 = por %p110, %p111
    %p113 = scmp.ne.s32.totalorder %s101, %s102
    %p114 = scmp.eq.s32.totalorder %s24, 1
    %p115 = por %p113, %p114
    %p117 = scmp.ne.s32.totalorder %s102, %s116
    %p118 = scmp.eq.s32.totalorder %s24, 0
    %p119 = por %p117, %p118
    %s121 = sadd.s32 %s120, 1
    %p124 = scmp.eq.s32.totalorder %s18, 1
    %p125 = scmp.ne.s32.totalorder %s120, %s122
    %p126 = scmp.eq.s32.totalorder %s18, 0
    %p127 = por %p125, %p126
    %p128 = scmp.ne.s32.totalorder %s120, %s122
    %p129 = scmp.eq.s32.totalorder %s23, 1
    %p130 = por %p128, %p129
    %p131 = scmp.ne.s32.totalorder %s122, %s123
    %p132 = scmp.eq.s32.totalorder %s23, 0
    %p133 = por %p131, %p132
    %p134 = scmp.ne.s32.totalorder %s122, %s123
    %p135 = scmp.eq.s32.totalorder %s24, 1
    %p136 = por %p134, %p135
    %p138 = scmp.ne.s32.totalorder %s123, %s137
    %p139 = scmp.eq.s32.totalorder %s24, 0
    %p140 = por %p138, %p139
    %s142 = sadd.s32 %s141, 1
    %p145 = scmp.eq.s32.totalorder %s18, 1
    %p146 = scmp.ne.s32.totalorder %s141, %s143
    %p147 = scmp.eq.s32.totalorder %s18, 0
    %p148 = por %p146, %p147
    %p149 = scmp.ne.s32.totalorder %s141, %s143
    %p150 = scmp.eq.s32.totalorder %s23, 1
    %p151 = por %p149, %p150
    %p152 = scmp.ne.s32.totalorder %s143, %s144
    %p153 = scmp.eq.s32.totalorder %s23, 0
    %p154 = por %p152, %p153
    %p155 = scmp.ne.s32.totalorder %s143, %s144
    %p156 = scmp.eq.s32.totalorder %s24, 1
    %p157 = por %p155, %p156
    %p159 = scmp.ne.s32.totalorder %s144, %s158
    %p160 = scmp.eq.s32.totalorder %s24, 0
    %p161 = por %p159, %p160
    %s163 = sadd.s32 %s162, 1
    %p166 = scmp.eq.s32.totalorder %s18, 1
    %p167 = scmp.ne.s32.totalorder %s162, %s164
    %p168 = scmp.eq.s32.totalorder %s18, 0
    %p169 = por %p167, %p168
    %p170 = scmp.ne.s32.totalorder %s162, %s164
    %p171 = scmp.eq.s32.totalorder %s23, 1
    %p172 = por %p170, %p171
    %p173 = scmp.ne.s32.totalorder %s164, %s165
    %p174 = scmp.eq.s32.totalorder %s23, 0
    %p175 = por %p173, %p174
    %p176 = scmp.ne.s32.totalorder %s164, %s165
    %p177 = scmp.eq.s32.totalorder %s24, 1
    %p178 = por %p176, %p177
    %p180 = scmp.ne.s32.totalorder %s165, %s179
    %p181 = scmp.eq.s32.totalorder %s24, 0
    %p182 = por %p180, %p181
    %s184 = sadd.s32 %s183, 1
    %p187 = scmp.eq.s32.totalorder %s18, 1
    %p188 = scmp.ne.s32.totalorder %s183, %s185
    %p189 = scmp.eq.s32.totalorder %s18, 0
    %p190 = por %p188, %p189
    %p191 = scmp.ne.s32.totalorder %s183, %s185
    %p192 = scmp.eq.s32.totalorder %s23, 1
    %p193 = por %p191, %p192
    %p194 = scmp.ne.s32.totalorder %s185, %s186
    %p195 = scmp.eq.s32.totalorder %s23, 0
    %p196 = por %p194, %p195
    %p197 = scmp.ne.s32.totalorder %s185, %s186
    %p198 = scmp.eq.s32.totalorder %s24, 1
    %p199 = por %p197, %p198
    %p201 = scmp.ne.s32.totalorder %s186, %s200
    %p202 = scmp.eq.s32.totalorder %s24, 0
    %p203 = por %p201, %p202
    %s205 = sadd.s32 %s204, 1
    %p208 = scmp.eq.s32.totalorder %s18, 1
    %p209 = scmp.ne.s32.totalorder %s204, %s206
    %p210 = scmp.eq.s32.totalorder %s18, 0
    %p211 = por %p209, %p210
    %p212 = scmp.ne.s32.totalorder %s204, %s206
    %p213 = scmp.eq.s32.totalorder %s23, 1
    %p214 = por %p212, %p213
    %p215 = scmp.ne.s32.totalorder %s206, %s207
    %p216 = scmp.eq.s32.totalorder %s23, 0
    %p217 = por %p215, %p216
    %p218 = scmp.ne.s32.totalorder %s206, %s207
    %p219 = scmp.eq.s32.totalorder %s24, 1
    %p220 = por %p218, %p219
    %p222 = scmp.ne.s32.totalorder %s207, %s221
    %p223 = scmp.eq.s32.totalorder %s24, 0
    %p224 = por %p222, %p223
    %s226 = sadd.s32 %s225, 1
    %p229 = scmp.eq.s32.totalorder %s18, 1
    %p230 = scmp.ne.s32.totalorder %s225, %s227
    %p231 = scmp.eq.s32.totalorder %s18, 0
    %p232 = por %p230, %p231
    %p233 = scmp.ne.s32.totalorder %s225, %s227
    %p234 = scmp.eq.s32.totalorder %s23, 1
    %p235 = por %p233, %p234
    %p236 = scmp.ne.s32.totalorder %s227, %s228
    %p237 = scmp.eq.s32.totalorder %s23, 0
    %p238 = por %p236, %p237
    %p239 = scmp.ne.s32.totalorder %s227, %s228
    %p240 = scmp.eq.s32.totalorder %s24, 1
    %p241 = por %p239, %p240
    %p243 = scmp.ne.s32.totalorder %s228, %s242
    %p244 = scmp.eq.s32.totalorder %s24, 0
    %p245 = por %p243, %p244
    %s247 = sadd.s32 %s246, 1
    %p250 = scmp.eq.s32.totalorder %s18, 1
    %p251 = scmp.ne.s32.totalorder %s246, %s248
    %p252 = scmp.eq.s32.totalorder %s18, 0
    %p253 = por %p251, %p252
    %p254 = scmp.ne.s32.totalorder %s246, %s248
    %p255 = scmp.eq.s32.totalorder %s23, 1
    %p256 = por %p254, %p255
    %p257 = scmp.ne.s32.totalorder %s248, %s249
    %p258 = scmp.eq.s32.totalorder %s23, 0
    %p259 = por %p257, %p258
    %p260 = scmp.ne.s32.totalorder %s248, %s249
    %p261 = scmp.eq.s32.totalorder %s24, 1
    %p262 = por %p260, %p261
    %p264 = scmp.ne.s32.totalorder %s249, %s263
    %p265 = scmp.eq.s32.totalorder %s24, 0
    %p266 = por %p264, %p265
    %s268 = sadd.s32 %s267, 1
    %p271 = scmp.eq.s32.totalorder %s18, 1
    %p272 = scmp.ne.s32.totalorder %s267, %s269
    %p273 = scmp.eq.s32.totalorder %s18, 0
    %p274 = por %p272, %p273
    %p275 = scmp.ne.s32.totalorder %s267, %s269
    %p276 = scmp.eq.s32.totalorder %s23, 1
    %p277 = por %p275, %p276
    %p278 = scmp.ne.s32.totalorder %s269, %s270
    %p279 = scmp.eq.s32.totalorder %s23, 0
    %p280 = por %p278, %p279
    %p281 = scmp.ne.s32.totalorder %s269, %s270
    %p282 = scmp.eq.s32.totalorder %s24, 1
    %p283 = por %p281, %p282
    %p285 = scmp.ne.s32.totalorder %s270, %s284
    %p286 = scmp.eq.s32.totalorder %s24, 0
    %p287 = por %p285, %p286
    %s288 = ssub.s32 %s18, %s25
    %p289 = scmp.eq.s32.totalorder %s288, 0
    %s291 = sadd.s32 %s290, 1
    %s292 = scalar_select %p289, %s290, %s291
    %p295 = pneg %p289
    %p296 = scmp.eq.s32.totalorder %s18, 1
    %p297 = por %p295, %p296
    %p298 = scmp.ne.s32.totalorder %s290, %s293
    %p299 = scmp.eq.s32.totalorder %s18, 0
    %p300 = por %p298, %p299
    %p301 = scmp.ne.s32.totalorder %s290, %s293
    %p302 = scmp.eq.s32.totalorder %s23, 1
    %p303 = por %p301, %p302
    %p304 = scmp.ne.s32.totalorder %s293, %s294
    %p305 = scmp.eq.s32.totalorder %s23, 0
    %p306 = por %p304, %p305
    %p307 = scmp.ne.s32.totalorder %s293, %s294
    %p308 = scmp.eq.s32.totalorder %s24, 1
    %p309 = por %p307, %p308
    %p311 = scmp.ne.s32.totalorder %s294, %s310
    %p312 = scmp.eq.s32.totalorder %s24, 0
    %p313 = por %p311, %p312
    %p314 = scmp.le.s32.totalorder 1, %s18
    %p315 = scmp.lt.s32.totalorder %s18, 3
    %p316 = pnand %p314, %p315
    %p317 = pneg %p316
    // Predicated region
    $region9: #{seq2seq_forward.15} parent=5 // pred_check
      _
    $region10: #{seq2seq_forward.15} parent=5 // pred_check_branch
      %319 = sbr.rel (%p316) target = $region12
    $region11: #{seq2seq_forward.15} parent=5 // pred_region
      %s320 = ssub.s32 %s18, 1
      // Predicated region
      $region13: #{seq2seq_forward.15} parent=11 // pred_check
        %p321 = pneg %p91
      $region14: #{seq2seq_forward.15} parent=11 // pred_check_branch
        %323 = sbr.rel (%p321) target = $region16
      $region15: #{seq2seq_forward.15} parent=11 // pred_region
        _
      $region16: #{seq2seq_forward.15} parent=11 // pred_fallthru
        _
      // Predicated region
      $region17: #{seq2seq_forward.15} parent=11 // pred_check
        %p324 = pneg %p112
      $region18: #{seq2seq_forward.15} parent=11 // pred_check_branch
        %326 = sbr.rel (%p324) target = $region20
      $region19: #{seq2seq_forward.15} parent=11 // pred_region
        _
      $region20: #{seq2seq_forward.15} parent=11 // pred_fallthru
        _
      // Predicated region
      $region21: #{seq2seq_forward.15} parent=11 // pred_check
        %p327 = pneg %p133
      $region22: #{seq2seq_forward.15} parent=11 // pred_check_branch
        %329 = sbr.rel (%p327) target = $region24
      $region23: #{seq2seq_forward.15} parent=11 // pred_region
        _
      $region24: #{seq2seq_forward.15} parent=11 // pred_fallthru
        _
      // Predicated region
      $region25: #{seq2seq_forward.15} parent=11 // pred_check
        %p330 = pneg %p154
      $region26: #{seq2seq_forward.15} parent=11 // pred_check_branch
        %332 = sbr.rel (%p330) target = $region28
      $region27: #{seq2seq_forward.15} parent=11 // pred_region
        _
      $region28: #{seq2seq_forward.15} parent=11 // pred_fallthru
        _
      // Predicated region
      $region29: #{seq2seq_forward.15} parent=11 // pred_check
        %p333 = pneg %p175
      $region30: #{seq2seq_forward.15} parent=11 // pred_check_branch
        %335 = sbr.rel (%p333) target = $region32
      $region31: #{seq2seq_forward.15} parent=11 // pred_region
        _
      $region32: #{seq2seq_forward.15} parent=11 // pred_fallthru
        _
      // Predicated region
      $region33: #{seq2seq_forward.15} parent=11 // pred_check
        %p336 = pneg %p196
      $region34: #{seq2seq_forward.15} parent=11 // pred_check_branch
        %338 = sbr.rel (%p336) target = $region36
      $region35: #{seq2seq_forward.15} parent=11 // pred_region
        _
      $region36: #{seq2seq_forward.15} parent=11 // pred_fallthru
        _
      // Predicated region
      $region37: #{seq2seq_forward.15} parent=11 // pred_check
        %p339 = pneg %p217
      $region38: #{seq2seq_forward.15} parent=11 // pred_check_branch
        %341 = sbr.rel (%p339) target = $region40
      $region39: #{seq2seq_forward.15} parent=11 // pred_region
        _
      $region40: #{seq2seq_forward.15} parent=11 // pred_fallthru
        _
      // Predicated region
      $region41: #{seq2seq_forward.15} parent=11 // pred_check
        %p342 = pneg %p238
      $region42: #{seq2seq_forward.15} parent=11 // pred_check_branch
        %344 = sbr.rel (%p342) target = $region44
      $region43: #{seq2seq_forward.15} parent=11 // pred_region
        _
      $region44: #{seq2seq_forward.15} parent=11 // pred_fallthru
        _
      // Predicated region
      $region45: #{seq2seq_forward.15} parent=11 // pred_check
        %p345 = pneg %p259
      $region46: #{seq2seq_forward.15} parent=11 // pred_check_branch
        %347 = sbr.rel (%p345) target = $region48
      $region47: #{seq2seq_forward.15} parent=11 // pred_region
        _
      $region48: #{seq2seq_forward.15} parent=11 // pred_fallthru
        _
      // Predicated region
      $region49: #{seq2seq_forward.15} parent=11 // pred_check
        %p348 = pneg %p280
      $region50: #{seq2seq_forward.15} parent=11 // pred_check_branch
        %350 = sbr.rel (%p348) target = $region52
      $region51: #{seq2seq_forward.15} parent=11 // pred_region
        _
      $region52: #{seq2seq_forward.15} parent=11 // pred_fallthru
        _
    $region12: #{seq2seq_forward.15} parent=5 // pred_fallthru
      _
    %p351 = scmp.lt.s32.totalorder %s18, 2
    // Predicated region
    $region53: #{seq2seq_forward.15} parent=5 // pred_check
      %p352 = pneg %p351
    $region54: #{seq2seq_forward.15} parent=5 // pred_check_branch
      %354 = sbr.rel (%p352) target = $region56
    $region55: #{seq2seq_forward.15} parent=5 // pred_region
      // Predicated region
      $region57: #{seq2seq_forward.15} parent=55 // pred_check
        %p355 = pneg %p38
      $region58: #{seq2seq_forward.15} parent=55 // pred_check_branch
        %357 = sbr.rel (%p355) target = $region60
      $region59: #{seq2seq_forward.15} parent=55 // pred_region
        %p358 = scmp.lt.s32.totalorder %s18, 1
        %s359 = scalar_select %p358, %s18, 1
        %s360 = smul.addr %s359, 8
        %s361 = scalar_lea.vmem %s0, %s360
      $region60: #{seq2seq_forward.15} parent=55 // pred_fallthru
        _
      // Predicated region
      $region61: #{seq2seq_forward.15} parent=55 // pred_check
        %p362 = pneg %p64
      $region62: #{seq2seq_forward.15} parent=55 // pred_check_branch
        %364 = sbr.rel (%p362) target = $region64
      $region63: #{seq2seq_forward.15} parent=55 // pred_region
        %p365 = scmp.lt.s32.totalorder %s18, 1
        %s366 = scalar_select %p365, %s18, 1
        %s367 = smul.addr %s366, 8
        %s368 = scalar_lea.vmem %s1, %s367
      $region64: #{seq2seq_forward.15} parent=55 // pred_fallthru
        _
    $region56: #{seq2seq_forward.15} parent=5 // pred_fallthru
      _
    %p369 = scmp.le.s32.totalorder 1, %s18
    %p370 = scmp.lt.s32.totalorder %s18, 3
    %p371 = pnand %p369, %p370
    %p372 = pneg %p371
    // Predicated region
    $region65: #{seq2seq_forward.15} parent=5 // pred_check
      _
    $region66: #{seq2seq_forward.15} parent=5 // pred_check_branch
      %374 = sbr.rel (%p371) target = $region68
    $region67: #{seq2seq_forward.15} parent=5 // pred_region
      %s375 = ssub.s32 %s18, 1
      %p376 = scmp.lt.s32.totalorder %s23, 1
      %s377 = scalar_select %p376, %s23, 1
      %s378 = smul.addr %s377, 8
      %s379 = scalar_lea.vmem %s0, %s378
      %p380 = pneg %p44
      %p381 = pneg %p41
      %p382 = scmp.lt.s32.totalorder %s23, 1
      %s383 = scalar_select %p382, %s23, 1
      %s384 = smul.addr %s383, 8
      %s385 = scalar_lea.vmem %s1, %s384
      %p386 = pneg %p70
      %p387 = pneg %p67
      %p388 = pneg %p91
      %p389 = pneg %p88
      %p390 = pneg %p112
      %p391 = pneg %p109
      %p392 = pneg %p133
      %p393 = pneg %p130
      %p394 = pneg %p154
      %p395 = pneg %p151
      %p396 = pneg %p175
      %p397 = pneg %p172
      %p398 = pneg %p196
      %p399 = pneg %p193
      %p400 = pneg %p217
      %p401 = pneg %p214
      %p402 = pneg %p238
      %p403 = pneg %p235
      %p404 = pneg %p259
      %p405 = pneg %p256
      %p406 = pneg %p280
      %p407 = pneg %p277
      %p408 = pneg %p306
      %p409 = pneg %p303
      %p410 = scmp.lt.s32.totalorder %s23, 1
      %s411 = scalar_select %p410, %s23, 1
      %s412 = smul.addr %s411, 8
      %s413 = scalar_lea.vmem %s12, %s412
      %p414 = scmp.lt.s32.totalorder %s23, 1
      %s415 = scalar_select %p414, %s23, 1
      %s416 = smul.addr %s415, 8
      %s417 = scalar_lea.vmem %s0, %s416
      %p418 = scmp.lt.s32.totalorder %s23, 1
      %s419 = scalar_select %p418, %s23, 1
      %s420 = smul.addr %s419, 8
      %s421 = scalar_lea.vmem %s1, %s420
      %p422 = scmp.lt.s32.totalorder %s23, 1
      %s423 = scalar_select %p422, %s23, 1
      %s424 = smul.addr %s423, 8
      %s425 = scalar_lea.vmem %s12, %s424
      %v427 = vld [vmem:[%s417] sm:$0xff]
      %v428 = vld [vmem:[%s421] sm:$0xff]
      %v429 = vlaneseq
      %v430 = vshrl.u32 %v429, 7
      %v431 = vlaneseq
      %v432 = vand.u32 %v431, 127
      %vm433 = vcmp.le.s32.totalorder %v432, %v430
      %v434 = vsel %vm433, 0.0, -1e+30
      %v435 = vld [vmem:[%s2] sm:$0xff]
      %v436 = vld [vmem:[%s2 + $0x8] sm:$0xff]
      %v437 = vld [vmem:[%s2 + $0x10] sm:$0xff]
      %v438 = vld [vmem:[%s2 + $0x18] sm:$0xff]
      %v439 = vpack.c.bf16 %v427, %v427
      %v440 = vpack.c.bf16 %v436, %v435
      %v441 = vpack.c.bf16 %v438, %v437
      %v442 = vld [vmem:[%s3] sm:$0x1]
      %v444 = vperm.slane %v442, 0
      %vm446 = vcmask 261120
      %v448 = vsel %vm446, %v439, 0
      %450 = vmatpush.bf16.msra.mxu0 0
      %451 = vmatpush.bf16.msra.mxu0 0
      %452 = vmatpush.bf16.msra.mxu0 0
      %453 = vmatpush.bf16.msra.mxu0 0
      %454 = vmatpush.bf16.msra.mxu0 0
      %455 = vmatpush.bf16.msra.mxu0 0
      %456 = vmatpush.bf16.msra.mxu0 %v441
      %457 = vmatpush.bf16.msra.mxu0 %v440
      %458 = vmatmul.bf16.gmra.mxu0 %v448
      %v459 = vpop.f32.mrf.mxu0
      %v460 = vadd.f32 %v444, %v459
      %v461 = vpop.f32.mrf.mxu0
      %462 = vdwg.mxu0
      %v463 = vld [vmem:[%s4] sm:$0xff]
      %v464 = vld [vmem:[%s4 + $0x8] sm:$0xff]
      %v465 = vld [vmem:[%s4 + $0x10] sm:$0xff]
      %v466 = vld [vmem:[%s4 + $0x18] sm:$0xff]
      %v467 = vpack.c.bf16 %v428, %v428
      %v468 = vpack.c.bf16 %v464, %v463
      %v469 = vpack.c.bf16 %v466, %v465
      %v470 = vld [vmem:[%s5] sm:$0x1]
      %v472 = vperm.slane %v470, 0
      %v475 = vsel %vm446, %v467, 0
      %477 = vmatpush.bf16.msra.mxu0 0
      %478 = vmatpush.bf16.msra.mxu0 0
      %479 = vmatpush.bf16.msra.mxu0 0
      %480 = vmatpush.bf16.msra.mxu0 0
      %481 = vmatpush.bf16.msra.mxu0 0
      %482 = vmatpush.bf16.msra.mxu0 0
      %483 = vmatpush.bf16.msra.mxu0 %v469
      %484 = vmatpush.bf16.msra.mxu0 %v468
      %485 = vmatmul.bf16.gmra.mxu0 %v475
      %v486 = vpop.f32.mrf.mxu0
      %v487 = vadd.f32 %v472, %v486
      %v488 = vpop.f32.mrf.mxu0
      %489 = vdwg.mxu0
      %v490 = vld [vmem:[%s6] sm:$0xff]
      %v491 = vld [vmem:[%s6 + $0x8] sm:$0xff]
      %v492 = vld [vmem:[%s6 + $0x10] sm:$0xff]
      %v493 = vld [vmem:[%s6 + $0x18] sm:$0xff]
      %v494 = vpack.c.bf16 %v491, %v490
      %v495 = vpack.c.bf16 %v493, %v492
      %v496 = vld [vmem:[%s7] sm:$0x1]
      %v498 = vperm.slane %v496, 0
      %500 = vmatpush.bf16.msra.mxu0 0
      %501 = vmatpush.bf16.msra.mxu0 0
      %502 = vmatpush.bf16.msra.mxu0 0
      %503 = vmatpush.bf16.msra.mxu0 0
      %504 = vmatpush.bf16.msra.mxu0 0
      %505 = vmatpush.bf16.msra.mxu0 0
      %506 = vmatpush.bf16.msra.mxu0 %v495
      %507 = vmatpush.bf16.msra.mxu0 %v494
      %508 = vmatmul.bf16.gmra.mxu0 %v475
      %v509 = vpop.f32.mrf.mxu0
      %v510 = vadd.f32 %v498, %v509
      %v511 = vpop.f32.mrf.mxu0
      %512 = vdwg.mxu0
      %v513 = vmul.f32 %v460, 0.35355338
      %v514 = vpack.c.bf16 %v513, %v513
      %v515 = vpack.c.bf16 %v487, %v487
      %vm516 = vcmask 64512
      %v518 = vsel %vm516, %v514, 0
      %v521 = vsel %vm516, %v515, 0
      %523 = vmatpush.bf16.xpose.msra.mxu0 0
      %524 = vmatpush.bf16.xpose.msra.mxu0 0
      %525 = vmatpush.bf16.xpose.msra.mxu0 0
      %526 = vmatpush.bf16.xpose.msra.mxu0 0
      %527 = vmatpush.bf16.xpose.msra.mxu0 0
      %528 = vmatpush.bf16.xpose.msra.mxu0 0
      %529 = vmatpush.bf16.xpose.msra.mxu0 0
      %530 = vmatpush.bf16.xpose.msra.mxu0 %v521
      %531 = vmatmul.bf16.gmra.mxu0 %v518
      %v532 = vpop.f32.mrf.mxu0
      %v533 = vadd.f32 %v434, %v532
      %v534 = vpop.f32.mrf.mxu0
      %535 = vdwg.mxu0
      %v536 = vsel %vm516, %v533, -inf
      %537 = vmax.xlane.f32.xlu0 %v536
      %v538 = vpop.xlane.xlu0 %537
      %v539 = vsub.f32 %v533, %v538
      %v540 = vmul.f32 %v539, 1.442695
      %v541 = vpow.pop %v540
      %v542 = vsel %vm516, %v541, 0.0
      %543 = vadd.xlane.f32.xlu0 %v542
      %v544 = vpop.xlane.xlu0 %543
      %v545 = vrcp.pop %v544
      %v546 = vmul.f32 %v541, %v545
      %v547 = vpack.c.bf16 %v546, %v546
      %v548 = vpack.c.bf16 %v510, %v510
      %v550 = vsel %vm516, %v547, 0
      %vm552 = vcmask 1043456
      %v554 = vsel %vm552, %v548, 0
      %556 = vmatpush.bf16.msra.mxu0 0
      %557 = vmatpush.bf16.msra.mxu0 0
      %558 = vmatpush.bf16.msra.mxu0 0
      %559 = vmatpush.bf16.msra.mxu0 0
      %560 = vmatpush.bf16.msra.mxu0 0
      %561 = vmatpush.bf16.msra.mxu0 0
      %562 = vmatpush.bf16.msra.mxu0 0
      %563 = vmatpush.bf16.msra.mxu0 %v554
      %564 = vmatmul.bf16.gmra.mxu0 %v550
      %v565 = vpop.f32.mrf.mxu0
      %v566 = vadd.f32 0.0, %v565
      %v567 = vpop.f32.mrf.mxu0
      %568 = vdwg.mxu0
      %v569 = vld [vmem:[%s8] sm:$0xff]
      %v570 = vpack.c.bf16 %v566, %v566
      %v571 = vpack.c.bf16 %v569, %v569
      %s572 = scalar_lea.vmem %s2, 32
      %v573 = vld [vmem:[%s572] sm:$0xff]
      %v574 = vld [vmem:[%s572 + $0x8] sm:$0xff]
      %v575 = vld [vmem:[%s572 + $0x10] sm:$0xff]
      %v576 = vld [vmem:[%s572 + $0x18] sm:$0xff]
      %v577 = vpack.c.bf16 %v574, %v573
      %v578 = vpack.c.bf16 %v576, %v575
      %s579 = scalar_lea.vmem %s3, 1
      %v580 = vld [vmem:[%s579] sm:$0x1]
      %v582 = vperm.slane %v580, 0
      %584 = vmatpush.bf16.msra.mxu0 0
      %585 = vmatpush.bf16.msra.mxu0 0
      %586 = vmatpush.bf16.msra.mxu0 0
      %587 = vmatpush.bf16.msra.mxu0 0
      %588 = vmatpush.bf16.msra.mxu0 0
      %589 = vmatpush.bf16.msra.mxu0 0
      %590 = vmatpush.bf16.msra.mxu0 %v578
      %591 = vmatpush.bf16.msra.mxu0 %v577
      %592 = vmatmul.bf16.gmra.mxu0 %v448
      %v593 = vpop.f32.mrf.mxu0
      %v594 = vadd.f32 %v582, %v593
      %v595 = vpop.f32.mrf.mxu0
      %596 = vdwg.mxu0
      %s597 = scalar_lea.vmem %s4, 32
      %v598 = vld [vmem:[%s597] sm:$0xff]
      %v599 = vld [vmem:[%s597 + $0x8] sm:$0xff]
      %v600 = vld [vmem:[%s597 + $0x10] sm:$0xff]
      %v601 = vld [vmem:[%s597 + $0x18] sm:$0xff]
      %v602 = vpack.c.bf16 %v599, %v598
      %v603 = vpack.c.bf16 %v601, %v600
      %s604 = scalar_lea.vmem %s5, 1
      %v605 = vld [vmem:[%s604] sm:$0x1]
      %v607 = vperm.slane %v605, 0
      %609 = vmatpush.bf16.msra.mxu0 0
      %610 = vmatpush.bf16.msra.mxu0 0
      %611 = vmatpush.bf16.msra.mxu0 0
      %612 = vmatpush.bf16.msra.mxu0 0
      %613 = vmatpush.bf16.msra.mxu0 0
      %614 = vmatpush.bf16.msra.mxu0 0
      %615 = vmatpush.bf16.msra.mxu0 %v603
      %616 = vmatpush.bf16.msra.mxu0 %v602
      %617 = vmatmul.bf16.gmra.mxu0 %v475
      %v618 = vpop.f32.mrf.mxu0
      %v619 = vadd.f32 %v607, %v618
      %v620 = vpop.f32.mrf.mxu0
      %621 = vdwg.mxu0
      %s622 = scalar_lea.vmem %s6, 32
      %v623 = vld [vmem:[%s622] sm:$0xff]
      %v624 = vld [vmem:[%s622 + $0x8] sm:$0xff]
      %v625 = vld [vmem:[%s622 + $0x10] sm:$0xff]
      %v626 = vld [vmem:[%s622 + $0x18] sm:$0xff]
      %v627 = vpack.c.bf16 %v624, %v623
      %v628 = vpack.c.bf16 %v626, %v625
      %s629 = scalar_lea.vmem %s7, 1
      %v630 = vld [vmem:[%s629] sm:$0x1]
      %v632 = vperm.slane %v630, 0
      %634 = vmatpush.bf16.msra.mxu0 0
      %635 = vmatpush.bf16.msra.mxu0 0
      %636 = vmatpush.bf16.msra.mxu0 0
      %637 = vmatpush.bf16.msra.mxu0 0
      %638 = vmatpush.bf16.msra.mxu0 0
      %639 = vmatpush.bf16.msra.mxu0 0
      %640 = vmatpush.bf16.msra.mxu0 %v628
      %641 = vmatpush.bf16.msra.mxu0 %v627
      %642 = vmatmul.bf16.gmra.mxu0 %v475
      %v643 = vpop.f32.mrf.mxu0
      %v644 = vadd.f32 %v632, %v643
      %v645 = vpop.f32.mrf.mxu0
      %646 = vdwg.mxu0
      %v647 = vmul.f32 %v594, 0.35355338
      %v648 = vpack.c.bf16 %v647, %v647
      %v649 = vpack.c.bf16 %v619, %v619
      %v651 = vsel %vm516, %v648, 0
      %v654 = vsel %vm516, %v649, 0
      %656 = vmatpush.bf16.xpose.msra.mxu0 0
      %657 = vmatpush.bf16.xpose.msra.mxu0 0
      %658 = vmatpush.bf16.xpose.msra.mxu0 0
      %659 = vmatpush.bf16.xpose.msra.mxu0 0
      %660 = vmatpush.bf16.xpose.msra.mxu0 0
      %661 = vmatpush.bf16.xpose.msra.mxu0 0
      %662 = vmatpush.bf16.xpose.msra.mxu0 0
      %663 = vmatpush.bf16.xpose.msra.mxu0 %v654
      %664 = vmatmul.bf16.gmra.mxu0 %v651
      %v665 = vpop.f32.mrf.mxu0
      %v666 = vadd.f32 %v434, %v665
      %v667 = vpop.f32.mrf.mxu0
      %668 = vdwg.mxu0
      %v669 = vsel %vm516, %v666, -inf
      %670 = vmax.xlane.f32.xlu0 %v669
      %v671 = vpop.xlane.xlu0 %670
      %v672 = vsub.f32 %v666, %v671
      %v673 = vmul.f32 %v672, 1.442695
      %v674 = vpow.pop %v673
      %v675 = vsel %vm516, %v674, 0.0
      %676 = vadd.xlane.f32.xlu0 %v675
      %v677 = vpop.xlane.xlu0 %676
      %v678 = vrcp.pop %v677
      %v679 = vmul.f32 %v674, %v678
      %v680 = vpack.c.bf16 %v679, %v679
      %v681 = vpack.c.bf16 %v644, %v644
      %v683 = vsel %vm516, %v680, 0
      %v686 = vsel %vm552, %v681, 0
      %688 = vmatpush.bf16.msra.mxu0 0
      %689 = vmatpush.bf16.msra.mxu0 0
      %690 = vmatpush.bf16.msra.mxu0 0
      %691 = vmatpush.bf16.msra.mxu0 0
      %692 = vmatpush.bf16.msra.mxu0 0
      %693 = vmatpush.bf16.msra.mxu0 0
      %694 = vmatpush.bf16.msra.mxu0 0
      %695 = vmatpush.bf16.msra.mxu0 %v686
      %696 = vmatmul.bf16.gmra.mxu0 %v683
      %v697 = vpop.f32.mrf.mxu0
      %v698 = vadd.f32 0.0, %v697
      %v699 = vpop.f32.mrf.mxu0
      %700 = vdwg.mxu0
      %s701 = scalar_lea.vmem %s8, 8
      %v702 = vld [vmem:[%s701] sm:$0xff]
      %v703 = vpack.c.bf16 %v698, %v698
      %v704 = vpack.c.bf16 %v702, %v702
      %v706 = vsel %vm516, %v703, 0
      %v709 = vsel %vm552, %v704, 0
      %711 = vmatpush.bf16.msra.mxu0 0
      %712 = vmatpush.bf16.msra.mxu0 0
      %713 = vmatpush.bf16.msra.mxu0 0
      %714 = vmatpush.bf16.msra.mxu0 0
      %715 = vmatpush.bf16.msra.mxu0 0
      %716 = vmatpush.bf16.msra.mxu0 0
      %717 = vmatpush.bf16.msra.mxu0 0
      %718 = vmatpush.bf16.msra.mxu0 %v709
      %719 = vmatmul.bf16.gmra.mxu0 %v706
      %v720 = vpop.f32.mrf.mxu0
      %v721 = vadd.f32 0.0, %v720
      %v722 = vpop.f32.mrf.mxu0
      %723 = vdwg.mxu0
      %v725 = vsel %vm516, %v570, 0
      %v728 = vsel %vm552, %v571, 0
      %730 = vmatpush.bf16.msra.mxu0 0
      %731 = vmatpush.bf16.msra.mxu0 0
      %732 = vmatpush.bf16.msra.mxu0 0
      %733 = vmatpush.bf16.msra.mxu0 0
      %734 = vmatpush.bf16.msra.mxu0 0
      %735 = vmatpush.bf16.msra.mxu0 0
      %736 = vmatpush.bf16.msra.mxu0 0
      %737 = vmatpush.bf16.msra.mxu0 %v728
      %738 = vmatmul.bf16.gmra.mxu0 %v725
      %v739 = vpop.f32.mrf.mxu0
      %v740 = vadd.f32 %v721, %v739
      %v741 = vpop.f32.mrf.mxu0
      %742 = vdwg.mxu0
      %s743 = scalar_lea.vmem %s2, 64
      %v744 = vld [vmem:[%s743] sm:$0xff]
      %v745 = vld [vmem:[%s743 + $0x8] sm:$0xff]
      %v746 = vld [vmem:[%s743 + $0x10] sm:$0xff]
      %v747 = vld [vmem:[%s743 + $0x18] sm:$0xff]
      %v748 = vpack.c.bf16 %v745, %v744
      %v749 = vpack.c.bf16 %v747, %v746
      %s750 = scalar_lea.vmem %s3, 2
      %v751 = vld [vmem:[%s750] sm:$0x1]
      %v753 = vperm.slane %v751, 0
      %755 = vmatpush.bf16.msra.mxu0 0
      %756 = vmatpush.bf16.msra.mxu0 0
      %757 = vmatpush.bf16.msra.mxu0 0
      %758 = vmatpush.bf16.msra.mxu0 0
      %759 = vmatpush.bf16.msra.mxu0 0
      %760 = vmatpush.bf16.msra.mxu0 0
      %761 = vmatpush.bf16.msra.mxu0 %v749
      %762 = vmatpush.bf16.msra.mxu0 %v748
      %763 = vmatmul.bf16.gmra.mxu0 %v448
      %v764 = vpop.f32.mrf.mxu0
      %v765 = vadd.f32 %v753, %v764
      %v766 = vpop.f32.mrf.mxu0
      %767 = vdwg.mxu0
      %s768 = scalar_lea.vmem %s4, 64
      %v769 = vld [vmem:[%s768] sm:$0xff]
      %v770 = vld [vmem:[%s768 + $0x8] sm:$0xff]
      %v771 = vld [vmem:[%s768 + $0x10] sm:$0xff]
      %v772 = vld [vmem:[%s768 + $0x18] sm:$0xff]
      %v773 = vpack.c.bf16 %v770, %v769
      %v774 = vpack.c.bf16 %v772, %v771
      %s775 = scalar_lea.vmem %s5, 2
      %v776 = vld [vmem:[%s775] sm:$0x1]
      %v778 = vperm.slane %v776, 0
      %780 = vmatpush.bf16.msra.mxu0 0
      %781 = vmatpush.bf16.msra.mxu0 0
      %782 = vmatpush.bf16.msra.mxu0 0
      %783 = vmatpush.bf16.msra.mxu0 0
      %784 = vmatpush.bf16.msra.mxu0 0
      %785 = vmatpush.bf16.msra.mxu0 0
      %786 = vmatpush.bf16.msra.mxu0 %v774
      %787 = vmatpush.bf16.msra.mxu0 %v773
      %788 = vmatmul.bf16.gmra.mxu0 %v475
      %v789 = vpop.f32.mrf.mxu0
      %v790 = vadd.f32 %v778, %v789
      %v791 = vpop.f32.mrf.mxu0
      %792 = vdwg.mxu0
      %s793 = scalar_lea.vmem %s6, 64
      %v794 = vld [vmem:[%s793] sm:$0xff]
      %v795 = vld [vmem:[%s793 + $0x8] sm:$0xff]
      %v796 = vld [vmem:[%s793 + $0x10] sm:$0xff]
      %v797 = vld [vmem:[%s793 + $0x18] sm:$0xff]
      %v798 = vpack.c.bf16 %v795, %v794
      %v799 = vpack.c.bf16 %v797, %v796
      %s800 = scalar_lea.vmem %s7, 2
      %v801 = vld [vmem:[%s800] sm:$0x1]
      %v803 = vperm.slane %v801, 0
      %805 = vmatpush.bf16.msra.mxu0 0
      %806 = vmatpush.bf16.msra.mxu0 0
      %807 = vmatpush.bf16.msra.mxu0 0
      %808 = vmatpush.bf16.msra.mxu0 0
      %809 = vmatpush.bf16.msra.mxu0 0
      %810 = vmatpush.bf16.msra.mxu0 0
      %811 = vmatpush.bf16.msra.mxu0 %v799
      %812 = vmatpush.bf16.msra.mxu0 %v798
      %813 = vmatmul.bf16.gmra.mxu0 %v475
      %v814 = vpop.f32.mrf.mxu0
      %v815 = vadd.f32 %v803, %v814
      %v816 = vpop.f32.mrf.mxu0
      %817 = vdwg.mxu0
      %v818 = vmul.f32 %v765, 0.35355338
      %v819 = vpack.c.bf16 %v818, %v818
      %v820 = vpack.c.bf16 %v790, %v790
      %v822 = vsel %vm516, %v819, 0
      %v825 = vsel %vm516, %v820, 0
      %827 = vmatpush.bf16.xpose.msra.mxu0 0
      %828 = vmatpush.bf16.xpose.msra.mxu0 0
      %829 = vmatpush.bf16.xpose.msra.mxu0 0
      %830 = vmatpush.bf16.xpose.msra.mxu0 0
      %831 = vmatpush.bf16.xpose.msra.mxu0 0
      %832 = vmatpush.bf16.xpose.msra.mxu0 0
      %833 = vmatpush.bf16.xpose.msra.mxu0 0
      %834 = vmatpush.bf16.xpose.msra.mxu0 %v825
      %835 = vmatmul.bf16.gmra.mxu0 %v822
      %v836 = vpop.f32.mrf.mxu0
      %v837 = vadd.f32 %v434, %v836
      %v838 = vpop.f32.mrf.mxu0
      %839 = vdwg.mxu0
      %v840 = vsel %vm516, %v837, -inf
      %841 = vmax.xlane.f32.xlu0 %v840
      %v842 = vpop.xlane.xlu0 %841
      %v843 = vsub.f32 %v837, %v842
      %v844 = vmul.f32 %v843, 1.442695
      %v845 = vpow.pop %v844
      %v846 = vsel %vm516, %v845, 0.0
      %847 = vadd.xlane.f32.xlu0 %v846
      %v848 = vpop.xlane.xlu0 %847
      %v849 = vrcp.pop %v848
      %v850 = vmul.f32 %v845, %v849
      %v851 = vpack.c.bf16 %v850, %v850
      %v852 = vpack.c.bf16 %v815, %v815
      %v854 = vsel %vm516, %v851, 0
      %v857 = vsel %vm552, %v852, 0
      %859 = vmatpush.bf16.msra.mxu0 0
      %860 = vmatpush.bf16.msra.mxu0 0
      %861 = vmatpush.bf16.msra.mxu0 0
      %862 = vmatpush.bf16.msra.mxu0 0
      %863 = vmatpush.bf16.msra.mxu0 0
      %864 = vmatpush.bf16.msra.mxu0 0
      %865 = vmatpush.bf16.msra.mxu0 0
      %866 = vmatpush.bf16.msra.mxu0 %v857
      %867 = vmatmul.bf16.gmra.mxu0 %v854
      %v868 = vpop.f32.mrf.mxu0
      %v869 = vadd.f32 0.0, %v868
      %v870 = vpop.f32.mrf.mxu0
      %871 = vdwg.mxu0
      %s872 = scalar_lea.vmem %s8, 16
      %v873 = vld [vmem:[%s872] sm:$0xff]
      %v874 = vpack.c.bf16 %v869, %v869
      %v875 = vpack.c.bf16 %v873, %v873
      %v877 = vsel %vm516, %v874, 0
      %v880 = vsel %vm552, %v875, 0
      %882 = vmatpush.bf16.msra.mxu0 0
      %883 = vmatpush.bf16.msra.mxu0 0
      %884 = vmatpush.bf16.msra.mxu0 0
      %885 = vmatpush.bf16.msra.mxu0 0
      %886 = vmatpush.bf16.msra.mxu0 0
      %887 = vmatpush.bf16.msra.mxu0 0
      %888 = vmatpush.bf16.msra.mxu0 0
      %889 = vmatpush.bf16.msra.mxu0 %v880
      %890 = vmatmul.bf16.gmra.mxu0 %v877
      %v891 = vpop.f32.mrf.mxu0
      %v892 = vadd.f32 0.0, %v891
      %v893 = vpop.f32.mrf.mxu0
      %894 = vdwg.mxu0
      %v895 = vadd.f32 %v740, %v892
      %s896 = scalar_lea.vmem %s2, 96
      %v897 = vld [vmem:[%s896] sm:$0xff]
      %v898 = vld [vmem:[%s896 + $0x8] sm:$0xff]
      %v899 = vld [vmem:[%s896 + $0x10] sm:$0xff]
      %v900 = vld [vmem:[%s896 + $0x18] sm:$0xff]
      %v901 = vpack.c.bf16 %v898, %v897
      %v902 = vpack.c.bf16 %v900, %v899
      %s903 = scalar_lea.vmem %s3, 3
      %v904 = vld [vmem:[%s903] sm:$0x1]
      %v906 = vperm.slane %v904, 0
      %908 = vmatpush.bf16.msra.mxu0 0
      %909 = vmatpush.bf16.msra.mxu0 0
      %910 = vmatpush.bf16.msra.mxu0 0
      %911 = vmatpush.bf16.msra.mxu0 0
      %912 = vmatpush.bf16.msra.mxu0 0
      %913 = vmatpush.bf16.msra.mxu0 0
      %914 = vmatpush.bf16.msra.mxu0 %v902
      %915 = vmatpush.bf16.msra.mxu0 %v901
      %916 = vmatmul.bf16.gmra.mxu0 %v448
      %v917 = vpop.f32.mrf.mxu0
      %v918 = vadd.f32 %v906, %v917
      %v919 = vpop.f32.mrf.mxu0
      %920 = vdwg.mxu0
      %s921 = scalar_lea.vmem %s4, 96
      %v922 = vld [vmem:[%s921] sm:$0xff]
      %v923 = vld [vmem:[%s921 + $0x8] sm:$0xff]
      %v924 = vld [vmem:[%s921 + $0x10] sm:$0xff]
      %v925 = vld [vmem:[%s921 + $0x18] sm:$0xff]
      %v926 = vpack.c.bf16 %v923, %v922
      %v927 = vpack.c.bf16 %v925, %v924
      %s928 = scalar_lea.vmem %s5, 3
      %v929 = vld [vmem:[%s928] sm:$0x1]
      %v931 = vperm.slane %v929, 0
      %933 = vmatpush.bf16.msra.mxu0 0
      %934 = vmatpush.bf16.msra.mxu0 0
      %935 = vmatpush.bf16.msra.mxu0 0
      %936 = vmatpush.bf16.msra.mxu0 0
      %937 = vmatpush.bf16.msra.mxu0 0
      %938 = vmatpush.bf16.msra.mxu0 0
      %939 = vmatpush.bf16.msra.mxu0 %v927
      %940 = vmatpush.bf16.msra.mxu0 %v926
      %941 = vmatmul.bf16.gmra.mxu0 %v475
      %v942 = vpop.f32.mrf.mxu0
      %v943 = vadd.f32 %v931, %v942
      %v944 = vpop.f32.mrf.mxu0
      %945 = vdwg.mxu0
      %s946 = scalar_lea.vmem %s6, 96
      %v947 = vld [vmem:[%s946] sm:$0xff]
      %v948 = vld [vmem:[%s946 + $0x8] sm:$0xff]
      %v949 = vld [vmem:[%s946 + $0x10] sm:$0xff]
      %v950 = vld [vmem:[%s946 + $0x18] sm:$0xff]
      %v951 = vpack.c.bf16 %v948, %v947
      %v952 = vpack.c.bf16 %v950, %v949
      %s953 = scalar_lea.vmem %s7, 3
      %v954 = vld [vmem:[%s953] sm:$0x1]
      %v956 = vperm.slane %v954, 0
      %958 = vmatpush.bf16.msra.mxu0 0
      %959 = vmatpush.bf16.msra.mxu0 0
      %960 = vmatpush.bf16.msra.mxu0 0
      %961 = vmatpush.bf16.msra.mxu0 0
      %962 = vmatpush.bf16.msra.mxu0 0
      %963 = vmatpush.bf16.msra.mxu0 0
      %964 = vmatpush.bf16.msra.mxu0 %v952
      %965 = vmatpush.bf16.msra.mxu0 %v951
      %966 = vmatmul.bf16.gmra.mxu0 %v475
      %v967 = vpop.f32.mrf.mxu0
      %v968 = vadd.f32 %v956, %v967
      %v969 = vpop.f32.mrf.mxu0
      %970 = vdwg.mxu0
      %v971 = vmul.f32 %v918, 0.35355338
      %v972 = vpack.c.bf16 %v971, %v971
      %v973 = vpack.c.bf16 %v943, %v943
      %v975 = vsel %vm516, %v972, 0
      %v978 = vsel %vm516, %v973, 0
      %980 = vmatpush.bf16.xpose.msra.mxu0 0
      %981 = vmatpush.bf16.xpose.msra.mxu0 0
      %982 = vmatpush.bf16.xpose.msra.mxu0 0
      %983 = vmatpush.bf16.xpose.msra.mxu0 0
      %984 = vmatpush.bf16.xpose.msra.mxu0 0
      %985 = vmatpush.bf16.xpose.msra.mxu0 0
      %986 = vmatpush.bf16.xpose.msra.mxu0 0
      %987 = vmatpush.bf16.xpose.msra.mxu0 %v978
      %988 = vmatmul.bf16.gmra.mxu0 %v975
      %v989 = vpop.f32.mrf.mxu0
      %v990 = vadd.f32 %v434, %v989
      %v991 = vpop.f32.mrf.mxu0
      %992 = vdwg.mxu0
      %v993 = vsel %vm516, %v990, -inf
      %994 = vmax.xlane.f32.xlu0 %v993
      %v995 = vpop.xlane.xlu0 %994
      %v996 = vsub.f32 %v990, %v995
      %v997 = vmul.f32 %v996, 1.442695
      %v998 = vpow.pop %v997
      %v999 = vsel %vm516, %v998, 0.0
      %1000 = vadd.xlane.f32.xlu0 %v999
      %v1001 = vpop.xlane.xlu0 %1000
      %v1002 = vrcp.pop %v1001
      %v1003 = vmul.f32 %v998, %v1002
      %v1004 = vpack.c.bf16 %v1003, %v1003
      %v1005 = vpack.c.bf16 %v968, %v968
      %v1007 = vsel %vm516, %v1004, 0
      %v1010 = vsel %vm552, %v1005, 0
      %1012 = vmatpush.bf16.msra.mxu0 0
      %1013 = vmatpush.bf16.msra.mxu0 0
      %1014 = vmatpush.bf16.msra.mxu0 0
      %1015 = vmatpush.bf16.msra.mxu0 0
      %1016 = vmatpush.bf16.msra.mxu0 0
      %1017 = vmatpush.bf16.msra.mxu0 0
      %1018 = vmatpush.bf16.msra.mxu0 0
      %1019 = vmatpush.bf16.msra.mxu0 %v1010
      %1020 = vmatmul.bf16.gmra.mxu0 %v1007
      %v1021 = vpop.f32.mrf.mxu0
      %v1022 = vadd.f32 0.0, %v1021
      %v1023 = vpop.f32.mrf.mxu0
      %1024 = vdwg.mxu0
      %s1025 = scalar_lea.vmem %s8, 24
      %v1026 = vld [vmem:[%s1025] sm:$0xff]
      %v1027 = vpack.c.bf16 %v1022, %v1022
      %v1028 = vpack.c.bf16 %v1026, %v1026
      %v1030 = vsel %vm516, %v1027, 0
      %v1033 = vsel %vm552, %v1028, 0
      %1035 = vmatpush.bf16.msra.mxu0 0
      %1036 = vmatpush.bf16.msra.mxu0 0
      %1037 = vmatpush.bf16.msra.mxu0 0
      %1038 = vmatpush.bf16.msra.mxu0 0
      %1039 = vmatpush.bf16.msra.mxu0 0
      %1040 = vmatpush.bf16.msra.mxu0 0
      %1041 = vmatpush.bf16.msra.mxu0 0
      %1042 = vmatpush.bf16.msra.mxu0 %v1033
      %1043 = vmatmul.bf16.gmra.mxu0 %v1030
      %v1044 = vpop.f32.mrf.mxu0
      %v1045 = vadd.f32 0.0, %v1044
      %v1046 = vpop.f32.mrf.mxu0
      %1047 = vdwg.mxu0
      %v1048 = vadd.f32 %v895, %v1045
      %v1049 = vld [vmem:[%s9] sm:$0x1]
      %v1051 = vperm.slane %v1049, 0
      %v1053 = vadd.f32 %v1048, %v1051
      %v1054 = vld [vmem:[%s10] sm:$0x1]
      %v1055 = vld [vmem:[%s11] sm:$0x1]
      %v1056 = vadd.f32 %v427, %v1053
      %v1057 = vsel %vm446, %v1056, 0.0
      %1058 = vadd.xlane.f32.xlu0 %v1057
      %v1059 = vpop.xlane.xlu0 %1058
      %v1060 = vrcp.pop 32.0
      %v1061 = vmul.f32 32.0, %v1060
      %v1062 = vsub.f32 1.0, %v1061
      %v1063 = vmul.f32 %v1060, %v1062
      %v1064 = vadd.f32 %v1060, %v1063
      %vm1065 = vweird.f32 %v1060
      %v1066 = vsel %vm1065, %v1060, %v1064
      %v1067 = vmul.f32 %v1059, %v1066
      %v1068 = vmul.f32 %v1056, %v1056
      %v1069 = vsel %vm446, %v1068, 0.0
      %1070 = vadd.xlane.f32.xlu0 %v1069
      %v1071 = vpop.xlane.xlu0 %1070
      %v1072 = vmul.f32 %v1071, %v1066
      %v1073 = vmul.f32 %v1067, %v1067
      %v1074 = vsub.f32 %v1072, %v1073
      %v1075 = vsub.f32 %v1056, %v1067
      %v1076 = vadd.f32 %v1074, 1e-05
      %v1077 = vrsqrt.pop %v1076
      %v1078 = vmul.f32 %v1077, %v1076
      %v1079 = vmul.f32 %v1078, %v1077
      %v1080 = vmul.f32 0.5, %v1079
      %v1081 = vsub.f32 1.5, %v1080
      %v1082 = vmul.f32 %v1077, %v1081
      %vm1083 = vweird.f32 %v1076
      %vm1084 = vweird.f32 %v1077
      %vm1085 = vmor %vm1083, %vm1084
      %v1086 = vsel %vm1085, %v1077, %v1082
      %v1087 = vmul.f32 %v1075, %v1086
      %v1089 = vperm.slane %v1054, 0
      %v1091 = vmul.f32 %v1087, %v1089
      %v1093 = vperm.slane %v1055, 0
      %v1095 = vadd.f32 %v1091, %v1093
      %1096 = vst.msk [vmem:[%s425] sm:$0xff] %vm446, %v1095
      %p1097 = scmp.lt.s32.totalorder %s23, 1
      %s1098 = scalar_select %p1097, %s23, 1
      %s1099 = smul.addr %s1098, 8
      %s1100 = scalar_lea.vmem %s12, %s1099
      // Predicated region
      $region69: #{seq2seq_forward.15} parent=67 // pred_check
        %p1101 = pneg %p303
      $region70: #{seq2seq_forward.15} parent=67 // pred_check_branch
        %1103 = sbr.rel (%p1101) target = $region72
      $region71: #{seq2seq_forward.15} parent=67 // pred_region
        _
      $region72: #{seq2seq_forward.15} parent=67 // pred_fallthru
        _
    $region68: #{seq2seq_forward.15} parent=5 // pred_fallthru
      _
    %p1104 = scmp.le.s32.totalorder 2, %s18
    // Predicated region
    $region73: #{seq2seq_forward.15} parent=5 // pred_check
      %p1105 = pneg %p1104
    $region74: #{seq2seq_forward.15} parent=5 // pred_check_branch
      %1107 = sbr.rel (%p1105) target = $region76
    $region75: #{seq2seq_forward.15} parent=5 // pred_region
      %s1108 = ssub.s32 %s18, 2
      // Predicated region
      $region77: #{seq2seq_forward.15} parent=75 // pred_check
        %p1109 = pneg %p309
      $region78: #{seq2seq_forward.15} parent=75 // pred_check_branch
        %1111 = sbr.rel (%p1109) target = $region80
      $region79: #{seq2seq_forward.15} parent=75 // pred_region
        %p1112 = scmp.lt.s32.totalorder %s24, 1
        %s1113 = scalar_select %p1112, %s24, 1
        %s1114 = smul.addr %s1113, 8
        %s1115 = scalar_lea.vmem %s12, %s1114
      $region80: #{seq2seq_forward.15} parent=75 // pred_fallthru
        _
    $region76: #{seq2seq_forward.15} parent=5 // pred_fallthru
      _
  $region6: #{seq2seq_forward.15} parent=0 // loop_footer
    %s22 = sadd.s32 1, %s18
  $region7: #{seq2seq_forward.15} parent=0 // loop_footer_branch
    %17 = sbr.rel target = $region3
  $region8: #{seq2seq_forward.15} parent=0 // loop_exit
    _

</llo_original>
